<compile_context>
chip_gen: v7x
topology: tpu7x:2x2x1
jax: 0.10.0
libtpu: 0.0.40
codegen_flags: <defaults>
</compile_context>

<pallas_src>
import math
from functools import partial

import jax
import jax.numpy as jnp
from jax.experimental import pallas as pl
from jax.experimental.pallas import tpu as pltpu

H = 8                      # MultiHeadedCombination(8, dmodel)
MXU_DTYPE = jnp.bfloat16   # matmul operand dtype (accumulation stays f32)


def _layernorm(x, a, b, eps=1e-6):
    # Recoder LayerNorm: a * (x - mean) / (std_unbiased + eps) + b  (torch.std -> ddof=1)
    d = x.shape[-1]
    mean = jnp.mean(x, axis=-1, keepdims=True)
    var = jnp.sum((x - mean) ** 2, axis=-1, keepdims=True) / (d - 1)
    inv = pl.reciprocal(jnp.sqrt(var) + eps, approx=False)
    return (x - mean) * inv * a + b


def _mhc_core(x, v_in, wqk_ref, bqk_ref, wv_ref, bv_ref, hmask_ref, hmask_t_ref):
    """MultiHeadedCombination(x, x, v_in) WITHOUT the output projection.

    q/k share the input -> one fused [D, 2D] projection.  softmax over the 2-entry
    score vector == sigmoid of the score difference, so only one per-head score
    matmul (K=D) and one tiny per-head broadcast (K=H) remain.  hmask already
    carries the 1/sqrt(d_k) scale (folded on the host).
    """
    d = x.shape[-1]
    cdt = wqk_ref.dtype   # MXU dtype (bf16)

    qk = jnp.dot(x.astype(cdt), wqk_ref[...],
                 preferred_element_type=jnp.float32) + bqk_ref[...]         # (TN, 2D)
    q = qk[:, :d]
    k = qk[:, d:]
    v = jnp.dot(v_in.astype(cdt), wv_ref[...],
                preferred_element_type=jnp.float32) + bv_ref[...]           # (TN, D)

    kmv = k - v
    s = jnp.dot((q * kmv).astype(cdt), hmask_ref[...],
                preferred_element_type=jnp.float32)                         # (TN, H), scaled
    g = jax.nn.sigmoid(s)                                                   # a1 (a2 = 1 - a1)
    # broadcast the per-head gate back to its d_k lanes (tiny K=H constant-mask matmul).
    gf = jnp.dot(g.astype(cdt), hmask_t_ref[...], preferred_element_type=jnp.float32)
    return v + gf * kmv                                                     # a1*k + a2*v


def _stage1_kernel(state_ref, rule_ref, cdeg_ref,
                   ln1_a_ref, ln1_b_ref,
                   wqk_ref, bqk_ref, wv_ref, bv_ref,
                   w_s1_ref, b_s1_ref,
                   hmask_ref, hmask_t_ref,
                   mid_ref, smid_ref):
    x = state_ref[...]                                                  # (TN, D) f32
    x1 = _layernorm(x, ln1_a_ref[...], ln1_b_ref[...])
    # subconnect1 + linear, with the combination's output projection folded into linear:
    #   (x + comb@wo + bo) @ lin_w + lin_b == [x | comb] @ [lin_w ; wo@lin_w] + (bo@lin_w + lin_b)
    comb = _mhc_core(x1, rule_ref[...], wqk_ref, bqk_ref, wv_ref, bv_ref,
                     hmask_ref, hmask_t_ref)
    xc = jnp.concatenate([x, comb], axis=-1).astype(w_s1_ref.dtype)     # (TN, 2D)
    mid = jnp.dot(xc, w_s1_ref[...], preferred_element_type=jnp.float32) + b_s1_ref[...]
    mid_ref[...] = mid
    # column-degree-scaled copy (D^{-1/2} on the "j" side) for the stage-2 aggregation,
    # stored in bf16 so the resident matmul operand is half-size.
    smid_ref[...] = (cdeg_ref[...] * mid).astype(smid_ref.dtype)


def _stage2_kernel(mid_ref, ad_ref, smid_ref,
                   ln2_a_ref, ln2_b_ref,
                   wqk_ref, bqk_ref, wv_ref, bv_ref, wo_ref, bo_ref,
                   hmask_ref, hmask_t_ref,
                   out_ref):
    x = mid_ref[...]                                                    # (TN, D) f32
    ad = ad_ref[...]                                                    # (TN, Np) bf16, 0/1 exact
    # row degree computed from the block already in VMEM (XLU reduce, f32 accumulation).
    deg = jnp.sum(ad.astype(jnp.float32), axis=-1, keepdims=True)
    rdeg = jax.lax.rsqrt(jnp.maximum(deg, 1e-6))
    # state2 = rdeg * (A_rows @ (cdeg * state)) -- the normalized N x N adjacency is
    # never materialized; only the (TN, Np) row block of A is touched per step.
    state2 = rdeg * jnp.dot(ad, smid_ref[...], preferred_element_type=jnp.float32)
    x2 = _layernorm(x, ln2_a_ref[...], ln2_b_ref[...])
    # subconnect: state + com(LN2(state), LN2(state), state2)
    comb = _mhc_core(x2, state2, wqk_ref, bqk_ref, wv_ref, bv_ref, hmask_ref, hmask_t_ref)
    out_ref[...] = x + jnp.dot(comb.astype(wo_ref.dtype), wo_ref[...],
                               preferred_element_type=jnp.float32) + bo_ref[...]


def _vmem_cap_bytes():
    """Generation-aware scoped-VMEM budget (~75% of physical; safe fallback = 48 MiB)."""
    try:
        return int(0.75 * pltpu.get_tpu_info().vmem_capacity_bytes)
    except Exception:
        return 48 << 20   # safe on every generation (v7x has 64 MiB per TensorCore)


def _vmem_bytes_needed(n_pad, d, tn):
    """Conservative working-set estimate for one pallas_call (double-buffered blocks)."""
    f32, b16 = 4, 2
    weights = 2 * ((2 * d * d + d * d + 2 * d * d + d * d + 2 * d * H) * b16 + 12 * d * f32)
    smid_res = 2 * n_pad * d * b16                 # stage-2 resident column-scaled state
    adj = 2 * tn * n_pad * b16                     # double-buffered bf16 adjacency row block
    row_blocks = 2 * (5 * tn * d * f32 + tn * d * b16 + tn * f32)
    return weights + smid_res + adj + row_blocks + (4 << 20)   # + Mosaic scratch headroom


def _choose_tile(n, d, cap, block_n=None):
    """Largest row-block that fits the VMEM cap; prefer >=2 blocks for megacore (v7x)."""
    cands = (block_n,) if block_n is not None else (512, 256, 128, 64, 32, 16, 8)
    fallback = None
    n_up8 = ((n + 7) // 8) * 8
    for tn in cands:
        if tn is None or tn <= 0 or tn % 8 or tn > max(8, n_up8):
            continue
        n_pad = tn * pl.cdiv(n, tn)
        if _vmem_bytes_needed(n_pad, d, tn) > cap:
            continue
        if fallback is None:
            fallback = (tn, n_pad)
        if n_pad // tn >= 2:
            return tn, n_pad
    if fallback is not None:
        return fallback
    tn = 8
    return tn, tn * pl.cdiv(n, tn)


@partial(jax.jit, static_argnames=("block_n",))
def gcnnm_forward(state, inputad, rule, params, *, block_n=None):
    """state/rule: (1, N, D) f32, inputad: (1, N, N) f32. Returns (1, N, D) f32."""
    assert state.shape[0] == 1, "module is invoked with batch_size=1"
    n, d = state.shape[1], state.shape[2]
    assert d % H == 0, "dmodel must be divisible by the number of combination heads"

    cap = _vmem_cap_bytes()
    tn, n_pad = _choose_tile(n, d, cap, block_n)
    grid = (n_pad // tn,)

    x = state[0]
    ad = inputad[0]
    r = rule[0]

    # column degree scaling (exact f32, computed before the bf16 cast of A).
    cdeg = jax.lax.rsqrt(jnp.maximum(jnp.sum(ad, axis=0), 1e-6)).reshape(n, 1)   # (N, 1)

    # Zero-pad N up to a multiple of tn so the row-block grid always applies.
    if n_pad != n:
        p = n_pad - n
        x = jnp.pad(x, ((0, p), (0, 0)))
        r = jnp.pad(r, ((0, p), (0, 0)))
        ad = jnp.pad(ad, ((0, p), (0, p)))
        cdeg = jnp.pad(cdeg, ((0, p), (0, 0)))     # zero -> padded smid rows are exactly 0

    # adjacency streamed to stage 2 in bf16: 0/1 entries are exact; halves the dominant DMA.
    # TODO(synk): a non-binary (weighted) adjacency loses precision here (keep f32 then);
    #             on v7x an fp8 copy / K-tiled aggregation would shrink it further for huge N.
    ad_b16 = ad.astype(MXU_DTYPE)

    # stage-1 fused linear weight (composed in f32, stored bf16).
    lin_w_f32 = params["lin_w"].astype(jnp.float32)
    wo_f32 = params["comb_wo"].astype(jnp.float32)
    w_s1 = jnp.concatenate([lin_w_f32, wo_f32 @ lin_w_f32], axis=0).astype(MXU_DTYPE)  # (2D, D)
    b_s1 = (params["comb_bo"] @ lin_w_f32 + params["lin_b"]).astype(jnp.float32)       # (1, D)

    # head-membership masks (1/sqrt(d_k) folded in), constant-folded under jit.
    d_k = d // H
    member = jnp.arange(d)[:, None] // d_k == jnp.arange(H)[None, :]
    hmask = (member * (1.0 / math.sqrt(d_k))).astype(MXU_DTYPE)    # (D, H), scaled
    hmask_t = member.T.astype(MXU_DTYPE)                           # (H, D)

    row = lambda i: (i, 0)     # blocked over sequence rows
    rep = lambda i: (0, 0)     # resident across the grid (weights, masks, full scaled state)
    blk_nd = pl.BlockSpec((tn, d), row)
    blk_n1 = pl.BlockSpec((tn, 1), row)
    res_1d = pl.BlockSpec((1, d), rep)
    res_dd = pl.BlockSpec((d, d), rep)
    res_d2d = pl.BlockSpec((d, 2 * d), rep)
    res_2dd = pl.BlockSpec((2 * d, d), rep)
    res_12d = pl.BlockSpec((1, 2 * d), rep)
    res_hm = pl.BlockSpec((d, H), rep)
    res_hmt = pl.BlockSpec((H, d), rep)

    cparams = pltpu.CompilerParams(
        dimension_semantics=("parallel",),            # independent row blocks -> megacore
        vmem_limit_bytes=int(min(max(_vmem_bytes_needed(n_pad, d, tn), 32 << 20), cap)),
    )

    # ---- stage 1: mid = linear(state + comb(LN1(state), LN1(state), rule)) -------------
    # (no input/output alias here: `x` derives from a non-donated jit input, aliasing it
    #  would just force a defensive copy)
    mid, smid = pl.pallas_call(
        _stage1_kernel,
        grid=grid,
        in_specs=[blk_nd, blk_nd, blk_n1,
                  res_1d, res_1d,
                  res_d2d, res_12d, res_dd, res_1d,
                  res_2dd, res_1d,
                  res_hm, res_hmt],
        out_specs=(blk_nd, blk_nd),
        out_shape=(jax.ShapeDtypeStruct((n_pad, d), jnp.float32),
                   jax.ShapeDtypeStruct((n_pad, d), MXU_DTYPE)),
        compiler_params=cparams,
    )(x, r, cdeg,
      params["ln1_a"], params["ln1_b"],
      params["comb_wqk"], params["comb_bqk"], params["comb_wv"], params["comb_bv"],
      w_s1, b_s1,
      hmask, hmask_t)

    # ---- stage 2: out = mid + com(LN2(mid), LN2(mid), rdeg * (A @ (cdeg * mid))) -------
    out = pl.pallas_call(
        _stage2_kernel,
        grid=grid,
        in_specs=[blk_nd,
                  pl.BlockSpec((tn, n_pad), row),     # bf16 adjacency row block (dominant DMA)
                  pl.BlockSpec((n_pad, d), rep),      # column-scaled state, resident, bf16
                  res_1d, res_1d,
                  res_d2d, res_12d, res_dd, res_1d, res_dd, res_1d,
                  res_hm, res_hmt],
        out_specs=blk_nd,
        out_shape=jax.ShapeDtypeStruct((n_pad, d), jnp.float32),
        input_output_aliases={0: 0},                  # reuse the (internal) mid buffer
        compiler_params=cparams,
    )(mid, ad_b16, smid,
      params["ln2_a"], params["ln2_b"],
      params["com_wqk"], params["com_bqk"], params["com_wv"], params["com_bv"],
      params["com_wo"], params["com_bo"],
      hmask, hmask_t)

    return out[:n][None]


def init_params(key, d):
    """Deterministic synthetic parameters (nn.Linear-style uniform init).

    Each MultiHeadedCombination's q/k projections are fused into one [D, 2D] weight;
    matmul weights are stored in MXU_DTYPE (bf16); biases / LayerNorm params stay f32.
    """
    scale = 1.0 / math.sqrt(d)

    def linear(k):
        kw, kb = jax.random.split(k)
        w = jax.random.uniform(kw, (d, d), jnp.float32, -scale, scale)   # [in, out] = torch W.T
        b = jax.random.uniform(kb, (d,), jnp.float32, -scale, scale)
        return w, b

    def combination(k):
        kq, kk, kv, ko = jax.random.split(k, 4)
        wq, bq = linear(kq)
        wk, bk = linear(kk)
        wv, bv = linear(kv)
        wo, bo = linear(ko)
        return {
            "wqk": jnp.concatenate([wq, wk], axis=1).astype(MXU_DTYPE),  # (D, 2D)
            "bqk": jnp.concatenate([bq, bk])[None, :],                   # (1, 2D) f32
            "wv": wv.astype(MXU_DTYPE), "bv": bv[None, :],
            "wo": wo.astype(MXU_DTYPE), "bo": bo[None, :],
        }

    k_comb, k_com, k_lin = jax.random.split(key, 3)
    comb = combination(k_comb)
    com = combination(k_com)
    lin_w, lin_b = linear(k_lin)

    params = {
        "ln1_a": jnp.ones((1, d), jnp.float32), "ln1_b": jnp.zeros((1, d), jnp.float32),
        "ln2_a": jnp.ones((1, d), jnp.float32), "ln2_b": jnp.zeros((1, d), jnp.float32),
        "lin_w": lin_w.astype(MXU_DTYPE), "lin_b": lin_b[None, :],
    }
    for name, c in (("comb", comb), ("com", com)):
        for kk, v in c.items():
            params[f"{name}_{kk}"] = v
    return params


if __name__ == "__main__":
    # batch=1 (module contract), seq=256, dmodel=128 (lane-aligned);
    # the auto tile chooser picks tn=128 -> a 2-step parallel row-block grid.
    B, N, D = 1, 256, 128
    key = jax.random.PRNGKey(0)
    k_state, k_rule, k_ad, k_params = jax.random.split(key, 4)

    state = jax.random.normal(k_state, (B, N, D), jnp.float32)
    rule = jax.random.normal(k_rule, (B, N, D), jnp.float32)
    inputad = (jax.random.uniform(k_ad, (B, N, N)) < 0.1).astype(jnp.float32)  # sparse 0/1 adjacency

    params = init_params(k_params, D)

    out = gcnnm_forward(state, inputad, rule, params)
    out = jax.block_until_ready(out)
    assert out.shape == (B, N, D) and out.dtype == jnp.float32
    assert bool(jnp.all(jnp.isfinite(out)))
    print("KERNEL_OK")
</pallas_src>

<mosaic_0001>
module attributes {stable_mosaic.version = 11 : i64} {
  func.func @_stage1_kernel(%arg0: i32, %arg1: memref<128x128xf32, #tpu.memory_space<vmem>>, %arg2: memref<128x128xf32, #tpu.memory_space<vmem>>, %arg3: memref<128x1xf32, #tpu.memory_space<vmem>>, %arg4: memref<1x128xf32, #tpu.memory_space<vmem>>, %arg5: memref<1x128xf32, #tpu.memory_space<vmem>>, %arg6: memref<128x256xbf16, #tpu.memory_space<vmem>>, %arg7: memref<1x256xf32, #tpu.memory_space<vmem>>, %arg8: memref<128x128xbf16, #tpu.memory_space<vmem>>, %arg9: memref<1x128xf32, #tpu.memory_space<vmem>>, %arg10: memref<256x128xbf16, #tpu.memory_space<vmem>>, %arg11: memref<1x128xf32, #tpu.memory_space<vmem>>, %arg12: memref<128x8xbf16, #tpu.memory_space<vmem>>, %arg13: memref<8x128xbf16, #tpu.memory_space<vmem>>, %arg14: memref<128x128xf32, #tpu.memory_space<vmem>>, %arg15: memref<128x128xbf16, #tpu.memory_space<vmem>>) attributes {dimension_semantics = [#tpu.dimension_semantics<parallel>], iteration_bounds = array<i64: 2>, scalar_prefetch = 0 : i64, scratch_operands = 0 : i64, tpu.core_type = #tpu.core_type<tc>, window_params = [{transform_indices = @transform_0, window_bounds = array<i64: 128, 128>}, {transform_indices = @transform_1, window_bounds = array<i64: 128, 128>}, {transform_indices = @transform_2, window_bounds = array<i64: 128, 1>}, {pipeline_mode = #tpu.pipeline_mode<synchronous>, transform_indices = @transform_3, window_bounds = array<i64: 1, 128>}, {pipeline_mode = #tpu.pipeline_mode<synchronous>, transform_indices = @transform_4, window_bounds = array<i64: 1, 128>}, {pipeline_mode = #tpu.pipeline_mode<synchronous>, transform_indices = @transform_5, window_bounds = array<i64: 128, 256>}, {pipeline_mode = #tpu.pipeline_mode<synchronous>, transform_indices = @transform_6, window_bounds = array<i64: 1, 256>}, {pipeline_mode = #tpu.pipeline_mode<synchronous>, transform_indices = @transform_7, window_bounds = array<i64: 128, 128>}, {pipeline_mode = #tpu.pipeline_mode<synchronous>, transform_indices = @transform_8, window_bounds = array<i64: 1, 128>}, {pipeline_mode = #tpu.pipeline_mode<synchronous>, transform_indices = @transform_9, window_bounds = array<i64: 256, 128>}, {pipeline_mode = #tpu.pipeline_mode<synchronous>, transform_indices = @transform_10, window_bounds = array<i64: 1, 128>}, {pipeline_mode = #tpu.pipeline_mode<synchronous>, transform_indices = @transform_11, window_bounds = array<i64: 128, 8>}, {pipeline_mode = #tpu.pipeline_mode<synchronous>, transform_indices = @transform_12, window_bounds = array<i64: 8, 128>}, {transform_indices = @transform_13, window_bounds = array<i64: 128, 128>}, {transform_indices = @transform_14, window_bounds = array<i64: 128, 128>}]} {
    %c0 = arith.constant 0 : index
    %c0_0 = arith.constant 0 : index
    %0 = vector.load %arg1[%c0, %c0_0] : memref<128x128xf32, #tpu.memory_space<vmem>>, vector<128x128xf32>
    %c0_1 = arith.constant 0 : index
    %c0_2 = arith.constant 0 : index
    %1 = vector.load %arg4[%c0_1, %c0_2] : memref<1x128xf32, #tpu.memory_space<vmem>>, vector<1x128xf32>
    %c0_3 = arith.constant 0 : index
    %c0_4 = arith.constant 0 : index
    %2 = vector.load %arg5[%c0_3, %c0_4] : memref<1x128xf32, #tpu.memory_space<vmem>>, vector<1x128xf32>
    %cst = arith.constant dense<0.000000e+00> : vector<128xf32>
    %3 = vector.multi_reduction <add>, %0, %cst [1] : vector<128x128xf32> to vector<128xf32>
    %4 = vector.shape_cast %3 : vector<128xf32> to vector<128x1xf32>
    %cst_5 = arith.constant 1.280000e+02 : f32
    %5 = vector.broadcast %cst_5 : f32 to vector<128x1xf32>
    %6 = arith.divf %4, %5 : vector<128x1xf32>
    %7 = vector.broadcast %6 : vector<128x1xf32> to vector<128x128xf32>
    %8 = arith.subf %0, %7 : vector<128x128xf32>
    %9 = arith.mulf %8, %8 : vector<128x128xf32>
    %cst_6 = arith.constant dense<0.000000e+00> : vector<128xf32>
    %10 = vector.multi_reduction <add>, %9, %cst_6 [1] : vector<128x128xf32> to vector<128xf32>
    %11 = vector.shape_cast %10 : vector<128xf32> to vector<128x1xf32>
    %cst_7 = arith.constant 1.270000e+02 : f32
    %12 = vector.broadcast %cst_7 : f32 to vector<128x1xf32>
    %13 = arith.divf %11, %12 : vector<128x1xf32>
    %14 = math.sqrt %13 : vector<128x1xf32>
    %cst_8 = arith.constant 9.99999997E-7 : f32
    %15 = vector.broadcast %cst_8 : f32 to vector<128x1xf32>
    %16 = arith.addf %14, %15 : vector<128x1xf32>
    %17 = tpu.reciprocal %16 : vector<128x1xf32> -> vector<128x1xf32>
    %18 = vector.broadcast %6 : vector<128x1xf32> to vector<128x128xf32>
    %19 = arith.subf %0, %18 : vector<128x128xf32>
    %20 = vector.broadcast %17 : vector<128x1xf32> to vector<128x128xf32>
    %21 = arith.mulf %19, %20 : vector<128x128xf32>
    %22 = vector.broadcast %1 : vector<1x128xf32> to vector<128x128xf32>
    %23 = arith.mulf %21, %22 : vector<128x128xf32>
    %24 = vector.broadcast %2 : vector<1x128xf32> to vector<128x128xf32>
    %25 = arith.addf %23, %24 : vector<128x128xf32>
    %c0_9 = arith.constant 0 : index
    %c0_10 = arith.constant 0 : index
    %26 = vector.load %arg2[%c0_9, %c0_10] : memref<128x128xf32, #tpu.memory_space<vmem>>, vector<128x128xf32>
    %27 = arith.truncf %25 : vector<128x128xf32> to vector<128x128xbf16>
    %c0_11 = arith.constant 0 : index
    %c0_12 = arith.constant 0 : index
    %28 = vector.load %arg6[%c0_11, %c0_12] : memref<128x256xbf16, #tpu.memory_space<vmem>>, vector<128x256xbf16>
    %cst_13 = arith.constant dense<0.000000e+00> : vector<128x256xf32>
    %29 = tpu.matmul %27, %28, %cst_13 {dimension_numbers = #tpu.dot_dimension_numbers<[1], [0], [0], [1], [0, 0, 1, 1], [], []>} : vector<128x128xbf16>, vector<128x256xbf16>, vector<128x256xf32> -> vector<128x256xf32>
    %c0_14 = arith.constant 0 : index
    %c0_15 = arith.constant 0 : index
    %30 = vector.load %arg7[%c0_14, %c0_15] : memref<1x256xf32, #tpu.memory_space<vmem>>, vector<1x256xf32>
    %31 = vector.broadcast %30 : vector<1x256xf32> to vector<128x256xf32>
    %32 = arith.addf %29, %31 : vector<128x256xf32>
    %33 = vector.extract_strided_slice %32 {offsets = [0, 0], sizes = [128, 128], strides = [1, 1]} : vector<128x256xf32> to vector<128x128xf32>
    %34 = vector.extract_strided_slice %32 {offsets = [0, 128], sizes = [128, 128], strides = [1, 1]} : vector<128x256xf32> to vector<128x128xf32>
    %35 = arith.truncf %26 : vector<128x128xf32> to vector<128x128xbf16>
    %c0_16 = arith.constant 0 : index
    %c0_17 = arith.constant 0 : index
    %36 = vector.load %arg8[%c0_16, %c0_17] : memref<128x128xbf16, #tpu.memory_space<vmem>>, vector<128x128xbf16>
    %cst_18 = arith.constant dense<0.000000e+00> : vector<128x128xf32>
    %37 = tpu.matmul %35, %36, %cst_18 {dimension_numbers = #tpu.dot_dimension_numbers<[1], [0], [0], [1], [0, 0, 1, 1], [], []>} : vector<128x128xbf16>, vector<128x128xbf16>, vector<128x128xf32> -> vector<128x128xf32>
    %c0_19 = arith.constant 0 : index
    %c0_20 = arith.constant 0 : index
    %38 = vector.load %arg9[%c0_19, %c0_20] : memref<1x128xf32, #tpu.memory_space<vmem>>, vector<1x128xf32>
    %39 = vector.broadcast %38 : vector<1x128xf32> to vector<128x128xf32>
    %40 = arith.addf %37, %39 : vector<128x128xf32>
    %41 = arith.subf %34, %40 : vector<128x128xf32>
    %42 = arith.mulf %33, %41 : vector<128x128xf32>
    %43 = arith.truncf %42 : vector<128x128xf32> to vector<128x128xbf16>
    %c0_21 = arith.constant 0 : index
    %c0_22 = arith.constant 0 : index
    %44 = vector.load %arg12[%c0_21, %c0_22] : memref<128x8xbf16, #tpu.memory_space<vmem>>, vector<128x8xbf16>
    %cst_23 = arith.constant dense<0.000000e+00> : vector<128x8xf32>
    %45 = tpu.matmul %43, %44, %cst_23 {dimension_numbers = #tpu.dot_dimension_numbers<[1], [0], [0], [1], [0, 0, 1, 1], [], []>} : vector<128x128xbf16>, vector<128x8xbf16>, vector<128x8xf32> -> vector<128x8xf32>
    %46 = arith.negf %45 : vector<128x8xf32>
    %47 = math.exp %46 : vector<128x8xf32>
    %cst_24 = arith.constant 1.000000e+00 : f32
    %48 = vector.broadcast %cst_24 : f32 to vector<128x8xf32>
    %49 = arith.addf %48, %47 : vector<128x8xf32>
    %50 = arith.divf %48, %49 : vector<128x8xf32>
    %51 = arith.truncf %50 : vector<128x8xf32> to vector<128x8xbf16>
    %c0_25 = arith.constant 0 : index
    %c0_26 = arith.constant 0 : index
    %52 = vector.load %arg13[%c0_25, %c0_26] : memref<8x128xbf16, #tpu.memory_space<vmem>>, vector<8x128xbf16>
    %cst_27 = arith.constant dense<0.000000e+00> : vector<128x128xf32>
    %53 = tpu.matmul %51, %52, %cst_27 {dimension_numbers = #tpu.dot_dimension_numbers<[1], [0], [0], [1], [0, 0, 1, 1], [], []>} : vector<128x8xbf16>, vector<8x128xbf16>, vector<128x128xf32> -> vector<128x128xf32>
    %54 = arith.mulf %53, %41 : vector<128x128xf32>
    %55 = arith.addf %40, %54 : vector<128x128xf32>
    %56 = tpu.concatenate %0, %55 in 1 : vector<128x128xf32>, vector<128x128xf32> -> vector<128x256xf32>
    %57 = arith.truncf %56 : vector<128x256xf32> to vector<128x256xbf16>
    %c0_28 = arith.constant 0 : index
    %c0_29 = arith.constant 0 : index
    %58 = vector.load %arg10[%c0_28, %c0_29] : memref<256x128xbf16, #tpu.memory_space<vmem>>, vector<256x128xbf16>
    %cst_30 = arith.constant dense<0.000000e+00> : vector<128x128xf32>
    %59 = tpu.matmul %57, %58, %cst_30 {dimension_numbers = #tpu.dot_dimension_numbers<[1], [0], [0], [1], [0, 0, 1, 1], [], []>} : vector<128x256xbf16>, vector<256x128xbf16>, vector<128x128xf32> -> vector<128x128xf32>
    %c0_31 = arith.constant 0 : index
    %c0_32 = arith.constant 0 : index
    %60 = vector.load %arg11[%c0_31, %c0_32] : memref<1x128xf32, #tpu.memory_space<vmem>>, vector<1x128xf32>
    %61 = vector.broadcast %60 : vector<1x128xf32> to vector<128x128xf32>
    %62 = arith.addf %59, %61 : vector<128x128xf32>
    %c0_33 = arith.constant 0 : index
    %c0_34 = arith.constant 0 : index
    %63 = vector.load %arg14[%c0_33, %c0_34] : memref<128x128xf32, #tpu.memory_space<vmem>>, vector<128x128xf32>
    tpu.vector_store %arg14[%c0_33, %c0_34], %62 {strides = array<i32>} : memref<128x128xf32, #tpu.memory_space<vmem>>, vector<128x128xf32>,
    %c0_35 = arith.constant 0 : index
    %c0_36 = arith.constant 0 : index
    %64 = vector.load %arg3[%c0_35, %c0_36] : memref<128x1xf32, #tpu.memory_space<vmem>>, vector<128x1xf32>
    %65 = vector.broadcast %64 : vector<128x1xf32> to vector<128x128xf32>
    %66 = arith.mulf %65, %62 : vector<128x128xf32>
    %67 = arith.truncf %66 : vector<128x128xf32> to vector<128x128xbf16>
    %c0_37 = arith.constant 0 : index
    %c0_38 = arith.constant 0 : index
    %68 = vector.load %arg15[%c0_37, %c0_38] : memref<128x128xbf16, #tpu.memory_space<vmem>>, vector<128x128xbf16>
    tpu.vector_store %arg15[%c0_37, %c0_38], %67 {strides = array<i32>} : memref<128x128xbf16, #tpu.memory_space<vmem>>, vector<128x128xbf16>,
    return
  }
  func.func @transform_0(%arg0: i32) -> (i32, i32) {
    %c0_i32 = arith.constant 0 : i32
    %c0_i32_0 = arith.constant 0 : i32
    return %arg0, %c0_i32 : i32, i32
  }
  func.func @transform_1(%arg0: i32) -> (i32, i32) {
    %c0_i32 = arith.constant 0 : i32
    %c0_i32_0 = arith.constant 0 : i32
    return %arg0, %c0_i32 : i32, i32
  }
  func.func @transform_2(%arg0: i32) -> (i32, i32) {
    %c0_i32 = arith.constant 0 : i32
    %c0_i32_0 = arith.constant 0 : i32
    return %arg0, %c0_i32 : i32, i32
  }
  func.func @transform_3(%arg0: i32) -> (i32, i32) {
    %c0_i32 = arith.constant 0 : i32
    %c0_i32_0 = arith.constant 0 : i32
    %c0_i32_1 = arith.constant 0 : i32
    return %c0_i32, %c0_i32_0 : i32, i32
  }
  func.func @transform_4(%arg0: i32) -> (i32, i32) {
    %c0_i32 = arith.constant 0 : i32
    %c0_i32_0 = arith.constant 0 : i32
    %c0_i32_1 = arith.constant 0 : i32
    return %c0_i32, %c0_i32_0 : i32, i32
  }
  func.func @transform_5(%arg0: i32) -> (i32, i32) {
    %c0_i32 = arith.constant 0 : i32
    %c0_i32_0 = arith.constant 0 : i32
    %c0_i32_1 = arith.constant 0 : i32
    return %c0_i32, %c0_i32_0 : i32, i32
  }
  func.func @transform_6(%arg0: i32) -> (i32, i32) {
    %c0_i32 = arith.constant 0 : i32
    %c0_i32_0 = arith.constant 0 : i32
    %c0_i32_1 = arith.constant 0 : i32
    return %c0_i32, %c0_i32_0 : i32, i32
  }
  func.func @transform_7(%arg0: i32) -> (i32, i32) {
    %c0_i32 = arith.constant 0 : i32
    %c0_i32_0 = arith.constant 0 : i32
    %c0_i32_1 = arith.constant 0 : i32
    return %c0_i32, %c0_i32_0 : i32, i32
  }
  func.func @transform_8(%arg0: i32) -> (i32, i32) {
    %c0_i32 = arith.constant 0 : i32
    %c0_i32_0 = arith.constant 0 : i32
    %c0_i32_1 = arith.constant 0 : i32
    return %c0_i32, %c0_i32_0 : i32, i32
  }
  func.func @transform_9(%arg0: i32) -> (i32, i32) {
    %c0_i32 = arith.constant 0 : i32
    %c0_i32_0 = arith.constant 0 : i32
    %c0_i32_1 = arith.constant 0 : i32
    return %c0_i32, %c0_i32_0 : i32, i32
  }
  func.func @transform_10(%arg0: i32) -> (i32, i32) {
    %c0_i32 = arith.constant 0 : i32
    %c0_i32_0 = arith.constant 0 : i32
    %c0_i32_1 = arith.constant 0 : i32
    return %c0_i32, %c0_i32_0 : i32, i32
  }
  func.func @transform_11(%arg0: i32) -> (i32, i32) {
    %c0_i32 = arith.constant 0 : i32
    %c0_i32_0 = arith.constant 0 : i32
    %c0_i32_1 = arith.constant 0 : i32
    return %c0_i32, %c0_i32_0 : i32, i32
  }
  func.func @transform_12(%arg0: i32) -> (i32, i32) {
    %c0_i32 = arith.constant 0 : i32
    %c0_i32_0 = arith.constant 0 : i32
    %c0_i32_1 = arith.constant 0 : i32
    return %c0_i32, %c0_i32_0 : i32, i32
  }
  func.func @transform_13(%arg0: i32) -> (i32, i32) {
    %c0_i32 = arith.constant 0 : i32
    %c0_i32_0 = arith.constant 0 : i32
    return %arg0, %c0_i32 : i32, i32
  }
  func.func @transform_14(%arg0: i32) -> (i32, i32) {
    %c0_i32 = arith.constant 0 : i32
    %c0_i32_0 = arith.constant 0 : i32
    return %arg0, %c0_i32 : i32, i32
  }
}

module attributes {stable_mosaic.version = 11 : i64} {
  func.func @_stage2_kernel(%arg0: i32, %arg1: memref<128x128xf32, #tpu.memory_space<vmem>>, %arg2: memref<128x256xbf16, #tpu.memory_space<vmem>>, %arg3: memref<256x128xbf16, #tpu.memory_space<vmem>>, %arg4: memref<1x128xf32, #tpu.memory_space<vmem>>, %arg5: memref<1x128xf32, #tpu.memory_space<vmem>>, %arg6: memref<128x256xbf16, #tpu.memory_space<vmem>>, %arg7: memref<1x256xf32, #tpu.memory_space<vmem>>, %arg8: memref<128x128xbf16, #tpu.memory_space<vmem>>, %arg9: memref<1x128xf32, #tpu.memory_space<vmem>>, %arg10: memref<128x128xbf16, #tpu.memory_space<vmem>>, %arg11: memref<1x128xf32, #tpu.memory_space<vmem>>, %arg12: memref<128x8xbf16, #tpu.memory_space<vmem>>, %arg13: memref<8x128xbf16, #tpu.memory_space<vmem>>, %arg14: memref<128x128xf32, #tpu.memory_space<vmem>>) attributes {dimension_semantics = [#tpu.dimension_semantics<parallel>], iteration_bounds = array<i64: 2>, scalar_prefetch = 0 : i64, scratch_operands = 0 : i64, tpu.core_type = #tpu.core_type<tc>, window_params = [{transform_indices = @transform_0, window_bounds = array<i64: 128, 128>}, {transform_indices = @transform_1, window_bounds = array<i64: 128, 256>}, {pipeline_mode = #tpu.pipeline_mode<synchronous>, transform_indices = @transform_2, window_bounds = array<i64: 256, 128>}, {pipeline_mode = #tpu.pipeline_mode<synchronous>, transform_indices = @transform_3, window_bounds = array<i64: 1, 128>}, {pipeline_mode = #tpu.pipeline_mode<synchronous>, transform_indices = @transform_4, window_bounds = array<i64: 1, 128>}, {pipeline_mode = #tpu.pipeline_mode<synchronous>, transform_indices = @transform_5, window_bounds = array<i64: 128, 256>}, {pipeline_mode = #tpu.pipeline_mode<synchronous>, transform_indices = @transform_6, window_bounds = array<i64: 1, 256>}, {pipeline_mode = #tpu.pipeline_mode<synchronous>, transform_indices = @transform_7, window_bounds = array<i64: 128, 128>}, {pipeline_mode = #tpu.pipeline_mode<synchronous>, transform_indices = @transform_8, window_bounds = array<i64: 1, 128>}, {pipeline_mode = #tpu.pipeline_mode<synchronous>, transform_indices = @transform_9, window_bounds = array<i64: 128, 128>}, {pipeline_mode = #tpu.pipeline_mode<synchronous>, transform_indices = @transform_10, window_bounds = array<i64: 1, 128>}, {pipeline_mode = #tpu.pipeline_mode<synchronous>, transform_indices = @transform_11, window_bounds = array<i64: 128, 8>}, {pipeline_mode = #tpu.pipeline_mode<synchronous>, transform_indices = @transform_12, window_bounds = array<i64: 8, 128>}, {transform_indices = @transform_13, window_bounds = array<i64: 128, 128>}]} {
    %c0 = arith.constant 0 : index
    %c0_0 = arith.constant 0 : index
    %0 = vector.load %arg1[%c0, %c0_0] : memref<128x128xf32, #tpu.memory_space<vmem>>, vector<128x128xf32>
    %c0_1 = arith.constant 0 : index
    %c0_2 = arith.constant 0 : index
    %1 = vector.load %arg2[%c0_1, %c0_2] : memref<128x256xbf16, #tpu.memory_space<vmem>>, vector<128x256xbf16>
    %2 = arith.extf %1 : vector<128x256xbf16> to vector<128x256xf32>
    %cst = arith.constant dense<0.000000e+00> : vector<128xf32>
    %3 = vector.multi_reduction <add>, %2, %cst [1] : vector<128x256xf32> to vector<128xf32>
    %4 = vector.shape_cast %3 : vector<128xf32> to vector<128x1xf32>
    %cst_3 = arith.constant 9.99999997E-7 : f32
    %5 = vector.broadcast %cst_3 : f32 to vector<128x1xf32>
    %6 = arith.maximumf %4, %5 : vector<128x1xf32>
    %7 = math.rsqrt %6 : vector<128x1xf32>
    %c0_4 = arith.constant 0 : index
    %c0_5 = arith.constant 0 : index
    %8 = vector.load %arg3[%c0_4, %c0_5] : memref<256x128xbf16, #tpu.memory_space<vmem>>, vector<256x128xbf16>
    %cst_6 = arith.constant dense<0.000000e+00> : vector<128x128xf32>
    %9 = tpu.matmul %1, %8, %cst_6 {dimension_numbers = #tpu.dot_dimension_numbers<[1], [0], [0], [1], [0, 0, 1, 1], [], []>} : vector<128x256xbf16>, vector<256x128xbf16>, vector<128x128xf32> -> vector<128x128xf32>
    %10 = vector.broadcast %7 : vector<128x1xf32> to vector<128x128xf32>
    %11 = arith.mulf %10, %9 : vector<128x128xf32>
    %c0_7 = arith.constant 0 : index
    %c0_8 = arith.constant 0 : index
    %12 = vector.load %arg4[%c0_7, %c0_8] : memref<1x128xf32, #tpu.memory_space<vmem>>, vector<1x128xf32>
    %c0_9 = arith.constant 0 : index
    %c0_10 = arith.constant 0 : index
    %13 = vector.load %arg5[%c0_9, %c0_10] : memref<1x128xf32, #tpu.memory_space<vmem>>, vector<1x128xf32>
    %cst_11 = arith.constant dense<0.000000e+00> : vector<128xf32>
    %14 = vector.multi_reduction <add>, %0, %cst_11 [1] : vector<128x128xf32> to vector<128xf32>
    %15 = vector.shape_cast %14 : vector<128xf32> to vector<128x1xf32>
    %cst_12 = arith.constant 1.280000e+02 : f32
    %16 = vector.broadcast %cst_12 : f32 to vector<128x1xf32>
    %17 = arith.divf %15, %16 : vector<128x1xf32>
    %18 = vector.broadcast %17 : vector<128x1xf32> to vector<128x128xf32>
    %19 = arith.subf %0, %18 : vector<128x128xf32>
    %20 = arith.mulf %19, %19 : vector<128x128xf32>
    %cst_13 = arith.constant dense<0.000000e+00> : vector<128xf32>
    %21 = vector.multi_reduction <add>, %20, %cst_13 [1] : vector<128x128xf32> to vector<128xf32>
    %22 = vector.shape_cast %21 : vector<128xf32> to vector<128x1xf32>
    %cst_14 = arith.constant 1.270000e+02 : f32
    %23 = vector.broadcast %cst_14 : f32 to vector<128x1xf32>
    %24 = arith.divf %22, %23 : vector<128x1xf32>
    %25 = math.sqrt %24 : vector<128x1xf32>
    %cst_15 = arith.constant 9.99999997E-7 : f32
    %26 = vector.broadcast %cst_15 : f32 to vector<128x1xf32>
    %27 = arith.addf %25, %26 : vector<128x1xf32>
    %28 = tpu.reciprocal %27 : vector<128x1xf32> -> vector<128x1xf32>
    %29 = vector.broadcast %17 : vector<128x1xf32> to vector<128x128xf32>
    %30 = arith.subf %0, %29 : vector<128x128xf32>
    %31 = vector.broadcast %28 : vector<128x1xf32> to vector<128x128xf32>
    %32 = arith.mulf %30, %31 : vector<128x128xf32>
    %33 = vector.broadcast %12 : vector<1x128xf32> to vector<128x128xf32>
    %34 = arith.mulf %32, %33 : vector<128x128xf32>
    %35 = vector.broadcast %13 : vector<1x128xf32> to vector<128x128xf32>
    %36 = arith.addf %34, %35 : vector<128x128xf32>
    %37 = arith.truncf %36 : vector<128x128xf32> to vector<128x128xbf16>
    %c0_16 = arith.constant 0 : index
    %c0_17 = arith.constant 0 : index
    %38 = vector.load %arg6[%c0_16, %c0_17] : memref<128x256xbf16, #tpu.memory_space<vmem>>, vector<128x256xbf16>
    %cst_18 = arith.constant dense<0.000000e+00> : vector<128x256xf32>
    %39 = tpu.matmul %37, %38, %cst_18 {dimension_numbers = #tpu.dot_dimension_numbers<[1], [0], [0], [1], [0, 0, 1, 1], [], []>} : vector<128x128xbf16>, vector<128x256xbf16>, vector<128x256xf32> -> vector<128x256xf32>
    %c0_19 = arith.constant 0 : index
    %c0_20 = arith.constant 0 : index
    %40 = vector.load %arg7[%c0_19, %c0_20] : memref<1x256xf32, #tpu.memory_space<vmem>>, vector<1x256xf32>
    %41 = vector.broadcast %40 : vector<1x256xf32> to vector<128x256xf32>
    %42 = arith.addf %39, %41 : vector<128x256xf32>
    %43 = vector.extract_strided_slice %42 {offsets = [0, 0], sizes = [128, 128], strides = [1, 1]} : vector<128x256xf32> to vector<128x128xf32>
    %44 = vector.extract_strided_slice %42 {offsets = [0, 128], sizes = [128, 128], strides = [1, 1]} : vector<128x256xf32> to vector<128x128xf32>
    %45 = arith.truncf %11 : vector<128x128xf32> to vector<128x128xbf16>
    %c0_21 = arith.constant 0 : index
    %c0_22 = arith.constant 0 : index
    %46 = vector.load %arg8[%c0_21, %c0_22] : memref<128x128xbf16, #tpu.memory_space<vmem>>, vector<128x128xbf16>
    %cst_23 = arith.constant dense<0.000000e+00> : vector<128x128xf32>
    %47 = tpu.matmul %45, %46, %cst_23 {dimension_numbers = #tpu.dot_dimension_numbers<[1], [0], [0], [1], [0, 0, 1, 1], [], []>} : vector<128x128xbf16>, vector<128x128xbf16>, vector<128x128xf32> -> vector<128x128xf32>
    %c0_24 = arith.constant 0 : index
    %c0_25 = arith.constant 0 : index
    %48 = vector.load %arg9[%c0_24, %c0_25] : memref<1x128xf32, #tpu.memory_space<vmem>>, vector<1x128xf32>
    %49 = vector.broadcast %48 : vector<1x128xf32> to vector<128x128xf32>
    %50 = arith.addf %47, %49 : vector<128x128xf32>
    %51 = arith.subf %44, %50 : vector<128x128xf32>
    %52 = arith.mulf %43, %51 : vector<128x128xf32>
    %53 = arith.truncf %52 : vector<128x128xf32> to vector<128x128xbf16>
    %c0_26 = arith.constant 0 : index
    %c0_27 = arith.constant 0 : index
    %54 = vector.load %arg12[%c0_26, %c0_27] : memref<128x8xbf16, #tpu.memory_space<vmem>>, vector<128x8xbf16>
    %cst_28 = arith.constant dense<0.000000e+00> : vector<128x8xf32>
    %55 = tpu.matmul %53, %54, %cst_28 {dimension_numbers = #tpu.dot_dimension_numbers<[1], [0], [0], [1], [0, 0, 1, 1], [], []>} : vector<128x128xbf16>, vector<128x8xbf16>, vector<128x8xf32> -> vector<128x8xf32>
    %56 = arith.negf %55 : vector<128x8xf32>
    %57 = math.exp %56 : vector<128x8xf32>
    %cst_29 = arith.constant 1.000000e+00 : f32
    %58 = vector.broadcast %cst_29 : f32 to vector<128x8xf32>
    %59 = arith.addf %58, %57 : vector<128x8xf32>
    %60 = arith.divf %58, %59 : vector<128x8xf32>
    %61 = arith.truncf %60 : vector<128x8xf32> to vector<128x8xbf16>
    %c0_30 = arith.constant 0 : index
    %c0_31 = arith.constant 0 : index
    %62 = vector.load %arg13[%c0_30, %c0_31] : memref<8x128xbf16, #tpu.memory_space<vmem>>, vector<8x128xbf16>
    %cst_32 = arith.constant dense<0.000000e+00> : vector<128x128xf32>
    %63 = tpu.matmul %61, %62, %cst_32 {dimension_numbers = #tpu.dot_dimension_numbers<[1], [0], [0], [1], [0, 0, 1, 1], [], []>} : vector<128x8xbf16>, vector<8x128xbf16>, vector<128x128xf32> -> vector<128x128xf32>
    %64 = arith.mulf %63, %51 : vector<128x128xf32>
    %65 = arith.addf %50, %64 : vector<128x128xf32>
    %66 = arith.truncf %65 : vector<128x128xf32> to vector<128x128xbf16>
    %c0_33 = arith.constant 0 : index
    %c0_34 = arith.constant 0 : index
    %67 = vector.load %arg10[%c0_33, %c0_34] : memref<128x128xbf16, #tpu.memory_space<vmem>>, vector<128x128xbf16>
    %cst_35 = arith.constant dense<0.000000e+00> : vector<128x128xf32>
    %68 = tpu.matmul %66, %67, %cst_35 {dimension_numbers = #tpu.dot_dimension_numbers<[1], [0], [0], [1], [0, 0, 1, 1], [], []>} : vector<128x128xbf16>, vector<128x128xbf16>, vector<128x128xf32> -> vector<128x128xf32>
    %69 = arith.addf %0, %68 : vector<128x128xf32>
    %c0_36 = arith.constant 0 : index
    %c0_37 = arith.constant 0 : index
    %70 = vector.load %arg11[%c0_36, %c0_37] : memref<1x128xf32, #tpu.memory_space<vmem>>, vector<1x128xf32>
    %71 = vector.broadcast %70 : vector<1x128xf32> to vector<128x128xf32>
    %72 = arith.addf %69, %71 : vector<128x128xf32>
    %c0_38 = arith.constant 0 : index
    %c0_39 = arith.constant 0 : index
    %73 = vector.load %arg14[%c0_38, %c0_39] : memref<128x128xf32, #tpu.memory_space<vmem>>, vector<128x128xf32>
    tpu.vector_store %arg14[%c0_38, %c0_39], %72 {strides = array<i32>} : memref<128x128xf32, #tpu.memory_space<vmem>>, vector<128x128xf32>,
    return
  }
  func.func @transform_0(%arg0: i32) -> (i32, i32) {
    %c0_i32 = arith.constant 0 : i32
    %c0_i32_0 = arith.constant 0 : i32
    return %arg0, %c0_i32 : i32, i32
  }
  func.func @transform_1(%arg0: i32) -> (i32, i32) {
    %c0_i32 = arith.constant 0 : i32
    %c0_i32_0 = arith.constant 0 : i32
    return %arg0, %c0_i32 : i32, i32
  }
  func.func @transform_2(%arg0: i32) -> (i32, i32) {
    %c0_i32 = arith.constant 0 : i32
    %c0_i32_0 = arith.constant 0 : i32
    %c0_i32_1 = arith.constant 0 : i32
    return %c0_i32, %c0_i32_0 : i32, i32
  }
  func.func @transform_3(%arg0: i32) -> (i32, i32) {
    %c0_i32 = arith.constant 0 : i32
    %c0_i32_0 = arith.constant 0 : i32
    %c0_i32_1 = arith.constant 0 : i32
    return %c0_i32, %c0_i32_0 : i32, i32
  }
  func.func @transform_4(%arg0: i32) -> (i32, i32) {
    %c0_i32 = arith.constant 0 : i32
    %c0_i32_0 = arith.constant 0 : i32
    %c0_i32_1 = arith.constant 0 : i32
    return %c0_i32, %c0_i32_0 : i32, i32
  }
  func.func @transform_5(%arg0: i32) -> (i32, i32) {
    %c0_i32 = arith.constant 0 : i32
    %c0_i32_0 = arith.constant 0 : i32
    %c0_i32_1 = arith.constant 0 : i32
    return %c0_i32, %c0_i32_0 : i32, i32
  }
  func.func @transform_6(%arg0: i32) -> (i32, i32) {
    %c0_i32 = arith.constant 0 : i32
    %c0_i32_0 = arith.constant 0 : i32
    %c0_i32_1 = arith.constant 0 : i32
    return %c0_i32, %c0_i32_0 : i32, i32
  }
  func.func @transform_7(%arg0: i32) -> (i32, i32) {
    %c0_i32 = arith.constant 0 : i32
    %c0_i32_0 = arith.constant 0 : i32
    %c0_i32_1 = arith.constant 0 : i32
    return %c0_i32, %c0_i32_0 : i32, i32
  }
  func.func @transform_8(%arg0: i32) -> (i32, i32) {
    %c0_i32 = arith.constant 0 : i32
    %c0_i32_0 = arith.constant 0 : i32
    %c0_i32_1 = arith.constant 0 : i32
    return %c0_i32, %c0_i32_0 : i32, i32
  }
  func.func @transform_9(%arg0: i32) -> (i32, i32) {
    %c0_i32 = arith.constant 0 : i32
    %c0_i32_0 = arith.constant 0 : i32
    %c0_i32_1 = arith.constant 0 : i32
    return %c0_i32, %c0_i32_0 : i32, i32
  }
  func.func @transform_10(%arg0: i32) -> (i32, i32) {
    %c0_i32 = arith.constant 0 : i32
    %c0_i32_0 = arith.constant 0 : i32
    %c0_i32_1 = arith.constant 0 : i32
    return %c0_i32, %c0_i32_0 : i32, i32
  }
  func.func @transform_11(%arg0: i32) -> (i32, i32) {
    %c0_i32 = arith.constant 0 : i32
    %c0_i32_0 = arith.constant 0 : i32
    %c0_i32_1 = arith.constant 0 : i32
    return %c0_i32, %c0_i32_0 : i32, i32
  }
  func.func @transform_12(%arg0: i32) -> (i32, i32) {
    %c0_i32 = arith.constant 0 : i32
    %c0_i32_0 = arith.constant 0 : i32
    %c0_i32_1 = arith.constant 0 : i32
    return %c0_i32, %c0_i32_0 : i32, i32
  }
  func.func @transform_13(%arg0: i32) -> (i32, i32) {
    %c0_i32 = arith.constant 0 : i32
    %c0_i32_0 = arith.constant 0 : i32
    return %arg0, %c0_i32 : i32, i32
  }
}

</mosaic_0001>

<llo_original>
// kernel: gcnnm_forward.2
$region0: #{gcnnm_forward.2}
  #allocation0 [shape = 'u32[]', space=smem, size = 0x4, offset = 0x4, fixed_abs, tag = 'smem constant byte address 0x4 - core index']
  #allocation1 [shape = 'u32[144,128]{1,0:T(1,128)}', space=vmem, size = 0x12000, scoped, tag = 'internal scratch']
  %s0 = inlined_call_operand.vmem [shape: f32[256,128], index: 0, kind: input, shape index: {}]
  %s1 = inlined_call_operand.vmem [shape: f32[256,128], index: 1, kind: input, shape index: {}]
  %s2 = inlined_call_operand.vmem [shape: f32[256,1], index: 2, kind: input, shape index: {}]
  %s3 = inlined_call_operand.vmem [shape: f32[1,128], index: 3, kind: input, shape index: {}]
  %s4 = inlined_call_operand.vmem [shape: f32[1,128], index: 4, kind: input, shape index: {}]
  %s5 = inlined_call_operand.vmem [shape: bf16[128,256], index: 5, kind: input, shape index: {}]
  %s6 = inlined_call_operand.vmem [shape: f32[1,256], index: 6, kind: input, shape index: {}]
  %s7 = inlined_call_operand.vmem [shape: bf16[128,128], index: 7, kind: input, shape index: {}]
  %s8 = inlined_call_operand.vmem [shape: f32[1,128], index: 8, kind: input, shape index: {}]
  %s9 = inlined_call_operand.vmem [shape: bf16[256,128], index: 9, kind: input, shape index: {}]
  %s10 = inlined_call_operand.vmem [shape: f32[1,128], index: 10, kind: input, shape index: {}]
  %s11 = inlined_call_operand.vmem [shape: bf16[128,8], index: 11, kind: input, shape index: {}]
  %s12 = inlined_call_operand.vmem [shape: bf16[8,128], index: 12, kind: input, shape index: {}]
  %s13 = inlined_call_operand.vmem [shape: f32[256,128], index: 13, kind: output, shape index: {0}]
  %s14 = inlined_call_operand.vmem [shape: bf16[256,128], index: 14, kind: output, shape index: {1}]
  %15 = xla_tuple %s13, %s14
  %s16 = sld [smem:[#allocation0]]
  $region93: #{gcnnm_forward.2} parent=0
    _
  %s18 = ssub.s32 1, %s16
  %s19 = scalar_select 0, %s18, %s16
  loop: start=0, step=1, limit=4
  $region2: #{gcnnm_forward.2} parent=0 // loop_pre_header
    _
  $region3: #{gcnnm_forward.2} parent=0 // loop_header
    %s21 = sphi 0, %s25
    %p22 = scmp.ge.s32.totalorder %s21, 4
    %s31 = sphi 0, %s33
    %s34 = sphi 0, %s31
    %s35 = sphi 0, %s34
    %s51 = sphi 0, %s35
    %s57 = sphi 0, %s59
    %s60 = sphi 0, %s57
    %s61 = sphi 0, %s60
    %s77 = sphi 0, %s61
    %s83 = sphi 0, %s85
    %s86 = sphi 0, %s83
    %s87 = sphi 0, %s86
    %s103 = sphi 0, %s87
    %s107 = sphi 0, %s107
    %s109 = sphi 0, %s107
    %s110 = sphi 0, %s109
    %s124 = sphi 0, %s110
    %s128 = sphi 0, %s128
    %s130 = sphi 0, %s128
    %s131 = sphi 0, %s130
    %s145 = sphi 0, %s131
    %s149 = sphi 0, %s149
    %s151 = sphi 0, %s149
    %s152 = sphi 0, %s151
    %s166 = sphi 0, %s152
    %s170 = sphi 0, %s170
    %s172 = sphi 0, %s170
    %s173 = sphi 0, %s172
    %s187 = sphi 0, %s173
    %s191 = sphi 0, %s191
    %s193 = sphi 0, %s191
    %s194 = sphi 0, %s193
    %s208 = sphi 0, %s194
    %s212 = sphi 0, %s212
    %s214 = sphi 0, %s212
    %s215 = sphi 0, %s214
    %s229 = sphi 0, %s215
    %s233 = sphi 0, %s233
    %s235 = sphi 0, %s233
    %s236 = sphi 0, %s235
    %s250 = sphi 0, %s236
    %s254 = sphi 0, %s254
    %s256 = sphi 0, %s254
    %s257 = sphi 0, %s256
    %s271 = sphi 0, %s257
    %s275 = sphi 0, %s275
    %s277 = sphi 0, %s275
    %s278 = sphi 0, %s277
    %s292 = sphi 0, %s278
    %s296 = sphi 0, %s296
    %s298 = sphi 0, %s296
    %s299 = sphi 0, %s298
    %s313 = sphi 0, %s299
    %s319 = sphi 0, %s321
    %s322 = sphi 0, %s319
    %s323 = sphi 0, %s322
    %s339 = sphi 0, %s323
    %s345 = sphi 0, %s347
    %s348 = sphi 0, %s345
    %s349 = sphi 0, %s348
    %s365 = sphi 0, %s349
  $region4: #{gcnnm_forward.2} parent=0 // loop_header_branch
    %24 = sbr.rel (%p22) target = $region8
  $region5: #{gcnnm_forward.2} parent=0 // loop_body
    %s26 = ssub.s32 %s21, 1
    %s27 = ssub.s32 %s21, 2
    %s28 = sadd.s32 %s21, 1
    %s29 = ssub.s32 %s21, %s28
    %p30 = scmp.eq.s32.totalorder %s29, 0
    %s32 = sadd.s32 %s31, 1
    %s33 = scalar_select %p30, %s31, %s32
    %p36 = pneg %p30
    %p37 = scmp.eq.s32.totalorder %s21, 1
    %p38 = por %p36, %p37
    %p39 = scmp.ne.s32.totalorder %s31, %s34
    %p40 = scmp.eq.s32.totalorder %s21, 0
    %p41 = por %p39, %p40
    %p42 = scmp.ne.s32.totalorder %s31, %s34
    %p43 = scmp.eq.s32.totalorder %s26, 1
    %p44 = por %p42, %p43
    %p45 = scmp.ne.s32.totalorder %s34, %s35
    %p46 = scmp.eq.s32.totalorder %s26, 0
    %p47 = por %p45, %p46
    %p48 = scmp.ne.s32.totalorder %s34, %s35
    %p49 = scmp.eq.s32.totalorder %s27, 1
    %p50 = por %p48, %p49
    %p52 = scmp.ne.s32.totalorder %s35, %s51
    %p53 = scmp.eq.s32.totalorder %s27, 0
    %p54 = por %p52, %p53
    %s55 = ssub.s32 %s21, %s28
    %p56 = scmp.eq.s32.totalorder %s55, 0
    %s58 = sadd.s32 %s57, 1
    %s59 = scalar_select %p56, %s57, %s58
    %p62 = pneg %p56
    %p63 = scmp.eq.s32.totalorder %s21, 1
    %p64 = por %p62, %p63
    %p65 = scmp.ne.s32.totalorder %s57, %s60
    %p66 = scmp.eq.s32.totalorder %s21, 0
    %p67 = por %p65, %p66
    %p68 = scmp.ne.s32.totalorder %s57, %s60
    %p69 = scmp.eq.s32.totalorder %s26, 1
    %p70 = por %p68, %p69
    %p71 = scmp.ne.s32.totalorder %s60, %s61
    %p72 = scmp.eq.s32.totalorder %s26, 0
    %p73 = por %p71, %p72
    %p74 = scmp.ne.s32.totalorder %s60, %s61
    %p75 = scmp.eq.s32.totalorder %s27, 1
    %p76 = por %p74, %p75
    %p78 = scmp.ne.s32.totalorder %s61, %s77
    %p79 = scmp.eq.s32.totalorder %s27, 0
    %p80 = por %p78, %p79
    %s81 = ssub.s32 %s21, %s28
    %p82 = scmp.eq.s32.totalorder %s81, 0
    %s84 = sadd.s32 %s83, 1
    %s85 = scalar_select %p82, %s83, %s84
    %p88 = pneg %p82
    %p89 = scmp.eq.s32.totalorder %s21, 1
    %p90 = por %p88, %p89
    %p91 = scmp.ne.s32.totalorder %s83, %s86
    %p92 = scmp.eq.s32.totalorder %s21, 0
    %p93 = por %p91, %p92
    %p94 = scmp.ne.s32.totalorder %s83, %s86
    %p95 = scmp.eq.s32.totalorder %s26, 1
    %p96 = por %p94, %p95
    %p97 = scmp.ne.s32.totalorder %s86, %s87
    %p98 = scmp.eq.s32.totalorder %s26, 0
    %p99 = por %p97, %p98
    %p100 = scmp.ne.s32.totalorder %s86, %s87
    %p101 = scmp.eq.s32.totalorder %s27, 1
    %p102 = por %p100, %p101
    %p104 = scmp.ne.s32.totalorder %s87, %s103
    %p105 = scmp.eq.s32.totalorder %s27, 0
    %p106 = por %p104, %p105
    %s108 = sadd.s32 %s107, 1
    %p111 = scmp.eq.s32.totalorder %s21, 1
    %p112 = scmp.ne.s32.totalorder %s107, %s109
    %p113 = scmp.eq.s32.totalorder %s21, 0
    %p114 = por %p112, %p113
    %p115 = scmp.ne.s32.totalorder %s107, %s109
    %p116 = scmp.eq.s32.totalorder %s26, 1
    %p117 = por %p115, %p116
    %p118 = scmp.ne.s32.totalorder %s109, %s110
    %p119 = scmp.eq.s32.totalorder %s26, 0
    %p120 = por %p118, %p119
    %p121 = scmp.ne.s32.totalorder %s109, %s110
    %p122 = scmp.eq.s32.totalorder %s27, 1
    %p123 = por %p121, %p122
    %p125 = scmp.ne.s32.totalorder %s110, %s124
    %p126 = scmp.eq.s32.totalorder %s27, 0
    %p127 = por %p125, %p126
    %s129 = sadd.s32 %s128, 1
    %p132 = scmp.eq.s32.totalorder %s21, 1
    %p133 = scmp.ne.s32.totalorder %s128, %s130
    %p134 = scmp.eq.s32.totalorder %s21, 0
    %p135 = por %p133, %p134
    %p136 = scmp.ne.s32.totalorder %s128, %s130
    %p137 = scmp.eq.s32.totalorder %s26, 1
    %p138 = por %p136, %p137
    %p139 = scmp.ne.s32.totalorder %s130, %s131
    %p140 = scmp.eq.s32.totalorder %s26, 0
    %p141 = por %p139, %p140
    %p142 = scmp.ne.s32.totalorder %s130, %s131
    %p143 = scmp.eq.s32.totalorder %s27, 1
    %p144 = por %p142, %p143
    %p146 = scmp.ne.s32.totalorder %s131, %s145
    %p147 = scmp.eq.s32.totalorder %s27, 0
    %p148 = por %p146, %p147
    %s150 = sadd.s32 %s149, 1
    %p153 = scmp.eq.s32.totalorder %s21, 1
    %p154 = scmp.ne.s32.totalorder %s149, %s151
    %p155 = scmp.eq.s32.totalorder %s21, 0
    %p156 = por %p154, %p155
    %p157 = scmp.ne.s32.totalorder %s149, %s151
    %p158 = scmp.eq.s32.totalorder %s26, 1
    %p159 = por %p157, %p158
    %p160 = scmp.ne.s32.totalorder %s151, %s152
    %p161 = scmp.eq.s32.totalorder %s26, 0
    %p162 = por %p160, %p161
    %p163 = scmp.ne.s32.totalorder %s151, %s152
    %p164 = scmp.eq.s32.totalorder %s27, 1
    %p165 = por %p163, %p164
    %p167 = scmp.ne.s32.totalorder %s152, %s166
    %p168 = scmp.eq.s32.totalorder %s27, 0
    %p169 = por %p167, %p168
    %s171 = sadd.s32 %s170, 1
    %p174 = scmp.eq.s32.totalorder %s21, 1
    %p175 = scmp.ne.s32.totalorder %s170, %s172
    %p176 = scmp.eq.s32.totalorder %s21, 0
    %p177 = por %p175, %p176
    %p178 = scmp.ne.s32.totalorder %s170, %s172
    %p179 = scmp.eq.s32.totalorder %s26, 1
    %p180 = por %p178, %p179
    %p181 = scmp.ne.s32.totalorder %s172, %s173
    %p182 = scmp.eq.s32.totalorder %s26, 0
    %p183 = por %p181, %p182
    %p184 = scmp.ne.s32.totalorder %s172, %s173
    %p185 = scmp.eq.s32.totalorder %s27, 1
    %p186 = por %p184, %p185
    %p188 = scmp.ne.s32.totalorder %s173, %s187
    %p189 = scmp.eq.s32.totalorder %s27, 0
    %p190 = por %p188, %p189
    %s192 = sadd.s32 %s191, 1
    %p195 = scmp.eq.s32.totalorder %s21, 1
    %p196 = scmp.ne.s32.totalorder %s191, %s193
    %p197 = scmp.eq.s32.totalorder %s21, 0
    %p198 = por %p196, %p197
    %p199 = scmp.ne.s32.totalorder %s191, %s193
    %p200 = scmp.eq.s32.totalorder %s26, 1
    %p201 = por %p199, %p200
    %p202 = scmp.ne.s32.totalorder %s193, %s194
    %p203 = scmp.eq.s32.totalorder %s26, 0
    %p204 = por %p202, %p203
    %p205 = scmp.ne.s32.totalorder %s193, %s194
    %p206 = scmp.eq.s32.totalorder %s27, 1
    %p207 = por %p205, %p206
    %p209 = scmp.ne.s32.totalorder %s194, %s208
    %p210 = scmp.eq.s32.totalorder %s27, 0
    %p211 = por %p209, %p210
    %s213 = sadd.s32 %s212, 1
    %p216 = scmp.eq.s32.totalorder %s21, 1
    %p217 = scmp.ne.s32.totalorder %s212, %s214
    %p218 = scmp.eq.s32.totalorder %s21, 0
    %p219 = por %p217, %p218
    %p220 = scmp.ne.s32.totalorder %s212, %s214
    %p221 = scmp.eq.s32.totalorder %s26, 1
    %p222 = por %p220, %p221
    %p223 = scmp.ne.s32.totalorder %s214, %s215
    %p224 = scmp.eq.s32.totalorder %s26, 0
    %p225 = por %p223, %p224
    %p226 = scmp.ne.s32.totalorder %s214, %s215
    %p227 = scmp.eq.s32.totalorder %s27, 1
    %p228 = por %p226, %p227
    %p230 = scmp.ne.s32.totalorder %s215, %s229
    %p231 = scmp.eq.s32.totalorder %s27, 0
    %p232 = por %p230, %p231
    %s234 = sadd.s32 %s233, 1
    %p237 = scmp.eq.s32.totalorder %s21, 1
    %p238 = scmp.ne.s32.totalorder %s233, %s235
    %p239 = scmp.eq.s32.totalorder %s21, 0
    %p240 = por %p238, %p239
    %p241 = scmp.ne.s32.totalorder %s233, %s235
    %p242 = scmp.eq.s32.totalorder %s26, 1
    %p243 = por %p241, %p242
    %p244 = scmp.ne.s32.totalorder %s235, %s236
    %p245 = scmp.eq.s32.totalorder %s26, 0
    %p246 = por %p244, %p245
    %p247 = scmp.ne.s32.totalorder %s235, %s236
    %p248 = scmp.eq.s32.totalorder %s27, 1
    %p249 = por %p247, %p248
    %p251 = scmp.ne.s32.totalorder %s236, %s250
    %p252 = scmp.eq.s32.totalorder %s27, 0
    %p253 = por %p251, %p252
    %s255 = sadd.s32 %s254, 1
    %p258 = scmp.eq.s32.totalorder %s21, 1
    %p259 = scmp.ne.s32.totalorder %s254, %s256
    %p260 = scmp.eq.s32.totalorder %s21, 0
    %p261 = por %p259, %p260
    %p262 = scmp.ne.s32.totalorder %s254, %s256
    %p263 = scmp.eq.s32.totalorder %s26, 1
    %p264 = por %p262, %p263
    %p265 = scmp.ne.s32.totalorder %s256, %s257
    %p266 = scmp.eq.s32.totalorder %s26, 0
    %p267 = por %p265, %p266
    %p268 = scmp.ne.s32.totalorder %s256, %s257
    %p269 = scmp.eq.s32.totalorder %s27, 1
    %p270 = por %p268, %p269
    %p272 = scmp.ne.s32.totalorder %s257, %s271
    %p273 = scmp.eq.s32.totalorder %s27, 0
    %p274 = por %p272, %p273
    %s276 = sadd.s32 %s275, 1
    %p279 = scmp.eq.s32.totalorder %s21, 1
    %p280 = scmp.ne.s32.totalorder %s275, %s277
    %p281 = scmp.eq.s32.totalorder %s21, 0
    %p282 = por %p280, %p281
    %p283 = scmp.ne.s32.totalorder %s275, %s277
    %p284 = scmp.eq.s32.totalorder %s26, 1
    %p285 = por %p283, %p284
    %p286 = scmp.ne.s32.totalorder %s277, %s278
    %p287 = scmp.eq.s32.totalorder %s26, 0
    %p288 = por %p286, %p287
    %p289 = scmp.ne.s32.totalorder %s277, %s278
    %p290 = scmp.eq.s32.totalorder %s27, 1
    %p291 = por %p289, %p290
    %p293 = scmp.ne.s32.totalorder %s278, %s292
    %p294 = scmp.eq.s32.totalorder %s27, 0
    %p295 = por %p293, %p294
    %s297 = sadd.s32 %s296, 1
    %p300 = scmp.eq.s32.totalorder %s21, 1
    %p301 = scmp.ne.s32.totalorder %s296, %s298
    %p302 = scmp.eq.s32.totalorder %s21, 0
    %p303 = por %p301, %p302
    %p304 = scmp.ne.s32.totalorder %s296, %s298
    %p305 = scmp.eq.s32.totalorder %s26, 1
    %p306 = por %p304, %p305
    %p307 = scmp.ne.s32.totalorder %s298, %s299
    %p308 = scmp.eq.s32.totalorder %s26, 0
    %p309 = por %p307, %p308
    %p310 = scmp.ne.s32.totalorder %s298, %s299
    %p311 = scmp.eq.s32.totalorder %s27, 1
    %p312 = por %p310, %p311
    %p314 = scmp.ne.s32.totalorder %s299, %s313
    %p315 = scmp.eq.s32.totalorder %s27, 0
    %p316 = por %p314, %p315
    %s317 = ssub.s32 %s21, %s28
    %p318 = scmp.eq.s32.totalorder %s317, 0
    %s320 = sadd.s32 %s319, 1
    %s321 = scalar_select %p318, %s319, %s320
    %p324 = pneg %p318
    %p325 = scmp.eq.s32.totalorder %s21, 1
    %p326 = por %p324, %p325
    %p327 = scmp.ne.s32.totalorder %s319, %s322
    %p328 = scmp.eq.s32.totalorder %s21, 0
    %p329 = por %p327, %p328
    %p330 = scmp.ne.s32.totalorder %s319, %s322
    %p331 = scmp.eq.s32.totalorder %s26, 1
    %p332 = por %p330, %p331
    %p333 = scmp.ne.s32.totalorder %s322, %s323
    %p334 = scmp.eq.s32.totalorder %s26, 0
    %p335 = por %p333, %p334
    %p336 = scmp.ne.s32.totalorder %s322, %s323
    %p337 = scmp.eq.s32.totalorder %s27, 1
    %p338 = por %p336, %p337
    %p340 = scmp.ne.s32.totalorder %s323, %s339
    %p341 = scmp.eq.s32.totalorder %s27, 0
    %p342 = por %p340, %p341
    %s343 = ssub.s32 %s21, %s28
    %p344 = scmp.eq.s32.totalorder %s343, 0
    %s346 = sadd.s32 %s345, 1
    %s347 = scalar_select %p344, %s345, %s346
    %p350 = pneg %p344
    %p351 = scmp.eq.s32.totalorder %s21, 1
    %p352 = por %p350, %p351
    %p353 = scmp.ne.s32.totalorder %s345, %s348
    %p354 = scmp.eq.s32.totalorder %s21, 0
    %p355 = por %p353, %p354
    %p356 = scmp.ne.s32.totalorder %s345, %s348
    %p357 = scmp.eq.s32.totalorder %s26, 1
    %p358 = por %p356, %p357
    %p359 = scmp.ne.s32.totalorder %s348, %s349
    %p360 = scmp.eq.s32.totalorder %s26, 0
    %p361 = por %p359, %p360
    %p362 = scmp.ne.s32.totalorder %s348, %s349
    %p363 = scmp.eq.s32.totalorder %s27, 1
    %p364 = por %p362, %p363
    %p366 = scmp.ne.s32.totalorder %s349, %s365
    %p367 = scmp.eq.s32.totalorder %s27, 0
    %p368 = por %p366, %p367
    %p369 = scmp.le.s32.totalorder 1, %s21
    %p370 = scmp.lt.s32.totalorder %s21, 3
    %p371 = pnand %p369, %p370
    %p372 = pneg %p371
    // Predicated region
    $region9: #{gcnnm_forward.2} parent=5 // pred_check
      _
    $region10: #{gcnnm_forward.2} parent=5 // pred_check_branch
      %374 = sbr.rel (%p371) target = $region12
    $region11: #{gcnnm_forward.2} parent=5 // pred_region
      %s375 = ssub.s32 %s21, 1
      // Predicated region
      $region13: #{gcnnm_forward.2} parent=11 // pred_check
        %p376 = pneg %p120
      $region14: #{gcnnm_forward.2} parent=11 // pred_check_branch
        %378 = sbr.rel (%p376) target = $region16
      $region15: #{gcnnm_forward.2} parent=11 // pred_region
        _
      $region16: #{gcnnm_forward.2} parent=11 // pred_fallthru
        _
      // Predicated region
      $region17: #{gcnnm_forward.2} parent=11 // pred_check
        %p379 = pneg %p141
      $region18: #{gcnnm_forward.2} parent=11 // pred_check_branch
        %381 = sbr.rel (%p379) target = $region20
      $region19: #{gcnnm_forward.2} parent=11 // pred_region
        _
      $region20: #{gcnnm_forward.2} parent=11 // pred_fallthru
        _
      // Predicated region
      $region21: #{gcnnm_forward.2} parent=11 // pred_check
        %p382 = pneg %p162
      $region22: #{gcnnm_forward.2} parent=11 // pred_check_branch
        %384 = sbr.rel (%p382) target = $region24
      $region23: #{gcnnm_forward.2} parent=11 // pred_region
        _
      $region24: #{gcnnm_forward.2} parent=11 // pred_fallthru
        _
      // Predicated region
      $region25: #{gcnnm_forward.2} parent=11 // pred_check
        %p385 = pneg %p183
      $region26: #{gcnnm_forward.2} parent=11 // pred_check_branch
        %387 = sbr.rel (%p385) target = $region28
      $region27: #{gcnnm_forward.2} parent=11 // pred_region
        _
      $region28: #{gcnnm_forward.2} parent=11 // pred_fallthru
        _
      // Predicated region
      $region29: #{gcnnm_forward.2} parent=11 // pred_check
        %p388 = pneg %p204
      $region30: #{gcnnm_forward.2} parent=11 // pred_check_branch
        %390 = sbr.rel (%p388) target = $region32
      $region31: #{gcnnm_forward.2} parent=11 // pred_region
        _
      $region32: #{gcnnm_forward.2} parent=11 // pred_fallthru
        _
      // Predicated region
      $region33: #{gcnnm_forward.2} parent=11 // pred_check
        %p391 = pneg %p225
      $region34: #{gcnnm_forward.2} parent=11 // pred_check_branch
        %393 = sbr.rel (%p391) target = $region36
      $region35: #{gcnnm_forward.2} parent=11 // pred_region
        _
      $region36: #{gcnnm_forward.2} parent=11 // pred_fallthru
        _
      // Predicated region
      $region37: #{gcnnm_forward.2} parent=11 // pred_check
        %p394 = pneg %p246
      $region38: #{gcnnm_forward.2} parent=11 // pred_check_branch
        %396 = sbr.rel (%p394) target = $region40
      $region39: #{gcnnm_forward.2} parent=11 // pred_region
        _
      $region40: #{gcnnm_forward.2} parent=11 // pred_fallthru
        _
      // Predicated region
      $region41: #{gcnnm_forward.2} parent=11 // pred_check
        %p397 = pneg %p267
      $region42: #{gcnnm_forward.2} parent=11 // pred_check_branch
        %399 = sbr.rel (%p397) target = $region44
      $region43: #{gcnnm_forward.2} parent=11 // pred_region
        _
      $region44: #{gcnnm_forward.2} parent=11 // pred_fallthru
        _
      // Predicated region
      $region45: #{gcnnm_forward.2} parent=11 // pred_check
        %p400 = pneg %p288
      $region46: #{gcnnm_forward.2} parent=11 // pred_check_branch
        %402 = sbr.rel (%p400) target = $region48
      $region47: #{gcnnm_forward.2} parent=11 // pred_region
        _
      $region48: #{gcnnm_forward.2} parent=11 // pred_fallthru
        _
      // Predicated region
      $region49: #{gcnnm_forward.2} parent=11 // pred_check
        %p403 = pneg %p309
      $region50: #{gcnnm_forward.2} parent=11 // pred_check_branch
        %405 = sbr.rel (%p403) target = $region52
      $region51: #{gcnnm_forward.2} parent=11 // pred_region
        _
      $region52: #{gcnnm_forward.2} parent=11 // pred_fallthru
        _
    $region12: #{gcnnm_forward.2} parent=5 // pred_fallthru
      _
    %p406 = scmp.lt.s32.totalorder %s21, 2
    // Predicated region
    $region53: #{gcnnm_forward.2} parent=5 // pred_check
      %p407 = pneg %p406
    $region54: #{gcnnm_forward.2} parent=5 // pred_check_branch
      %409 = sbr.rel (%p407) target = $region56
    $region55: #{gcnnm_forward.2} parent=5 // pred_region
      // Predicated region
      $region57: #{gcnnm_forward.2} parent=55 // pred_check
        %p410 = pneg %p41
      $region58: #{gcnnm_forward.2} parent=55 // pred_check_branch
        %412 = sbr.rel (%p410) target = $region60
      $region59: #{gcnnm_forward.2} parent=55 // pred_region
        %s413 = smul.u32 16, %s21
        %p414 = scmp.lt.s32.totalorder %s413, 31
        %s415 = scalar_select %p414, %s413, 31
        %s416 = smul.addr %s415, 8
        %s417 = scalar_lea.vmem %s0, %s416
        %s418 = smul.u32 16, %s21
      $region60: #{gcnnm_forward.2} parent=55 // pred_fallthru
        _
      // Predicated region
      $region61: #{gcnnm_forward.2} parent=55 // pred_check
        %p419 = pneg %p67
      $region62: #{gcnnm_forward.2} parent=55 // pred_check_branch
        %421 = sbr.rel (%p419) target = $region64
      $region63: #{gcnnm_forward.2} parent=55 // pred_region
        %s422 = smul.u32 16, %s21
        %p423 = scmp.lt.s32.totalorder %s422, 31
        %s424 = scalar_select %p423, %s422, 31
        %s425 = smul.addr %s424, 8
        %s426 = scalar_lea.vmem %s1, %s425
        %s427 = smul.u32 16, %s21
      $region64: #{gcnnm_forward.2} parent=55 // pred_fallthru
        _
      // Predicated region
      $region65: #{gcnnm_forward.2} parent=55 // pred_check
        %p428 = pneg %p93
      $region66: #{gcnnm_forward.2} parent=55 // pred_check_branch
        %430 = sbr.rel (%p428) target = $region68
      $region67: #{gcnnm_forward.2} parent=55 // pred_region
        %s431 = smul.u32 16, %s21
        %p432 = scmp.lt.s32.totalorder %s431, 31
        %s433 = scalar_select %p432, %s431, 31
        %s434 = smul.addr %s433, 8
        %s435 = scalar_lea.vmem %s2, %s434
        %s436 = smul.u32 16, %s21
      $region68: #{gcnnm_forward.2} parent=55 // pred_fallthru
        _
    $region56: #{gcnnm_forward.2} parent=5 // pred_fallthru
      _
    %p437 = scmp.le.s32.totalorder 1, %s21
    %p438 = scmp.lt.s32.totalorder %s21, 3
    %p439 = pnand %p437, %p438
    %p440 = pneg %p439
    // Predicated region
    $region69: #{gcnnm_forward.2} parent=5 // pred_check
      _
    $region70: #{gcnnm_forward.2} parent=5 // pred_check_branch
      %442 = sbr.rel (%p439) target = $region72
    $region71: #{gcnnm_forward.2} parent=5 // pred_region
      %s443 = ssub.s32 %s21, 1
      %s444 = smul.u32 16, %s26
      %p445 = scmp.lt.s32.totalorder %s444, 31
      %s446 = scalar_select %p445, %s444, 31
      %s447 = smul.addr %s446, 8
      %s448 = scalar_lea.vmem %s0, %s447
      %p449 = pneg %p47
      %p450 = pneg %p44
      %s451 = smul.u32 16, %s26
      %p452 = scmp.lt.s32.totalorder %s451, 31
      %s453 = scalar_select %p452, %s451, 31
      %s454 = smul.addr %s453, 8
      %s455 = scalar_lea.vmem %s1, %s454
      %p456 = pneg %p73
      %p457 = pneg %p70
      %s458 = smul.u32 16, %s26
      %p459 = scmp.lt.s32.totalorder %s458, 31
      %s460 = scalar_select %p459, %s458, 31
      %s461 = smul.addr %s460, 8
      %s462 = scalar_lea.vmem %s2, %s461
      %p463 = pneg %p99
      %p464 = pneg %p96
      %p465 = pneg %p120
      %p466 = pneg %p117
      %p467 = pneg %p141
      %p468 = pneg %p138
      %p469 = pneg %p162
      %p470 = pneg %p159
      %p471 = pneg %p183
      %p472 = pneg %p180
      %p473 = pneg %p204
      %p474 = pneg %p201
      %p475 = pneg %p225
      %p476 = pneg %p222
      %p477 = pneg %p246
      %p478 = pneg %p243
      %p479 = pneg %p267
      %p480 = pneg %p264
      %p481 = pneg %p288
      %p482 = pneg %p285
      %p483 = pneg %p309
      %p484 = pneg %p306
      %p485 = pneg %p335
      %p486 = pneg %p332
      %s487 = smul.u32 16, %s26
      %p488 = scmp.lt.s32.totalorder %s487, 31
      %s489 = scalar_select %p488, %s487, 31
      %s490 = smul.addr %s489, 8
      %s491 = scalar_lea.vmem %s13, %s490
      %p492 = pneg %p361
      %p493 = pneg %p358
      %s494 = smul.u32 16, %s26
      %p495 = scmp.lt.s32.totalorder %s494, 31
      %s496 = scalar_select %p495, %s494, 31
      %s497 = smul.addr %s496, 4
      %s498 = scalar_lea.vmem %s14, %s497
      %s499 = smul.u32 16, %s26
      %p500 = scmp.lt.s32.totalorder %s499, 31
      %s501 = scalar_select %p500, %s499, 31
      %s502 = smul.addr %s501, 8
      %s503 = scalar_lea.vmem %s0, %s502
      %s504 = smul.u32 16, %s26
      %s505 = smul.u32 16, %s26
      %p506 = scmp.lt.s32.totalorder %s505, 31
      %s507 = scalar_select %p506, %s505, 31
      %s508 = smul.addr %s507, 8
      %s509 = scalar_lea.vmem %s1, %s508
      %s510 = smul.u32 16, %s26
      %s511 = smul.u32 16, %s26
      %p512 = scmp.lt.s32.totalorder %s511, 31
      %s513 = scalar_select %p512, %s511, 31
      %s514 = smul.addr %s513, 8
      %s515 = scalar_lea.vmem %s2, %s514
      %s516 = smul.u32 16, %s26
      %s517 = smul.u32 16, %s26
      %p518 = scmp.lt.s32.totalorder %s517, 31
      %s519 = scalar_select %p518, %s517, 31
      %s520 = smul.addr %s519, 8
      %s521 = scalar_lea.vmem %s13, %s520
      %s522 = smul.u32 16, %s26
      %s523 = smul.u32 16, %s26
      %p524 = scmp.lt.s32.totalorder %s523, 31
      %s525 = scalar_select %p524, %s523, 31
      %s526 = smul.addr %s525, 4
      %s527 = scalar_lea.vmem %s14, %s526
      %s528 = smul.u32 16, %s26
      %v530 = vld [vmem:[%s503] sm:$0xff]
      %v531 = vld [vmem:[%s503 + $0x8] sm:$0xff]
      %v532 = vld [vmem:[%s503 + $0x10] sm:$0xff]
      %v533 = vld [vmem:[%s503 + $0x18] sm:$0xff]
      %v534 = vld [vmem:[%s503 + $0x20] sm:$0xff]
      %v535 = vld [vmem:[%s503 + $0x28] sm:$0xff]
      %v536 = vld [vmem:[%s503 + $0x30] sm:$0xff]
      %v537 = vld [vmem:[%s503 + $0x38] sm:$0xff]
      %v538 = vld [vmem:[%s503 + $0x40] sm:$0xff]
      %v539 = vld [vmem:[%s503 + $0x48] sm:$0xff]
      %v540 = vld [vmem:[%s503 + $0x50] sm:$0xff]
      %v541 = vld [vmem:[%s503 + $0x58] sm:$0xff]
      %v542 = vld [vmem:[%s503 + $0x60] sm:$0xff]
      %v543 = vld [vmem:[%s503 + $0x68] sm:$0xff]
      %v544 = vld [vmem:[%s503 + $0x70] sm:$0xff]
      %v545 = vld [vmem:[%s503 + $0x78] sm:$0xff]
      %v546 = vld [vmem:[%s3] sm:$0x1]
      %v547 = vld [vmem:[%s4] sm:$0x1]
      %548 = vadd.xlane.f32.xlu0 %v530
      %v549 = vpop.xlane.xlu0 %548
      %550 = vadd.xlane.f32.xlu0 %v531
      %v551 = vpop.xlane.xlu0 %550
      %552 = vadd.xlane.f32.xlu0 %v532
      %v553 = vpop.xlane.xlu0 %552
      %554 = vadd.xlane.f32.xlu0 %v533
      %v555 = vpop.xlane.xlu0 %554
      %556 = vadd.xlane.f32.xlu0 %v534
      %v557 = vpop.xlane.xlu0 %556
      %558 = vadd.xlane.f32.xlu0 %v535
      %v559 = vpop.xlane.xlu0 %558
      %560 = vadd.xlane.f32.xlu0 %v536
      %v561 = vpop.xlane.xlu0 %560
      %562 = vadd.xlane.f32.xlu0 %v537
      %v563 = vpop.xlane.xlu0 %562
      %564 = vadd.xlane.f32.xlu0 %v538
      %v565 = vpop.xlane.xlu0 %564
      %566 = vadd.xlane.f32.xlu0 %v539
      %v567 = vpop.xlane.xlu0 %566
      %568 = vadd.xlane.f32.xlu0 %v540
      %v569 = vpop.xlane.xlu0 %568
      %570 = vadd.xlane.f32.xlu0 %v541
      %v571 = vpop.xlane.xlu0 %570
      %572 = vadd.xlane.f32.xlu0 %v542
      %v573 = vpop.xlane.xlu0 %572
      %574 = vadd.xlane.f32.xlu0 %v543
      %v575 = vpop.xlane.xlu0 %574
      %576 = vadd.xlane.f32.xlu0 %v544
      %v577 = vpop.xlane.xlu0 %576
      %578 = vadd.xlane.f32.xlu0 %v545
      %v579 = vpop.xlane.xlu0 %578
      %v580 = vrcp.pop 128.0
      %v581 = vmul.f32 %v549, %v580
      %v582 = vmul.f32 %v551, %v580
      %v583 = vmul.f32 %v553, %v580
      %v584 = vmul.f32 %v555, %v580
      %v585 = vmul.f32 %v557, %v580
      %v586 = vmul.f32 %v559, %v580
      %v587 = vmul.f32 %v561, %v580
      %v588 = vmul.f32 %v563, %v580
      %v589 = vmul.f32 %v565, %v580
      %v590 = vmul.f32 %v567, %v580
      %v591 = vmul.f32 %v569, %v580
      %v592 = vmul.f32 %v571, %v580
      %v593 = vmul.f32 %v573, %v580
      %v594 = vmul.f32 %v575, %v580
      %v595 = vmul.f32 %v577, %v580
      %v596 = vmul.f32 %v579, %v580
      %v597 = vsub.f32 %v530, %v581
      %v598 = vsub.f32 %v531, %v582
      %v599 = vsub.f32 %v532, %v583
      %v600 = vsub.f32 %v533, %v584
      %v601 = vsub.f32 %v534, %v585
      %v602 = vsub.f32 %v535, %v586
      %v603 = vsub.f32 %v536, %v587
      %v604 = vsub.f32 %v537, %v588
      %v605 = vsub.f32 %v538, %v589
      %v606 = vsub.f32 %v539, %v590
      %v607 = vsub.f32 %v540, %v591
      %v608 = vsub.f32 %v541, %v592
      %v609 = vsub.f32 %v542, %v593
      %v610 = vsub.f32 %v543, %v594
      %v611 = vsub.f32 %v544, %v595
      %v612 = vsub.f32 %v545, %v596
      %v613 = vmul.f32 %v597, %v597
      %v614 = vmul.f32 %v598, %v598
      %v615 = vmul.f32 %v599, %v599
      %v616 = vmul.f32 %v600, %v600
      %v617 = vmul.f32 %v601, %v601
      %v618 = vmul.f32 %v602, %v602
      %v619 = vmul.f32 %v603, %v603
      %v620 = vmul.f32 %v604, %v604
      %v621 = vmul.f32 %v605, %v605
      %v622 = vmul.f32 %v606, %v606
      %v623 = vmul.f32 %v607, %v607
      %v624 = vmul.f32 %v608, %v608
      %v625 = vmul.f32 %v609, %v609
      %v626 = vmul.f32 %v610, %v610
      %v627 = vmul.f32 %v611, %v611
      %v628 = vmul.f32 %v612, %v612
      %629 = vadd.xlane.f32.xlu0 %v613
      %v630 = vpop.xlane.xlu0 %629
      %631 = vadd.xlane.f32.xlu0 %v614
      %v632 = vpop.xlane.xlu0 %631
      %633 = vadd.xlane.f32.xlu0 %v615
      %v634 = vpop.xlane.xlu0 %633
      %635 = vadd.xlane.f32.xlu0 %v616
      %v636 = vpop.xlane.xlu0 %635
      %637 = vadd.xlane.f32.xlu0 %v617
      %v638 = vpop.xlane.xlu0 %637
      %639 = vadd.xlane.f32.xlu0 %v618
      %v640 = vpop.xlane.xlu0 %639
      %641 = vadd.xlane.f32.xlu0 %v619
      %v642 = vpop.xlane.xlu0 %641
      %643 = vadd.xlane.f32.xlu0 %v620
      %v644 = vpop.xlane.xlu0 %643
      %645 = vadd.xlane.f32.xlu0 %v621
      %v646 = vpop.xlane.xlu0 %645
      %647 = vadd.xlane.f32.xlu0 %v622
      %v648 = vpop.xlane.xlu0 %647
      %649 = vadd.xlane.f32.xlu0 %v623
      %v650 = vpop.xlane.xlu0 %649
      %651 = vadd.xlane.f32.xlu0 %v624
      %v652 = vpop.xlane.xlu0 %651
      %653 = vadd.xlane.f32.xlu0 %v625
      %v654 = vpop.xlane.xlu0 %653
      %655 = vadd.xlane.f32.xlu0 %v626
      %v656 = vpop.xlane.xlu0 %655
      %657 = vadd.xlane.f32.xlu0 %v627
      %v658 = vpop.xlane.xlu0 %657
      %659 = vadd.xlane.f32.xlu0 %v628
      %v660 = vpop.xlane.xlu0 %659
      %v661 = vrcp.pop 127.0
      %v662 = vmul.f32 %v630, %v661
      %v663 = vmul.f32 %v632, %v661
      %v664 = vmul.f32 %v634, %v661
      %v665 = vmul.f32 %v636, %v661
      %v666 = vmul.f32 %v638, %v661
      %v667 = vmul.f32 %v640, %v661
      %v668 = vmul.f32 %v642, %v661
      %v669 = vmul.f32 %v644, %v661
      %v670 = vmul.f32 %v646, %v661
      %v671 = vmul.f32 %v648, %v661
      %v672 = vmul.f32 %v650, %v661
      %v673 = vmul.f32 %v652, %v661
      %v674 = vmul.f32 %v654, %v661
      %v675 = vmul.f32 %v656, %v661
      %v676 = vmul.f32 %v658, %v661
      %v677 = vmul.f32 %v660, %v661
      %v678 = vrsqrt.pop %v662
      %v679 = vmul.f32 %v662, %v678
      %vm680 = vcmp.eq.f32.partialorder %v662, inf
      %v681 = vsel %vm680, %v662, %v679
      %vm682 = vcmp.eq.f32.partialorder %v662, 0.0
      %v683 = vand.u32 %v662, 2147483648
      %v684 = vsel %vm682, %v683, %v681
      %v685 = vrsqrt.pop %v663
      %v686 = vmul.f32 %v663, %v685
      %vm687 = vcmp.eq.f32.partialorder %v663, inf
      %v688 = vsel %vm687, %v663, %v686
      %vm689 = vcmp.eq.f32.partialorder %v663, 0.0
      %v690 = vand.u32 %v663, 2147483648
      %v691 = vsel %vm689, %v690, %v688
      %v692 = vrsqrt.pop %v664
      %v693 = vmul.f32 %v664, %v692
      %vm694 = vcmp.eq.f32.partialorder %v664, inf
      %v695 = vsel %vm694, %v664, %v693
      %vm696 = vcmp.eq.f32.partialorder %v664, 0.0
      %v697 = vand.u32 %v664, 2147483648
      %v698 = vsel %vm696, %v697, %v695
      %v699 = vrsqrt.pop %v665
      %v700 = vmul.f32 %v665, %v699
      %vm701 = vcmp.eq.f32.partialorder %v665, inf
      %v702 = vsel %vm701, %v665, %v700
      %vm703 = vcmp.eq.f32.partialorder %v665, 0.0
      %v704 = vand.u32 %v665, 2147483648
      %v705 = vsel %vm703, %v704, %v702
      %v706 = vrsqrt.pop %v666
      %v707 = vmul.f32 %v666, %v706
      %vm708 = vcmp.eq.f32.partialorder %v666, inf
      %v709 = vsel %vm708, %v666, %v707
      %vm710 = vcmp.eq.f32.partialorder %v666, 0.0
      %v711 = vand.u32 %v666, 2147483648
      %v712 = vsel %vm710, %v711, %v709
      %v713 = vrsqrt.pop %v667
      %v714 = vmul.f32 %v667, %v713
      %vm715 = vcmp.eq.f32.partialorder %v667, inf
      %v716 = vsel %vm715, %v667, %v714
      %vm717 = vcmp.eq.f32.partialorder %v667, 0.0
      %v718 = vand.u32 %v667, 2147483648
      %v719 = vsel %vm717, %v718, %v716
      %v720 = vrsqrt.pop %v668
      %v721 = vmul.f32 %v668, %v720
      %vm722 = vcmp.eq.f32.partialorder %v668, inf
      %v723 = vsel %vm722, %v668, %v721
      %vm724 = vcmp.eq.f32.partialorder %v668, 0.0
      %v725 = vand.u32 %v668, 2147483648
      %v726 = vsel %vm724, %v725, %v723
      %v727 = vrsqrt.pop %v669
      %v728 = vmul.f32 %v669, %v727
      %vm729 = vcmp.eq.f32.partialorder %v669, inf
      %v730 = vsel %vm729, %v669, %v728
      %vm731 = vcmp.eq.f32.partialorder %v669, 0.0
      %v732 = vand.u32 %v669, 2147483648
      %v733 = vsel %vm731, %v732, %v730
      %v734 = vrsqrt.pop %v670
      %v735 = vmul.f32 %v670, %v734
      %vm736 = vcmp.eq.f32.partialorder %v670, inf
      %v737 = vsel %vm736, %v670, %v735
      %vm738 = vcmp.eq.f32.partialorder %v670, 0.0
      %v739 = vand.u32 %v670, 2147483648
      %v740 = vsel %vm738, %v739, %v737
      %v741 = vrsqrt.pop %v671
      %v742 = vmul.f32 %v671, %v741
      %vm743 = vcmp.eq.f32.partialorder %v671, inf
      %v744 = vsel %vm743, %v671, %v742
      %vm745 = vcmp.eq.f32.partialorder %v671, 0.0
      %v746 = vand.u32 %v671, 2147483648
      %v747 = vsel %vm745, %v746, %v744
      %v748 = vrsqrt.pop %v672
      %v749 = vmul.f32 %v672, %v748
      %vm750 = vcmp.eq.f32.partialorder %v672, inf
      %v751 = vsel %vm750, %v672, %v749
      %vm752 = vcmp.eq.f32.partialorder %v672, 0.0
      %v753 = vand.u32 %v672, 2147483648
      %v754 = vsel %vm752, %v753, %v751
      %v755 = vrsqrt.pop %v673
      %v756 = vmul.f32 %v673, %v755
      %vm757 = vcmp.eq.f32.partialorder %v673, inf
      %v758 = vsel %vm757, %v673, %v756
      %vm759 = vcmp.eq.f32.partialorder %v673, 0.0
      %v760 = vand.u32 %v673, 2147483648
      %v761 = vsel %vm759, %v760, %v758
      %v762 = vrsqrt.pop %v674
      %v763 = vmul.f32 %v674, %v762
      %vm764 = vcmp.eq.f32.partialorder %v674, inf
      %v765 = vsel %vm764, %v674, %v763
      %vm766 = vcmp.eq.f32.partialorder %v674, 0.0
      %v767 = vand.u32 %v674, 2147483648
      %v768 = vsel %vm766, %v767, %v765
      %v769 = vrsqrt.pop %v675
      %v770 = vmul.f32 %v675, %v769
      %vm771 = vcmp.eq.f32.partialorder %v675, inf
      %v772 = vsel %vm771, %v675, %v770
      %vm773 = vcmp.eq.f32.partialorder %v675, 0.0
      %v774 = vand.u32 %v675, 2147483648
      %v775 = vsel %vm773, %v774, %v772
      %v776 = vrsqrt.pop %v676
      %v777 = vmul.f32 %v676, %v776
      %vm778 = vcmp.eq.f32.partialorder %v676, inf
      %v779 = vsel %vm778, %v676, %v777
      %vm780 = vcmp.eq.f32.partialorder %v676, 0.0
      %v781 = vand.u32 %v676, 2147483648
      %v782 = vsel %vm780, %v781, %v779
      %v783 = vrsqrt.pop %v677
      %v784 = vmul.f32 %v677, %v783
      %vm785 = vcmp.eq.f32.partialorder %v677, inf
      %v786 = vsel %vm785, %v677, %v784
      %vm787 = vcmp.eq.f32.partialorder %v677, 0.0
      %v788 = vand.u32 %v677, 2147483648
      %v789 = vsel %vm787, %v788, %v786
      %v790 = vadd.f32 %v684, 1e-06
      %v791 = vadd.f32 %v691, 1e-06
      %v792 = vadd.f32 %v698, 1e-06
      %v793 = vadd.f32 %v705, 1e-06
      %v794 = vadd.f32 %v712, 1e-06
      %v795 = vadd.f32 %v719, 1e-06
      %v796 = vadd.f32 %v726, 1e-06
      %v797 = vadd.f32 %v733, 1e-06
      %v798 = vadd.f32 %v740, 1e-06
      %v799 = vadd.f32 %v747, 1e-06
      %v800 = vadd.f32 %v754, 1e-06
      %v801 = vadd.f32 %v761, 1e-06
      %v802 = vadd.f32 %v768, 1e-06
      %v803 = vadd.f32 %v775, 1e-06
      %v804 = vadd.f32 %v782, 1e-06
      %v805 = vadd.f32 %v789, 1e-06
      %v806 = vrcp.pop %v790
      %v807 = vrcp.pop %v791
      %v808 = vrcp.pop %v792
      %v809 = vrcp.pop %v793
      %v810 = vrcp.pop %v794
      %v811 = vrcp.pop %v795
      %v812 = vrcp.pop %v796
      %v813 = vrcp.pop %v797
      %v814 = vrcp.pop %v798
      %v815 = vrcp.pop %v799
      %v816 = vrcp.pop %v800
      %v817 = vrcp.pop %v801
      %v818 = vrcp.pop %v802
      %v819 = vrcp.pop %v803
      %v820 = vrcp.pop %v804
      %v821 = vrcp.pop %v805
      %v822 = vmul.f32 %v597, %v806
      %v823 = vmul.f32 %v598, %v807
      %v824 = vmul.f32 %v599, %v808
      %v825 = vmul.f32 %v600, %v809
      %v826 = vmul.f32 %v601, %v810
      %v827 = vmul.f32 %v602, %v811
      %v828 = vmul.f32 %v603, %v812
      %v829 = vmul.f32 %v604, %v813
      %v830 = vmul.f32 %v605, %v814
      %v831 = vmul.f32 %v606, %v815
      %v832 = vmul.f32 %v607, %v816
      %v833 = vmul.f32 %v608, %v817
      %v834 = vmul.f32 %v609, %v818
      %v835 = vmul.f32 %v610, %v819
      %v836 = vmul.f32 %v611, %v820
      %v837 = vmul.f32 %v612, %v821
      %v839 = vlaneseq
      %v840 = vshrl.u32 %v839, 7
      %v841 = vsub.s32 0, %v840
      %v842 = vrot.slane %v546, %v841
      %v844 = vmul.f32 %v822, %v842
      %v845 = vmul.f32 %v823, %v842
      %v846 = vmul.f32 %v824, %v842
      %v847 = vmul.f32 %v825, %v842
      %v848 = vmul.f32 %v826, %v842
      %v849 = vmul.f32 %v827, %v842
      %v850 = vmul.f32 %v828, %v842
      %v851 = vmul.f32 %v829, %v842
      %v852 = vmul.f32 %v830, %v842
      %v853 = vmul.f32 %v831, %v842
      %v854 = vmul.f32 %v832, %v842
      %v855 = vmul.f32 %v833, %v842
      %v856 = vmul.f32 %v834, %v842
      %v857 = vmul.f32 %v835, %v842
      %v858 = vmul.f32 %v836, %v842
      %v859 = vmul.f32 %v837, %v842
      %v861 = vlaneseq
      %v862 = vshrl.u32 %v861, 7
      %v863 = vsub.s32 0, %v862
      %v864 = vrot.slane %v547, %v863
      %v866 = vadd.f32 %v844, %v864
      %v867 = vadd.f32 %v845, %v864
      %v868 = vadd.f32 %v846, %v864
      %v869 = vadd.f32 %v847, %v864
      %v870 = vadd.f32 %v848, %v864
      %v871 = vadd.f32 %v849, %v864
      %v872 = vadd.f32 %v850, %v864
      %v873 = vadd.f32 %v851, %v864
      %v874 = vadd.f32 %v852, %v864
      %v875 = vadd.f32 %v853, %v864
      %v876 = vadd.f32 %v854, %v864
      %v877 = vadd.f32 %v855, %v864
      %v878 = vadd.f32 %v856, %v864
      %v879 = vadd.f32 %v857, %v864
      %v880 = vadd.f32 %v858, %v864
      %v881 = vadd.f32 %v859, %v864
      %v882 = vld [vmem:[%s509] sm:$0xff]
      %v883 = vld [vmem:[%s509 + $0x8] sm:$0xff]
      %v884 = vld [vmem:[%s509 + $0x10] sm:$0xff]
      %v885 = vld [vmem:[%s509 + $0x18] sm:$0xff]
      %v886 = vld [vmem:[%s509 + $0x20] sm:$0xff]
      %v887 = vld [vmem:[%s509 + $0x28] sm:$0xff]
      %v888 = vld [vmem:[%s509 + $0x30] sm:$0xff]
      %v889 = vld [vmem:[%s509 + $0x38] sm:$0xff]
      %v890 = vld [vmem:[%s509 + $0x40] sm:$0xff]
      %v891 = vld [vmem:[%s509 + $0x48] sm:$0xff]
      %v892 = vld [vmem:[%s509 + $0x50] sm:$0xff]
      %v893 = vld [vmem:[%s509 + $0x58] sm:$0xff]
      %v894 = vld [vmem:[%s509 + $0x60] sm:$0xff]
      %v895 = vld [vmem:[%s509 + $0x68] sm:$0xff]
      %v896 = vld [vmem:[%s509 + $0x70] sm:$0xff]
      %v897 = vld [vmem:[%s509 + $0x78] sm:$0xff]
      %v898 = vpack.c.bf16 %v867, %v866
      %v899 = vpack.c.bf16 %v869, %v868
      %v900 = vpack.c.bf16 %v871, %v870
      %v901 = vpack.c.bf16 %v873, %v872
      %v902 = vpack.c.bf16 %v875, %v874
      %v903 = vpack.c.bf16 %v877, %v876
      %v904 = vpack.c.bf16 %v879, %v878
      %v905 = vpack.c.bf16 %v881, %v880
      %v906 = vld [vmem:[%s5] sm:$0xff]
      %v907 = vld [vmem:[%s5 + $0x8] sm:$0xff]
      %v908 = vld [vmem:[%s5 + $0x10] sm:$0xff]
      %v909 = vld [vmem:[%s5 + $0x18] sm:$0xff]
      %v910 = vld [vmem:[%s5 + $0x20] sm:$0xff]
      %v911 = vld [vmem:[%s5 + $0x28] sm:$0xff]
      %v912 = vld [vmem:[%s5 + $0x30] sm:$0xff]
      %v913 = vld [vmem:[%s5 + $0x38] sm:$0xff]
      %v914 = vld [vmem:[%s5 + $0x40] sm:$0xff]
      %v915 = vld [vmem:[%s5 + $0x48] sm:$0xff]
      %v916 = vld [vmem:[%s5 + $0x50] sm:$0xff]
      %v917 = vld [vmem:[%s5 + $0x58] sm:$0xff]
      %v918 = vld [vmem:[%s5 + $0x60] sm:$0xff]
      %v919 = vld [vmem:[%s5 + $0x68] sm:$0xff]
      %v920 = vld [vmem:[%s5 + $0x70] sm:$0xff]
      %v921 = vld [vmem:[%s5 + $0x78] sm:$0xff]
      %v922 = vld [vmem:[%s6] sm:$0x3]
      %v924 = vlaneseq
      %v925 = vshrl.u32 %v924, 7
      %v926 = vsub.s32 0, %v925
      %v927 = vrot.slane %v922, %v926
      %v928 = vlaneseq
      %v929 = vshrl.u32 %v928, 7
      %v930 = vsub.s32 1, %v929
      %v931 = vrot.slane %v922, %v930
      %v950 = vunpack.c.l.b16 %v906
      %v951 = vunpack.c.h.b16 %v906
      %v952 = vunpack.c.l.b16 %v907
      %v953 = vunpack.c.h.b16 %v907
      %v954 = vunpack.c.l.b16 %v908
      %v955 = vunpack.c.h.b16 %v908
      %v956 = vunpack.c.l.b16 %v909
      %v957 = vunpack.c.h.b16 %v909
      %v958 = vunpack.c.l.b16 %v910
      %v959 = vunpack.c.h.b16 %v910
      %v960 = vunpack.c.l.b16 %v911
      %v961 = vunpack.c.h.b16 %v911
      %v962 = vunpack.c.l.b16 %v912
      %v963 = vunpack.c.h.b16 %v912
      %v964 = vunpack.c.l.b16 %v913
      %v965 = vunpack.c.h.b16 %v913
      %v966 = vunpack.c.l.b16 %v914
      %v967 = vunpack.c.h.b16 %v914
      %v968 = vunpack.c.l.b16 %v915
      %v969 = vunpack.c.h.b16 %v915
      %v970 = vunpack.c.l.b16 %v916
      %v971 = vunpack.c.h.b16 %v916
      %v972 = vunpack.c.l.b16 %v917
      %v973 = vunpack.c.h.b16 %v917
      %v974 = vunpack.c.l.b16 %v918
      %v975 = vunpack.c.h.b16 %v918
      %v976 = vunpack.c.l.b16 %v919
      %v977 = vunpack.c.h.b16 %v919
      %v978 = vunpack.c.l.b16 %v920
      %v979 = vunpack.c.h.b16 %v920
      %v980 = vunpack.c.l.b16 %v921
      %v981 = vunpack.c.h.b16 %v921
      %v982 = vpack.c.b16 %v952, %v950
      %v983 = vpack.c.b16 %v953, %v951
      %v984 = vpack.c.b16 %v956, %v954
      %v985 = vpack.c.b16 %v957, %v955
      %v986 = vpack.c.b16 %v960, %v958
      %v987 = vpack.c.b16 %v961, %v959
      %v988 = vpack.c.b16 %v964, %v962
      %v989 = vpack.c.b16 %v965, %v963
      %v990 = vpack.c.b16 %v968, %v966
      %v991 = vpack.c.b16 %v969, %v967
      %v992 = vpack.c.b16 %v972, %v970
      %v993 = vpack.c.b16 %v973, %v971
      %v994 = vpack.c.b16 %v976, %v974
      %v995 = vpack.c.b16 %v977, %v975
      %v996 = vpack.c.b16 %v980, %v978
      %v997 = vpack.c.b16 %v981, %v979
      %1014 = vmatprep.subr.bf16.mxu0 %v983
      %1015 = vmatpush1.bf16.msra.mxu0 %v982
      %1016 = vmatprep.subr.bf16.mxu0 %v985
      %1017 = vmatpush1.bf16.msra.mxu0 %v984
      %1018 = vmatprep.subr.bf16.mxu0 %v987
      %1019 = vmatpush1.bf16.msra.mxu0 %v986
      %1020 = vmatprep.subr.bf16.mxu0 %v989
      %1021 = vmatpush1.bf16.msra.mxu0 %v988
      %1022 = vmatprep.subr.bf16.mxu0 %v991
      %1023 = vmatpush1.bf16.msra.mxu0 %v990
      %1024 = vmatprep.subr.bf16.mxu0 %v993
      %1025 = vmatpush1.bf16.msra.mxu0 %v992
      %1026 = vmatprep.subr.bf16.mxu0 %v995
      %1027 = vmatpush1.bf16.msra.mxu0 %v994
      %1028 = vmatprep.subr.bf16.mxu0 %v997
      %1029 = vmatpush1.bf16.msra.mxu0 %v996
      %1030 = vmatprep.subr.bf16.mxu0 0
      %1031 = vmatpush1.bf16.msra.mxu0 0
      %1032 = vmatprep.subr.bf16.mxu0 0
      %1033 = vmatpush1.bf16.msra.mxu0 0
      %1034 = vmatprep.subr.bf16.mxu0 0
      %1035 = vmatpush1.bf16.msra.mxu0 0
      %1036 = vmatprep.subr.bf16.mxu0 0
      %1037 = vmatpush1.bf16.msra.mxu0 0
      %1038 = vmatprep.subr.bf16.mxu0 0
      %1039 = vmatpush1.bf16.msra.mxu0 0
      %1040 = vmatprep.subr.bf16.mxu0 0
      %1041 = vmatpush1.bf16.msra.mxu0 0
      %1042 = vmatprep.subr.bf16.mxu0 0
      %1043 = vmatpush1.bf16.msra.mxu0 0
      %1044 = vmatprep.subr.bf16.mxu0 0
      %1045 = vmatpush1.bf16.msra.mxu0 0
      %1046 = vmatprep.mubr.bf16.mxu0 0
      %1047 = vmatmul.mubr.bf16.gmra.mrb[0].mxu0 %v898
      %v1048 = vpop.f32.mrb[0].mxu0
      %v1049 = vadd.f32 %v927, %v1048
      %v1050 = vpop.f32.mrb[0].mxu0
      %v1051 = vadd.f32 %v931, %v1050
      %v1052 = vpop.f32.mrb[0].mxu0
      %v1053 = vadd.f32 %v927, %v1052
      %v1054 = vpop.f32.mrb[0].mxu0
      %v1055 = vadd.f32 %v931, %v1054
      %1056 = vmatprep.mubr.bf16.mxu0 0
      %1057 = vmatmul.mubr.bf16.gmra.mrb[0].mxu0 %v899
      %v1058 = vpop.f32.mrb[0].mxu0
      %v1059 = vadd.f32 %v927, %v1058
      %v1060 = vpop.f32.mrb[0].mxu0
      %v1061 = vadd.f32 %v931, %v1060
      %v1062 = vpop.f32.mrb[0].mxu0
      %v1063 = vadd.f32 %v927, %v1062
      %v1064 = vpop.f32.mrb[0].mxu0
      %v1065 = vadd.f32 %v931, %v1064
      %1066 = vmatprep.mubr.bf16.mxu0 0
      %1067 = vmatmul.mubr.bf16.gmra.mrb[0].mxu0 %v900
      %v1068 = vpop.f32.mrb[0].mxu0
      %v1069 = vadd.f32 %v927, %v1068
      %v1070 = vpop.f32.mrb[0].mxu0
      %v1071 = vadd.f32 %v931, %v1070
      %v1072 = vpop.f32.mrb[0].mxu0
      %v1073 = vadd.f32 %v927, %v1072
      %v1074 = vpop.f32.mrb[0].mxu0
      %v1075 = vadd.f32 %v931, %v1074
      %1076 = vmatprep.mubr.bf16.mxu0 0
      %1077 = vmatmul.mubr.bf16.gmra.mrb[0].mxu0 %v901
      %v1078 = vpop.f32.mrb[0].mxu0
      %v1079 = vadd.f32 %v927, %v1078
      %v1080 = vpop.f32.mrb[0].mxu0
      %v1081 = vadd.f32 %v931, %v1080
      %v1082 = vpop.f32.mrb[0].mxu0
      %v1083 = vadd.f32 %v927, %v1082
      %v1084 = vpop.f32.mrb[0].mxu0
      %v1085 = vadd.f32 %v931, %v1084
      %1086 = vmatprep.mubr.bf16.mxu0 0
      %1087 = vmatmul.mubr.bf16.gmra.mrb[0].mxu0 %v902
      %v1088 = vpop.f32.mrb[0].mxu0
      %v1089 = vadd.f32 %v927, %v1088
      %v1090 = vpop.f32.mrb[0].mxu0
      %v1091 = vadd.f32 %v931, %v1090
      %v1092 = vpop.f32.mrb[0].mxu0
      %v1093 = vadd.f32 %v927, %v1092
      %v1094 = vpop.f32.mrb[0].mxu0
      %v1095 = vadd.f32 %v931, %v1094
      %1096 = vmatprep.mubr.bf16.mxu0 0
      %1097 = vmatmul.mubr.bf16.gmra.mrb[0].mxu0 %v903
      %v1098 = vpop.f32.mrb[0].mxu0
      %v1099 = vadd.f32 %v927, %v1098
      %v1100 = vpop.f32.mrb[0].mxu0
      %v1101 = vadd.f32 %v931, %v1100
      %v1102 = vpop.f32.mrb[0].mxu0
      %v1103 = vadd.f32 %v927, %v1102
      %v1104 = vpop.f32.mrb[0].mxu0
      %v1105 = vadd.f32 %v931, %v1104
      %1106 = vmatprep.mubr.bf16.mxu0 0
      %1107 = vmatmul.mubr.bf16.gmra.mrb[0].mxu0 %v904
      %v1108 = vpop.f32.mrb[0].mxu0
      %v1109 = vadd.f32 %v927, %v1108
      %v1110 = vpop.f32.mrb[0].mxu0
      %v1111 = vadd.f32 %v931, %v1110
      %v1112 = vpop.f32.mrb[0].mxu0
      %v1113 = vadd.f32 %v927, %v1112
      %v1114 = vpop.f32.mrb[0].mxu0
      %v1115 = vadd.f32 %v931, %v1114
      %1116 = vmatprep.mubr.bf16.mxu0 0
      %1117 = vmatmul.mubr.bf16.gmra.mrb[0].mxu0 %v905
      %v1118 = vpop.f32.mrb[0].mxu0
      %v1119 = vadd.f32 %v927, %v1118
      %v1120 = vpop.f32.mrb[0].mxu0
      %v1121 = vadd.f32 %v931, %v1120
      %v1122 = vpop.f32.mrb[0].mxu0
      %v1123 = vadd.f32 %v927, %v1122
      %v1124 = vpop.f32.mrb[0].mxu0
      %v1125 = vadd.f32 %v931, %v1124
      %1126 = vdwg.mxu0
      %v1127 = vpack.c.bf16 %v883, %v882
      %v1128 = vpack.c.bf16 %v885, %v884
      %v1129 = vpack.c.bf16 %v887, %v886
      %v1130 = vpack.c.bf16 %v889, %v888
      %v1131 = vpack.c.bf16 %v891, %v890
      %v1132 = vpack.c.bf16 %v893, %v892
      %v1133 = vpack.c.bf16 %v895, %v894
      %v1134 = vpack.c.bf16 %v897, %v896
      %v1135 = vld [vmem:[%s7] sm:$0xf]
      %v1136 = vld [vmem:[%s7 + $0x4] sm:$0xf]
      %v1137 = vld [vmem:[%s7 + $0x8] sm:$0xf]
      %v1138 = vld [vmem:[%s7 + $0xc] sm:$0xf]
      %v1139 = vld [vmem:[%s7 + $0x10] sm:$0xf]
      %v1140 = vld [vmem:[%s7 + $0x14] sm:$0xf]
      %v1141 = vld [vmem:[%s7 + $0x18] sm:$0xf]
      %v1142 = vld [vmem:[%s7 + $0x1c] sm:$0xf]
      %v1143 = vld [vmem:[%s7 + $0x20] sm:$0xf]
      %v1144 = vld [vmem:[%s7 + $0x24] sm:$0xf]
      %v1145 = vld [vmem:[%s7 + $0x28] sm:$0xf]
      %v1146 = vld [vmem:[%s7 + $0x2c] sm:$0xf]
      %v1147 = vld [vmem:[%s7 + $0x30] sm:$0xf]
      %v1148 = vld [vmem:[%s7 + $0x34] sm:$0xf]
      %v1149 = vld [vmem:[%s7 + $0x38] sm:$0xf]
      %v1150 = vld [vmem:[%s7 + $0x3c] sm:$0xf]
      %v1151 = vld [vmem:[%s8] sm:$0x1]
      %v1153 = vlaneseq
      %v1154 = vshrl.u32 %v1153, 7
      %v1155 = vsub.s32 0, %v1154
      %v1156 = vrot.slane %v1151, %v1155
      %v1174 = vunpack.c.l.b16 %v1135
      %v1175 = vunpack.c.l.b16 %v1136
      %v1176 = vunpack.c.l.b16 %v1137
      %v1177 = vunpack.c.l.b16 %v1138
      %v1178 = vunpack.c.l.b16 %v1139
      %v1179 = vunpack.c.l.b16 %v1140
      %v1180 = vunpack.c.l.b16 %v1141
      %v1181 = vunpack.c.l.b16 %v1142
      %v1182 = vunpack.c.l.b16 %v1143
      %v1183 = vunpack.c.l.b16 %v1144
      %v1184 = vunpack.c.l.b16 %v1145
      %v1185 = vunpack.c.l.b16 %v1146
      %v1186 = vunpack.c.l.b16 %v1147
      %v1187 = vunpack.c.l.b16 %v1148
      %v1188 = vunpack.c.l.b16 %v1149
      %v1189 = vunpack.c.l.b16 %v1150
      %v1190 = vpack.c.b16 %v1175, %v1174
      %v1191 = vpack.c.b16 %v1177, %v1176
      %v1192 = vpack.c.b16 %v1179, %v1178
      %v1193 = vpack.c.b16 %v1181, %v1180
      %v1194 = vpack.c.b16 %v1183, %v1182
      %v1195 = vpack.c.b16 %v1185, %v1184
      %v1196 = vpack.c.b16 %v1187, %v1186
      %v1197 = vpack.c.b16 %v1189, %v1188
      %1206 = vmatprep.subr.bf16.mxu0 0
      %1207 = vmatpush1.bf16.msra.mxu0 %v1190
      %1208 = vmatprep.subr.bf16.mxu0 0
      %1209 = vmatpush1.bf16.msra.mxu0 %v1191
      %1210 = vmatprep.subr.bf16.mxu0 0
      %1211 = vmatpush1.bf16.msra.mxu0 %v1192
      %1212 = vmatprep.subr.bf16.mxu0 0
      %1213 = vmatpush1.bf16.msra.mxu0 %v1193
      %1214 = vmatprep.subr.bf16.mxu0 0
      %1215 = vmatpush1.bf16.msra.mxu0 %v1194
      %1216 = vmatprep.subr.bf16.mxu0 0
      %1217 = vmatpush1.bf16.msra.mxu0 %v1195
      %1218 = vmatprep.subr.bf16.mxu0 0
      %1219 = vmatpush1.bf16.msra.mxu0 %v1196
      %1220 = vmatprep.subr.bf16.mxu0 0
      %1221 = vmatpush1.bf16.msra.mxu0 %v1197
      %1222 = vmatprep.subr.bf16.mxu0 0
      %1223 = vmatpush1.bf16.msra.mxu0 0
      %1224 = vmatprep.subr.bf16.mxu0 0
      %1225 = vmatpush1.bf16.msra.mxu0 0
      %1226 = vmatprep.subr.bf16.mxu0 0
      %1227 = vmatpush1.bf16.msra.mxu0 0
      %1228 = vmatprep.subr.bf16.mxu0 0
      %1229 = vmatpush1.bf16.msra.mxu0 0
      %1230 = vmatprep.subr.bf16.mxu0 0
      %1231 = vmatpush1.bf16.msra.mxu0 0
      %1232 = vmatprep.subr.bf16.mxu0 0
      %1233 = vmatpush1.bf16.msra.mxu0 0
      %1234 = vmatprep.subr.bf16.mxu0 0
      %1235 = vmatpush1.bf16.msra.mxu0 0
      %1236 = vmatprep.subr.bf16.mxu0 0
      %1237 = vmatpush1.bf16.msra.mxu0 0
      %1238 = vmatprep.mubr.bf16.mxu0 0
      %1239 = vmatmul.mubr.bf16.gmra.mrb[0].mxu0 %v1127
      %v1240 = vpop.f32.mrb[0].mxu0
      %v1241 = vadd.f32 %v1156, %v1240
      %v1242 = vpop.f32.mrb[0].mxu0
      %v1243 = vpop.f32.mrb[0].mxu0
      %v1244 = vadd.f32 %v1156, %v1243
      %v1245 = vpop.f32.mrb[0].mxu0
      %1246 = vmatprep.mubr.bf16.mxu0 0
      %1247 = vmatmul.mubr.bf16.gmra.mrb[0].mxu0 %v1128
      %v1248 = vpop.f32.mrb[0].mxu0
      %v1249 = vadd.f32 %v1156, %v1248
      %v1250 = vpop.f32.mrb[0].mxu0
      %v1251 = vpop.f32.mrb[0].mxu0
      %v1252 = vadd.f32 %v1156, %v1251
      %v1253 = vpop.f32.mrb[0].mxu0
      %1254 = vmatprep.mubr.bf16.mxu0 0
      %1255 = vmatmul.mubr.bf16.gmra.mrb[0].mxu0 %v1129
      %v1256 = vpop.f32.mrb[0].mxu0
      %v1257 = vadd.f32 %v1156, %v1256
      %v1258 = vpop.f32.mrb[0].mxu0
      %v1259 = vpop.f32.mrb[0].mxu0
      %v1260 = vadd.f32 %v1156, %v1259
      %v1261 = vpop.f32.mrb[0].mxu0
      %1262 = vmatprep.mubr.bf16.mxu0 0
      %1263 = vmatmul.mubr.bf16.gmra.mrb[0].mxu0 %v1130
      %v1264 = vpop.f32.mrb[0].mxu0
      %v1265 = vadd.f32 %v1156, %v1264
      %v1266 = vpop.f32.mrb[0].mxu0
      %v1267 = vpop.f32.mrb[0].mxu0
      %v1268 = vadd.f32 %v1156, %v1267
      %v1269 = vpop.f32.mrb[0].mxu0
      %1270 = vmatprep.mubr.bf16.mxu0 0
      %1271 = vmatmul.mubr.bf16.gmra.mrb[0].mxu0 %v1131
      %v1272 = vpop.f32.mrb[0].mxu0
      %v1273 = vadd.f32 %v1156, %v1272
      %v1274 = vpop.f32.mrb[0].mxu0
      %v1275 = vpop.f32.mrb[0].mxu0
      %v1276 = vadd.f32 %v1156, %v1275
      %v1277 = vpop.f32.mrb[0].mxu0
      %1278 = vmatprep.mubr.bf16.mxu0 0
      %1279 = vmatmul.mubr.bf16.gmra.mrb[0].mxu0 %v1132
      %v1280 = vpop.f32.mrb[0].mxu0
      %v1281 = vadd.f32 %v1156, %v1280
      %v1282 = vpop.f32.mrb[0].mxu0
      %v1283 = vpop.f32.mrb[0].mxu0
      %v1284 = vadd.f32 %v1156, %v1283
      %v1285 = vpop.f32.mrb[0].mxu0
      %1286 = vmatprep.mubr.bf16.mxu0 0
      %1287 = vmatmul.mubr.bf16.gmra.mrb[0].mxu0 %v1133
      %v1288 = vpop.f32.mrb[0].mxu0
      %v1289 = vadd.f32 %v1156, %v1288
      %v1290 = vpop.f32.mrb[0].mxu0
      %v1291 = vpop.f32.mrb[0].mxu0
      %v1292 = vadd.f32 %v1156, %v1291
      %v1293 = vpop.f32.mrb[0].mxu0
      %1294 = vmatprep.mubr.bf16.mxu0 0
      %1295 = vmatmul.mubr.bf16.gmra.mrb[0].mxu0 %v1134
      %v1296 = vpop.f32.mrb[0].mxu0
      %v1297 = vadd.f32 %v1156, %v1296
      %v1298 = vpop.f32.mrb[0].mxu0
      %v1299 = vpop.f32.mrb[0].mxu0
      %v1300 = vadd.f32 %v1156, %v1299
      %v1301 = vpop.f32.mrb[0].mxu0
      %1302 = vdwg.mxu0
      %v1303 = vsub.f32 %v1051, %v1241
      %v1304 = vsub.f32 %v1055, %v1244
      %v1305 = vsub.f32 %v1061, %v1249
      %v1306 = vsub.f32 %v1065, %v1252
      %v1307 = vsub.f32 %v1071, %v1257
      %v1308 = vsub.f32 %v1075, %v1260
      %v1309 = vsub.f32 %v1081, %v1265
      %v1310 = vsub.f32 %v1085, %v1268
      %v1311 = vsub.f32 %v1091, %v1273
      %v1312 = vsub.f32 %v1095, %v1276
      %v1313 = vsub.f32 %v1101, %v1281
      %v1314 = vsub.f32 %v1105, %v1284
      %v1315 = vsub.f32 %v1111, %v1289
      %v1316 = vsub.f32 %v1115, %v1292
      %v1317 = vsub.f32 %v1121, %v1297
      %v1318 = vsub.f32 %v1125, %v1300
      %v1319 = vmul.f32 %v1049, %v1303
      %v1320 = vmul.f32 %v1053, %v1304
      %v1321 = vmul.f32 %v1059, %v1305
      %v1322 = vmul.f32 %v1063, %v1306
      %v1323 = vmul.f32 %v1069, %v1307
      %v1324 = vmul.f32 %v1073, %v1308
      %v1325 = vmul.f32 %v1079, %v1309
      %v1326 = vmul.f32 %v1083, %v1310
      %v1327 = vmul.f32 %v1089, %v1311
      %v1328 = vmul.f32 %v1093, %v1312
      %v1329 = vmul.f32 %v1099, %v1313
      %v1330 = vmul.f32 %v1103, %v1314
      %v1331 = vmul.f32 %v1109, %v1315
      %v1332 = vmul.f32 %v1113, %v1316
      %v1333 = vmul.f32 %v1119, %v1317
      %v1334 = vmul.f32 %v1123, %v1318
      %v1335 = vpack.c.bf16 %v1320, %v1319
      %v1336 = vpack.c.bf16 %v1322, %v1321
      %v1337 = vpack.c.bf16 %v1324, %v1323
      %v1338 = vpack.c.bf16 %v1326, %v1325
      %v1339 = vpack.c.bf16 %v1328, %v1327
      %v1340 = vpack.c.bf16 %v1330, %v1329
      %v1341 = vpack.c.bf16 %v1332, %v1331
      %v1342 = vpack.c.bf16 %v1334, %v1333
      %v1343 = vld [vmem:[%s11] sm:$0xf]
      %v1344 = vld [vmem:[%s11 + $0x4] sm:$0xf]
      %v1345 = vld [vmem:[%s11 + $0x8] sm:$0xf]
      %v1346 = vld [vmem:[%s11 + $0xc] sm:$0xf]
      %v1347 = vld [vmem:[%s11 + $0x10] sm:$0xf]
      %v1348 = vld [vmem:[%s11 + $0x14] sm:$0xf]
      %v1349 = vld [vmem:[%s11 + $0x18] sm:$0xf]
      %v1350 = vld [vmem:[%s11 + $0x1c] sm:$0xf]
      %v1351 = vld [vmem:[%s11 + $0x20] sm:$0xf]
      %v1352 = vld [vmem:[%s11 + $0x24] sm:$0xf]
      %v1353 = vld [vmem:[%s11 + $0x28] sm:$0xf]
      %v1354 = vld [vmem:[%s11 + $0x2c] sm:$0xf]
      %v1355 = vld [vmem:[%s11 + $0x30] sm:$0xf]
      %v1356 = vld [vmem:[%s11 + $0x34] sm:$0xf]
      %v1357 = vld [vmem:[%s11 + $0x38] sm:$0xf]
      %v1358 = vld [vmem:[%s11 + $0x3c] sm:$0xf]
      %v1375 = vunpack.c.l.b16 %v1343
      %v1376 = vunpack.c.l.b16 %v1344
      %v1377 = vunpack.c.l.b16 %v1345
      %v1378 = vunpack.c.l.b16 %v1346
      %v1379 = vunpack.c.l.b16 %v1347
      %v1380 = vunpack.c.l.b16 %v1348
      %v1381 = vunpack.c.l.b16 %v1349
      %v1382 = vunpack.c.l.b16 %v1350
      %v1383 = vunpack.c.l.b16 %v1351
      %v1384 = vunpack.c.l.b16 %v1352
      %v1385 = vunpack.c.l.b16 %v1353
      %v1386 = vunpack.c.l.b16 %v1354
      %v1387 = vunpack.c.l.b16 %v1355
      %v1388 = vunpack.c.l.b16 %v1356
      %v1389 = vunpack.c.l.b16 %v1357
      %v1390 = vunpack.c.l.b16 %v1358
      %v1391 = vpack.c.b16 %v1376, %v1375
      %v1392 = vpack.c.b16 %v1378, %v1377
      %v1393 = vpack.c.b16 %v1380, %v1379
      %v1394 = vpack.c.b16 %v1382, %v1381
      %v1395 = vpack.c.b16 %v1384, %v1383
      %v1396 = vpack.c.b16 %v1386, %v1385
      %v1397 = vpack.c.b16 %v1388, %v1387
      %v1398 = vpack.c.b16 %v1390, %v1389
      %1407 = vmatprep.subr.bf16.mxu0 0
      %1408 = vmatpush1.bf16.msra.mxu0 %v1391
      %1409 = vmatprep.subr.bf16.mxu0 0
      %1410 = vmatpush1.bf16.msra.mxu0 %v1392
      %1411 = vmatprep.subr.bf16.mxu0 0
      %1412 = vmatpush1.bf16.msra.mxu0 %v1393
      %1413 = vmatprep.subr.bf16.mxu0 0
      %1414 = vmatpush1.bf16.msra.mxu0 %v1394
      %1415 = vmatprep.subr.bf16.mxu0 0
      %1416 = vmatpush1.bf16.msra.mxu0 %v1395
      %1417 = vmatprep.subr.bf16.mxu0 0
      %1418 = vmatpush1.bf16.msra.mxu0 %v1396
      %1419 = vmatprep.subr.bf16.mxu0 0
      %1420 = vmatpush1.bf16.msra.mxu0 %v1397
      %1421 = vmatprep.subr.bf16.mxu0 0
      %1422 = vmatpush1.bf16.msra.mxu0 %v1398
      %1423 = vmatprep.subr.bf16.mxu0 0
      %1424 = vmatpush1.bf16.msra.mxu0 0
      %1425 = vmatprep.subr.bf16.mxu0 0
      %1426 = vmatpush1.bf16.msra.mxu0 0
      %1427 = vmatprep.subr.bf16.mxu0 0
      %1428 = vmatpush1.bf16.msra.mxu0 0
      %1429 = vmatprep.subr.bf16.mxu0 0
      %1430 = vmatpush1.bf16.msra.mxu0 0
      %1431 = vmatprep.subr.bf16.mxu0 0
      %1432 = vmatpush1.bf16.msra.mxu0 0
      %1433 = vmatprep.subr.bf16.mxu0 0
      %1434 = vmatpush1.bf16.msra.mxu0 0
      %1435 = vmatprep.subr.bf16.mxu0 0
      %1436 = vmatpush1.bf16.msra.mxu0 0
      %1437 = vmatprep.subr.bf16.mxu0 0
      %1438 = vmatpush1.bf16.msra.mxu0 0
      %1439 = vmatprep.mubr.bf16.mxu0 0
      %1440 = vmatmul.mubr.bf16.gmra.mrb[0].mxu0 %v1335
      %v1441 = vpop.f32.mrb[0].mxu0
      %v1442 = vadd.f32 0.0, %v1441
      %v1443 = vpop.f32.mrb[0].mxu0
      %v1444 = vpop.f32.mrb[0].mxu0
      %v1445 = vadd.f32 0.0, %v1444
      %v1446 = vpop.f32.mrb[0].mxu0
      %1447 = vmatprep.mubr.bf16.mxu0 0
      %1448 = vmatmul.mubr.bf16.gmra.mrb[0].mxu0 %v1336
      %v1449 = vpop.f32.mrb[0].mxu0
      %v1450 = vadd.f32 0.0, %v1449
      %v1451 = vpop.f32.mrb[0].mxu0
      %v1452 = vpop.f32.mrb[0].mxu0
      %v1453 = vadd.f32 0.0, %v1452
      %v1454 = vpop.f32.mrb[0].mxu0
      %1455 = vmatprep.mubr.bf16.mxu0 0
      %1456 = vmatmul.mubr.bf16.gmra.mrb[0].mxu0 %v1337
      %v1457 = vpop.f32.mrb[0].mxu0
      %v1458 = vadd.f32 0.0, %v1457
      %v1459 = vpop.f32.mrb[0].mxu0
      %v1460 = vpop.f32.mrb[0].mxu0
      %v1461 = vadd.f32 0.0, %v1460
      %v1462 = vpop.f32.mrb[0].mxu0
      %1463 = vmatprep.mubr.bf16.mxu0 0
      %1464 = vmatmul.mubr.bf16.gmra.mrb[0].mxu0 %v1338
      %v1465 = vpop.f32.mrb[0].mxu0
      %v1466 = vadd.f32 0.0, %v1465
      %v1467 = vpop.f32.mrb[0].mxu0
      %v1468 = vpop.f32.mrb[0].mxu0
      %v1469 = vadd.f32 0.0, %v1468
      %v1470 = vpop.f32.mrb[0].mxu0
      %1471 = vmatprep.mubr.bf16.mxu0 0
      %1472 = vmatmul.mubr.bf16.gmra.mrb[0].mxu0 %v1339
      %v1473 = vpop.f32.mrb[0].mxu0
      %v1474 = vadd.f32 0.0, %v1473
      %v1475 = vpop.f32.mrb[0].mxu0
      %v1476 = vpop.f32.mrb[0].mxu0
      %v1477 = vadd.f32 0.0, %v1476
      %v1478 = vpop.f32.mrb[0].mxu0
      %1479 = vmatprep.mubr.bf16.mxu0 0
      %1480 = vmatmul.mubr.bf16.gmra.mrb[0].mxu0 %v1340
      %v1481 = vpop.f32.mrb[0].mxu0
      %v1482 = vadd.f32 0.0, %v1481
      %v1483 = vpop.f32.mrb[0].mxu0
      %v1484 = vpop.f32.mrb[0].mxu0
      %v1485 = vadd.f32 0.0, %v1484
      %v1486 = vpop.f32.mrb[0].mxu0
      %1487 = vmatprep.mubr.bf16.mxu0 0
      %1488 = vmatmul.mubr.bf16.gmra.mrb[0].mxu0 %v1341
      %v1489 = vpop.f32.mrb[0].mxu0
      %v1490 = vadd.f32 0.0, %v1489
      %v1491 = vpop.f32.mrb[0].mxu0
      %v1492 = vpop.f32.mrb[0].mxu0
      %v1493 = vadd.f32 0.0, %v1492
      %v1494 = vpop.f32.mrb[0].mxu0
      %1495 = vmatprep.mubr.bf16.mxu0 0
      %1496 = vmatmul.mubr.bf16.gmra.mrb[0].mxu0 %v1342
      %v1497 = vpop.f32.mrb[0].mxu0
      %v1498 = vadd.f32 0.0, %v1497
      %v1499 = vpop.f32.mrb[0].mxu0
      %v1500 = vpop.f32.mrb[0].mxu0
      %v1501 = vadd.f32 0.0, %v1500
      %v1502 = vpop.f32.mrb[0].mxu0
      %1503 = vdwg.mxu0
      %v1504 = vxor.u32 %v1442, 2147483648
      %v1505 = vxor.u32 %v1445, 2147483648
      %v1506 = vxor.u32 %v1450, 2147483648
      %v1507 = vxor.u32 %v1453, 2147483648
      %v1508 = vxor.u32 %v1458, 2147483648
      %v1509 = vxor.u32 %v1461, 2147483648
      %v1510 = vxor.u32 %v1466, 2147483648
      %v1511 = vxor.u32 %v1469, 2147483648
      %v1512 = vxor.u32 %v1474, 2147483648
      %v1513 = vxor.u32 %v1477, 2147483648
      %v1514 = vxor.u32 %v1482, 2147483648
      %v1515 = vxor.u32 %v1485, 2147483648
      %v1516 = vxor.u32 %v1490, 2147483648
      %v1517 = vxor.u32 %v1493, 2147483648
      %v1518 = vxor.u32 %v1498, 2147483648
      %v1519 = vxor.u32 %v1501, 2147483648
      %v1520 = vmul.f32 %v1504, 1.442695
      %v1521 = vpow.pop %v1520
      %v1522 = vmul.f32 %v1505, 1.442695
      %v1523 = vpow.pop %v1522
      %v1524 = vmul.f32 %v1506, 1.442695
      %v1525 = vpow.pop %v1524
      %v1526 = vmul.f32 %v1507, 1.442695
      %v1527 = vpow.pop %v1526
      %v1528 = vmul.f32 %v1508, 1.442695
      %v1529 = vpow.pop %v1528
      %v1530 = vmul.f32 %v1509, 1.442695
      %v1531 = vpow.pop %v1530
      %v1532 = vmul.f32 %v1510, 1.442695
      %v1533 = vpow.pop %v1532
      %v1534 = vmul.f32 %v1511, 1.442695
      %v1535 = vpow.pop %v1534
      %v1536 = vmul.f32 %v1512, 1.442695
      %v1537 = vpow.pop %v1536
      %v1538 = vmul.f32 %v1513, 1.442695
      %v1539 = vpow.pop %v1538
      %v1540 = vmul.f32 %v1514, 1.442695
      %v1541 = vpow.pop %v1540
      %v1542 = vmul.f32 %v1515, 1.442695
      %v1543 = vpow.pop %v1542
      %v1544 = vmul.f32 %v1516, 1.442695
      %v1545 = vpow.pop %v1544
      %v1546 = vmul.f32 %v1517, 1.442695
      %v1547 = vpow.pop %v1546
      %v1548 = vmul.f32 %v1518, 1.442695
      %v1549 = vpow.pop %v1548
      %v1550 = vmul.f32 %v1519, 1.442695
      %v1551 = vpow.pop %v1550
      %v1552 = vadd.f32 %v1521, 1.0
      %v1553 = vadd.f32 %v1523, 1.0
      %v1554 = vadd.f32 %v1525, 1.0
      %v1555 = vadd.f32 %v1527, 1.0
      %v1556 = vadd.f32 %v1529, 1.0
      %v1557 = vadd.f32 %v1531, 1.0
      %v1558 = vadd.f32 %v1533, 1.0
      %v1559 = vadd.f32 %v1535, 1.0
      %v1560 = vadd.f32 %v1537, 1.0
      %v1561 = vadd.f32 %v1539, 1.0
      %v1562 = vadd.f32 %v1541, 1.0
      %v1563 = vadd.f32 %v1543, 1.0
      %v1564 = vadd.f32 %v1545, 1.0
      %v1565 = vadd.f32 %v1547, 1.0
      %v1566 = vadd.f32 %v1549, 1.0
      %v1567 = vadd.f32 %v1551, 1.0
      %v1568 = vrcp.pop %v1552
      %v1569 = vmul.f32 1.0, %v1568
      %v1570 = vrcp.pop %v1553
      %v1571 = vmul.f32 1.0, %v1570
      %v1572 = vrcp.pop %v1554
      %v1573 = vmul.f32 1.0, %v1572
      %v1574 = vrcp.pop %v1555
      %v1575 = vmul.f32 1.0, %v1574
      %v1576 = vrcp.pop %v1556
      %v1577 = vmul.f32 1.0, %v1576
      %v1578 = vrcp.pop %v1557
      %v1579 = vmul.f32 1.0, %v1578
      %v1580 = vrcp.pop %v1558
      %v1581 = vmul.f32 1.0, %v1580
      %v1582 = vrcp.pop %v1559
      %v1583 = vmul.f32 1.0, %v1582
      %v1584 = vrcp.pop %v1560
      %v1585 = vmul.f32 1.0, %v1584
      %v1586 = vrcp.pop %v1561
      %v1587 = vmul.f32 1.0, %v1586
      %v1588 = vrcp.pop %v1562
      %v1589 = vmul.f32 1.0, %v1588
      %v1590 = vrcp.pop %v1563
      %v1591 = vmul.f32 1.0, %v1590
      %v1592 = vrcp.pop %v1564
      %v1593 = vmul.f32 1.0, %v1592
      %v1594 = vrcp.pop %v1565
      %v1595 = vmul.f32 1.0, %v1594
      %v1596 = vrcp.pop %v1566
      %v1597 = vmul.f32 1.0, %v1596
      %v1598 = vrcp.pop %v1567
      %v1599 = vmul.f32 1.0, %v1598
      %v1600 = vpack.c.bf16 %v1571, %v1569
      %v1601 = vpack.c.bf16 %v1575, %v1573
      %v1602 = vpack.c.bf16 %v1579, %v1577
      %v1603 = vpack.c.bf16 %v1583, %v1581
      %v1604 = vpack.c.bf16 %v1587, %v1585
      %v1605 = vpack.c.bf16 %v1591, %v1589
      %v1606 = vpack.c.bf16 %v1595, %v1593
      %v1607 = vpack.c.bf16 %v1599, %v1597
      %v1608 = vld [vmem:[%s12] sm:$0xf]
      %vm1609 = vcmask 64512
      %v1611 = vsel %vm1609, %v1600, 0
      %v1614 = vsel %vm1609, %v1601, 0
      %v1617 = vsel %vm1609, %v1602, 0
      %v1620 = vsel %vm1609, %v1603, 0
      %v1623 = vsel %vm1609, %v1604, 0
      %v1626 = vsel %vm1609, %v1605, 0
      %v1629 = vsel %vm1609, %v1606, 0
      %v1632 = vsel %vm1609, %v1607, 0
      %vm1634 = vcmask 1043456
      %v1636 = vsel %vm1634, %v1608, 0
      %1638 = vmatprep.subr.bf16.mxu0 0
      %1639 = vmatpush1.bf16.msra.mxu0 %v1636
      %1640 = vmatprep.subr.bf16.mxu0 0
      %1641 = vmatpush1.bf16.msra.mxu0 0
      %1642 = vmatprep.subr.bf16.mxu0 0
      %1643 = vmatpush1.bf16.msra.mxu0 0
      %1644 = vmatprep.subr.bf16.mxu0 0
      %1645 = vmatpush1.bf16.msra.mxu0 0
      %1646 = vmatprep.subr.bf16.mxu0 0
      %1647 = vmatpush1.bf16.msra.mxu0 0
      %1648 = vmatprep.subr.bf16.mxu0 0
      %1649 = vmatpush1.bf16.msra.mxu0 0
      %1650 = vmatprep.subr.bf16.mxu0 0
      %1651 = vmatpush1.bf16.msra.mxu0 0
      %1652 = vmatprep.subr.bf16.mxu0 0
      %1653 = vmatpush1.bf16.msra.mxu0 0
      %1654 = vmatprep.subr.bf16.mxu0 0
      %1655 = vmatpush1.bf16.msra.mxu0 0
      %1656 = vmatprep.subr.bf16.mxu0 0
      %1657 = vmatpush1.bf16.msra.mxu0 0
      %1658 = vmatprep.subr.bf16.mxu0 0
      %1659 = vmatpush1.bf16.msra.mxu0 0
      %1660 = vmatprep.subr.bf16.mxu0 0
      %1661 = vmatpush1.bf16.msra.mxu0 0
      %1662 = vmatprep.subr.bf16.mxu0 0
      %1663 = vmatpush1.bf16.msra.mxu0 0
      %1664 = vmatprep.subr.bf16.mxu0 0
      %1665 = vmatpush1.bf16.msra.mxu0 0
      %1666 = vmatprep.subr.bf16.mxu0 0
      %1667 = vmatpush1.bf16.msra.mxu0 0
      %1668 = vmatprep.subr.bf16.mxu0 0
      %1669 = vmatpush1.bf16.msra.mxu0 0
      %1670 = vmatprep.mubr.bf16.mxu0 0
      %1671 = vmatmul.mubr.bf16.gmra.mrb[0].mxu0 %v1611
      %v1672 = vpop.f32.mrb[0].mxu0
      %v1673 = vadd.f32 0.0, %v1672
      %v1674 = vpop.f32.mrb[0].mxu0
      %v1675 = vpop.f32.mrb[0].mxu0
      %v1676 = vadd.f32 0.0, %v1675
      %v1677 = vpop.f32.mrb[0].mxu0
      %1678 = vmatprep.mubr.bf16.mxu0 0
      %1679 = vmatmul.mubr.bf16.gmra.mrb[0].mxu0 %v1614
      %v1680 = vpop.f32.mrb[0].mxu0
      %v1681 = vadd.f32 0.0, %v1680
      %v1682 = vpop.f32.mrb[0].mxu0
      %v1683 = vpop.f32.mrb[0].mxu0
      %v1684 = vadd.f32 0.0, %v1683
      %v1685 = vpop.f32.mrb[0].mxu0
      %1686 = vmatprep.mubr.bf16.mxu0 0
      %1687 = vmatmul.mubr.bf16.gmra.mrb[0].mxu0 %v1617
      %v1688 = vpop.f32.mrb[0].mxu0
      %v1689 = vadd.f32 0.0, %v1688
      %v1690 = vpop.f32.mrb[0].mxu0
      %v1691 = vpop.f32.mrb[0].mxu0
      %v1692 = vadd.f32 0.0, %v1691
      %v1693 = vpop.f32.mrb[0].mxu0
      %1694 = vmatprep.mubr.bf16.mxu0 0
      %1695 = vmatmul.mubr.bf16.gmra.mrb[0].mxu0 %v1620
      %v1696 = vpop.f32.mrb[0].mxu0
      %v1697 = vadd.f32 0.0, %v1696
      %v1698 = vpop.f32.mrb[0].mxu0
      %v1699 = vpop.f32.mrb[0].mxu0
      %v1700 = vadd.f32 0.0, %v1699
      %v1701 = vpop.f32.mrb[0].mxu0
      %1702 = vmatprep.mubr.bf16.mxu0 0
      %1703 = vmatmul.mubr.bf16.gmra.mrb[0].mxu0 %v1623
      %v1704 = vpop.f32.mrb[0].mxu0
      %v1705 = vadd.f32 0.0, %v1704
      %v1706 = vpop.f32.mrb[0].mxu0
      %v1707 = vpop.f32.mrb[0].mxu0
      %v1708 = vadd.f32 0.0, %v1707
      %v1709 = vpop.f32.mrb[0].mxu0
      %1710 = vmatprep.mubr.bf16.mxu0 0
      %1711 = vmatmul.mubr.bf16.gmra.mrb[0].mxu0 %v1626
      %v1712 = vpop.f32.mrb[0].mxu0
      %v1713 = vadd.f32 0.0, %v1712
      %v1714 = vpop.f32.mrb[0].mxu0
      %v1715 = vpop.f32.mrb[0].mxu0
      %v1716 = vadd.f32 0.0, %v1715
      %v1717 = vpop.f32.mrb[0].mxu0
      %1718 = vmatprep.mubr.bf16.mxu0 0
      %1719 = vmatmul.mubr.bf16.gmra.mrb[0].mxu0 %v1629
      %v1720 = vpop.f32.mrb[0].mxu0
      %v1721 = vadd.f32 0.0, %v1720
      %v1722 = vpop.f32.mrb[0].mxu0
      %v1723 = vpop.f32.mrb[0].mxu0
      %v1724 = vadd.f32 0.0, %v1723
      %v1725 = vpop.f32.mrb[0].mxu0
      %1726 = vmatprep.mubr.bf16.mxu0 0
      %1727 = vmatmul.mubr.bf16.gmra.mrb[0].mxu0 %v1632
      %v1728 = vpop.f32.mrb[0].mxu0
      %v1729 = vadd.f32 0.0, %v1728
      %v1730 = vpop.f32.mrb[0].mxu0
      %v1731 = vpop.f32.mrb[0].mxu0
      %v1732 = vadd.f32 0.0, %v1731
      %v1733 = vpop.f32.mrb[0].mxu0
      %1734 = vdwg.mxu0
      %v1735 = vmul.f32 %v1673, %v1303
      %v1736 = vmul.f32 %v1676, %v1304
      %v1737 = vmul.f32 %v1681, %v1305
      %v1738 = vmul.f32 %v1684, %v1306
      %v1739 = vmul.f32 %v1689, %v1307
      %v1740 = vmul.f32 %v1692, %v1308
      %v1741 = vmul.f32 %v1697, %v1309
      %v1742 = vmul.f32 %v1700, %v1310
      %v1743 = vmul.f32 %v1705, %v1311
      %v1744 = vmul.f32 %v1708, %v1312
      %v1745 = vmul.f32 %v1713, %v1313
      %v1746 = vmul.f32 %v1716, %v1314
      %v1747 = vmul.f32 %v1721, %v1315
      %v1748 = vmul.f32 %v1724, %v1316
      %v1749 = vmul.f32 %v1729, %v1317
      %v1750 = vmul.f32 %v1732, %v1318
      %v1751 = vadd.f32 %v1241, %v1735
      %v1752 = vadd.f32 %v1244, %v1736
      %v1753 = vadd.f32 %v1249, %v1737
      %v1754 = vadd.f32 %v1252, %v1738
      %v1755 = vadd.f32 %v1257, %v1739
      %v1756 = vadd.f32 %v1260, %v1740
      %v1757 = vadd.f32 %v1265, %v1741
      %v1758 = vadd.f32 %v1268, %v1742
      %v1759 = vadd.f32 %v1273, %v1743
      %v1760 = vadd.f32 %v1276, %v1744
      %v1761 = vadd.f32 %v1281, %v1745
      %v1762 = vadd.f32 %v1284, %v1746
      %v1763 = vadd.f32 %v1289, %v1747
      %v1764 = vadd.f32 %v1292, %v1748
      %v1765 = vadd.f32 %v1297, %v1749
      %v1766 = vadd.f32 %v1300, %v1750
      %v1767 = vpack.c.bf16 %v531, %v530
      %v1768 = vpack.c.bf16 %v1752, %v1751
      %v1769 = vpack.c.bf16 %v533, %v532
      %v1770 = vpack.c.bf16 %v1754, %v1753
      %v1771 = vpack.c.bf16 %v535, %v534
      %v1772 = vpack.c.bf16 %v1756, %v1755
      %v1773 = vpack.c.bf16 %v537, %v536
      %v1774 = vpack.c.bf16 %v1758, %v1757
      %v1775 = vpack.c.bf16 %v539, %v538
      %v1776 = vpack.c.bf16 %v1760, %v1759
      %v1777 = vpack.c.bf16 %v541, %v540
      %v1778 = vpack.c.bf16 %v1762, %v1761
      %v1779 = vpack.c.bf16 %v543, %v542
      %v1780 = vpack.c.bf16 %v1764, %v1763
      %v1781 = vpack.c.bf16 %v545, %v544
      %v1782 = vpack.c.bf16 %v1766, %v1765
      %v1783 = vld [vmem:[%s9] sm:$0xf]
      %v1784 = vld [vmem:[%s9 + $0x4] sm:$0xf]
      %v1785 = vld [vmem:[%s9 + $0x8] sm:$0xf]
      %v1786 = vld [vmem:[%s9 + $0xc] sm:$0xf]
      %v1787 = vld [vmem:[%s9 + $0x10] sm:$0xf]
      %v1788 = vld [vmem:[%s9 + $0x14] sm:$0xf]
      %v1789 = vld [vmem:[%s9 + $0x18] sm:$0xf]
      %v1790 = vld [vmem:[%s9 + $0x1c] sm:$0xf]
      %v1791 = vld [vmem:[%s9 + $0x20] sm:$0xf]
      %v1792 = vld [vmem:[%s9 + $0x24] sm:$0xf]
      %v1793 = vld [vmem:[%s9 + $0x28] sm:$0xf]
      %v1794 = vld [vmem:[%s9 + $0x2c] sm:$0xf]
      %v1795 = vld [vmem:[%s9 + $0x30] sm:$0xf]
      %v1796 = vld [vmem:[%s9 + $0x34] sm:$0xf]
      %v1797 = vld [vmem:[%s9 + $0x38] sm:$0xf]
      %v1798 = vld [vmem:[%s9 + $0x3c] sm:$0xf]
      %v1799 = vld [vmem:[%s9 + $0x40] sm:$0xf]
      %v1800 = vld [vmem:[%s9 + $0x44] sm:$0xf]
      %v1801 = vld [vmem:[%s9 + $0x48] sm:$0xf]
      %v1802 = vld [vmem:[%s9 + $0x4c] sm:$0xf]
      %v1803 = vld [vmem:[%s9 + $0x50] sm:$0xf]
      %v1804 = vld [vmem:[%s9 + $0x54] sm:$0xf]
      %v1805 = vld [vmem:[%s9 + $0x58] sm:$0xf]
      %v1806 = vld [vmem:[%s9 + $0x5c] sm:$0xf]
      %v1807 = vld [vmem:[%s9 + $0x60] sm:$0xf]
      %v1808 = vld [vmem:[%s9 + $0x64] sm:$0xf]
      %v1809 = vld [vmem:[%s9 + $0x68] sm:$0xf]
      %v1810 = vld [vmem:[%s9 + $0x6c] sm:$0xf]
      %v1811 = vld [vmem:[%s9 + $0x70] sm:$0xf]
      %v1812 = vld [vmem:[%s9 + $0x74] sm:$0xf]
      %v1813 = vld [vmem:[%s9 + $0x78] sm:$0xf]
      %v1814 = vld [vmem:[%s9 + $0x7c] sm:$0xf]
      %v1815 = vld [vmem:[%s10] sm:$0x1]
      %v1817 = vlaneseq
      %v1818 = vshrl.u32 %v1817, 7
      %v1819 = vsub.s32 0, %v1818
      %v1820 = vrot.slane %v1815, %v1819
      %v1854 = vunpack.c.l.b16 %v1783
      %v1855 = vunpack.c.l.b16 %v1784
      %v1856 = vunpack.c.l.b16 %v1785
      %v1857 = vunpack.c.l.b16 %v1786
      %v1858 = vunpack.c.l.b16 %v1787
      %v1859 = vunpack.c.l.b16 %v1788
      %v1860 = vunpack.c.l.b16 %v1789
      %v1861 = vunpack.c.l.b16 %v1790
      %v1862 = vunpack.c.l.b16 %v1791
      %v1863 = vunpack.c.l.b16 %v1792
      %v1864 = vunpack.c.l.b16 %v1793
      %v1865 = vunpack.c.l.b16 %v1794
      %v1866 = vunpack.c.l.b16 %v1795
      %v1867 = vunpack.c.l.b16 %v1796
      %v1868 = vunpack.c.l.b16 %v1797
      %v1869 = vunpack.c.l.b16 %v1798
      %v1870 = vunpack.c.l.b16 %v1799
      %v1871 = vunpack.c.l.b16 %v1800
      %v1872 = vunpack.c.l.b16 %v1801
      %v1873 = vunpack.c.l.b16 %v1802
      %v1874 = vunpack.c.l.b16 %v1803
      %v1875 = vunpack.c.l.b16 %v1804
      %v1876 = vunpack.c.l.b16 %v1805
      %v1877 = vunpack.c.l.b16 %v1806
      %v1878 = vunpack.c.l.b16 %v1807
      %v1879 = vunpack.c.l.b16 %v1808
      %v1880 = vunpack.c.l.b16 %v1809
      %v1881 = vunpack.c.l.b16 %v1810
      %v1882 = vunpack.c.l.b16 %v1811
      %v1883 = vunpack.c.l.b16 %v1812
      %v1884 = vunpack.c.l.b16 %v1813
      %v1885 = vunpack.c.l.b16 %v1814
      %v1886 = vpack.c.b16 %v1855, %v1854
      %v1887 = vpack.c.b16 %v1857, %v1856
      %v1888 = vpack.c.b16 %v1859, %v1858
      %v1889 = vpack.c.b16 %v1861, %v1860
      %v1890 = vpack.c.b16 %v1863, %v1862
      %v1891 = vpack.c.b16 %v1865, %v1864
      %v1892 = vpack.c.b16 %v1867, %v1866
      %v1893 = vpack.c.b16 %v1869, %v1868
      %v1894 = vpack.c.b16 %v1871, %v1870
      %v1895 = vpack.c.b16 %v1873, %v1872
      %v1896 = vpack.c.b16 %v1875, %v1874
      %v1897 = vpack.c.b16 %v1877, %v1876
      %v1898 = vpack.c.b16 %v1879, %v1878
      %v1899 = vpack.c.b16 %v1881, %v1880
      %v1900 = vpack.c.b16 %v1883, %v1882
      %v1901 = vpack.c.b16 %v1885, %v1884
      %1918 = vmatprep.subr.bf16.mxu0 0
      %1919 = vmatpush1.bf16.msra.mxu0 %v1886
      %1920 = vmatprep.subr.bf16.mxu0 0
      %1921 = vmatpush1.bf16.msra.mxu0 %v1887
      %1922 = vmatprep.subr.bf16.mxu0 0
      %1923 = vmatpush1.bf16.msra.mxu0 %v1888
      %1924 = vmatprep.subr.bf16.mxu0 0
      %1925 = vmatpush1.bf16.msra.mxu0 %v1889
      %1926 = vmatprep.subr.bf16.mxu0 0
      %1927 = vmatpush1.bf16.msra.mxu0 %v1890
      %1928 = vmatprep.subr.bf16.mxu0 0
      %1929 = vmatpush1.bf16.msra.mxu0 %v1891
      %1930 = vmatprep.subr.bf16.mxu0 0
      %1931 = vmatpush1.bf16.msra.mxu0 %v1892
      %1932 = vmatprep.subr.bf16.mxu0 0
      %1933 = vmatpush1.bf16.msra.mxu0 %v1893
      %1934 = vmatprep.subr.bf16.mxu0 0
      %1935 = vmatpush1.bf16.msra.mxu0 %v1894
      %1936 = vmatprep.subr.bf16.mxu0 0
      %1937 = vmatpush1.bf16.msra.mxu0 %v1895
      %1938 = vmatprep.subr.bf16.mxu0 0
      %1939 = vmatpush1.bf16.msra.mxu0 %v1896
      %1940 = vmatprep.subr.bf16.mxu0 0
      %1941 = vmatpush1.bf16.msra.mxu0 %v1897
      %1942 = vmatprep.subr.bf16.mxu0 0
      %1943 = vmatpush1.bf16.msra.mxu0 %v1898
      %1944 = vmatprep.subr.bf16.mxu0 0
      %1945 = vmatpush1.bf16.msra.mxu0 %v1899
      %1946 = vmatprep.subr.bf16.mxu0 0
      %1947 = vmatpush1.bf16.msra.mxu0 %v1900
      %1948 = vmatprep.subr.bf16.mxu0 0
      %1949 = vmatpush1.bf16.msra.mxu0 %v1901
      %1950 = vmatprep.mubr.bf16.mxu0 %v1768
      %1951 = vmatmul.mubr.bf16.gmra.mrb[0].mxu0 %v1767
      %v1952 = vpop.f32.mrb[0].mxu0
      %v1953 = vadd.f32 %v1820, %v1952
      %v1954 = vpop.f32.mrb[0].mxu0
      %v1955 = vpop.f32.mrb[0].mxu0
      %v1956 = vadd.f32 %v1820, %v1955
      %v1957 = vpop.f32.mrb[0].mxu0
      %1958 = vmatprep.mubr.bf16.mxu0 %v1770
      %1959 = vmatmul.mubr.bf16.gmra.mrb[0].mxu0 %v1769
      %v1960 = vpop.f32.mrb[0].mxu0
      %v1961 = vadd.f32 %v1820, %v1960
      %v1962 = vpop.f32.mrb[0].mxu0
      %v1963 = vpop.f32.mrb[0].mxu0
      %v1964 = vadd.f32 %v1820, %v1963
      %v1965 = vpop.f32.mrb[0].mxu0
      %1966 = vmatprep.mubr.bf16.mxu0 %v1772
      %1967 = vmatmul.mubr.bf16.gmra.mrb[0].mxu0 %v1771
      %v1968 = vpop.f32.mrb[0].mxu0
      %v1969 = vadd.f32 %v1820, %v1968
      %v1970 = vpop.f32.mrb[0].mxu0
      %v1971 = vpop.f32.mrb[0].mxu0
      %v1972 = vadd.f32 %v1820, %v1971
      %v1973 = vpop.f32.mrb[0].mxu0
      %1974 = vmatprep.mubr.bf16.mxu0 %v1774
      %1975 = vmatmul.mubr.bf16.gmra.mrb[0].mxu0 %v1773
      %v1976 = vpop.f32.mrb[0].mxu0
      %v1977 = vadd.f32 %v1820, %v1976
      %v1978 = vpop.f32.mrb[0].mxu0
      %v1979 = vpop.f32.mrb[0].mxu0
      %v1980 = vadd.f32 %v1820, %v1979
      %v1981 = vpop.f32.mrb[0].mxu0
      %1982 = vmatprep.mubr.bf16.mxu0 %v1776
      %1983 = vmatmul.mubr.bf16.gmra.mrb[0].mxu0 %v1775
      %v1984 = vpop.f32.mrb[0].mxu0
      %v1985 = vadd.f32 %v1820, %v1984
      %v1986 = vpop.f32.mrb[0].mxu0
      %v1987 = vpop.f32.mrb[0].mxu0
      %v1988 = vadd.f32 %v1820, %v1987
      %v1989 = vpop.f32.mrb[0].mxu0
      %1990 = vmatprep.mubr.bf16.mxu0 %v1778
      %1991 = vmatmul.mubr.bf16.gmra.mrb[0].mxu0 %v1777
      %v1992 = vpop.f32.mrb[0].mxu0
      %v1993 = vadd.f32 %v1820, %v1992
      %v1994 = vpop.f32.mrb[0].mxu0
      %v1995 = vpop.f32.mrb[0].mxu0
      %v1996 = vadd.f32 %v1820, %v1995
      %v1997 = vpop.f32.mrb[0].mxu0
      %1998 = vmatprep.mubr.bf16.mxu0 %v1780
      %1999 = vmatmul.mubr.bf16.gmra.mrb[0].mxu0 %v1779
      %v2000 = vpop.f32.mrb[0].mxu0
      %v2001 = vadd.f32 %v1820, %v2000
      %v2002 = vpop.f32.mrb[0].mxu0
      %v2003 = vpop.f32.mrb[0].mxu0
      %v2004 = vadd.f32 %v1820, %v2003
      %v2005 = vpop.f32.mrb[0].mxu0
      %2006 = vmatprep.mubr.bf16.mxu0 %v1782
      %2007 = vmatmul.mubr.bf16.gmra.mrb[0].mxu0 %v1781
      %v2008 = vpop.f32.mrb[0].mxu0
      %v2009 = vadd.f32 %v1820, %v2008
      %v2010 = vpop.f32.mrb[0].mxu0
      %v2011 = vpop.f32.mrb[0].mxu0
      %v2012 = vadd.f32 %v1820, %v2011
      %v2013 = vpop.f32.mrb[0].mxu0
      %2014 = vdwg.mxu0
      %2015 = vst [vmem:[%s521] sm:$0xff] %v1953
      %2016 = vst [vmem:[%s521 + $0x8] sm:$0xff] %v1956
      %2017 = vst [vmem:[%s521 + $0x10] sm:$0xff] %v1961
      %2018 = vst [vmem:[%s521 + $0x18] sm:$0xff] %v1964
      %2019 = vst [vmem:[%s521 + $0x20] sm:$0xff] %v1969
      %2020 = vst [vmem:[%s521 + $0x28] sm:$0xff] %v1972
      %2021 = vst [vmem:[%s521 + $0x30] sm:$0xff] %v1977
      %2022 = vst [vmem:[%s521 + $0x38] sm:$0xff] %v1980
      %2023 = vst [vmem:[%s521 + $0x40] sm:$0xff] %v1985
      %2024 = vst [vmem:[%s521 + $0x48] sm:$0xff] %v1988
      %2025 = vst [vmem:[%s521 + $0x50] sm:$0xff] %v1993
      %2026 = vst [vmem:[%s521 + $0x58] sm:$0xff] %v1996
      %2027 = vst [vmem:[%s521 + $0x60] sm:$0xff] %v2001
      %2028 = vst [vmem:[%s521 + $0x68] sm:$0xff] %v2004
      %2029 = vst [vmem:[%s521 + $0x70] sm:$0xff] %v2009
      %2030 = vst [vmem:[%s521 + $0x78] sm:$0xff] %v2012
      %v2031 = vld [vmem:[%s515] sm:$0xff]
      %v2032 = vld [vmem:[%s515 + $0x8] sm:$0xff]
      %v2033 = vld [vmem:[%s515 + $0x10] sm:$0xff]
      %v2034 = vld [vmem:[%s515 + $0x18] sm:$0xff]
      %v2035 = vld [vmem:[%s515 + $0x20] sm:$0xff]
      %v2036 = vld [vmem:[%s515 + $0x28] sm:$0xff]
      %v2037 = vld [vmem:[%s515 + $0x30] sm:$0xff]
      %v2038 = vld [vmem:[%s515 + $0x38] sm:$0xff]
      %v2039 = vld [vmem:[%s515 + $0x40] sm:$0xff]
      %v2040 = vld [vmem:[%s515 + $0x48] sm:$0xff]
      %v2041 = vld [vmem:[%s515 + $0x50] sm:$0xff]
      %v2042 = vld [vmem:[%s515 + $0x58] sm:$0xff]
      %v2043 = vld [vmem:[%s515 + $0x60] sm:$0xff]
      %v2044 = vld [vmem:[%s515 + $0x68] sm:$0xff]
      %v2045 = vld [vmem:[%s515 + $0x70] sm:$0xff]
      %v2046 = vld [vmem:[%s515 + $0x78] sm:$0xff]
      %2048 = vset.pattern.permute.xlu0 0
      %2049 = vperm.xlu0 %2048, %v2031
      %v2050 = vpop.permute.xlu0 %2049
      %2053 = vset.pattern.permute.xlu0 0
      %2054 = vperm.xlu0 %2053, %v2032
      %v2055 = vpop.permute.xlu0 %2054
      %2058 = vset.pattern.permute.xlu0 0
      %2059 = vperm.xlu0 %2058, %v2033
      %v2060 = vpop.permute.xlu0 %2059
      %2063 = vset.pattern.permute.xlu0 0
      %2064 = vperm.xlu0 %2063, %v2034
      %v2065 = vpop.permute.xlu0 %2064
      %2068 = vset.pattern.permute.xlu0 0
      %2069 = vperm.xlu0 %2068, %v2035
      %v2070 = vpop.permute.xlu0 %2069
      %2073 = vset.pattern.permute.xlu0 0
      %2074 = vperm.xlu0 %2073, %v2036
      %v2075 = vpop.permute.xlu0 %2074
      %2078 = vset.pattern.permute.xlu0 0
      %2079 = vperm.xlu0 %2078, %v2037
      %v2080 = vpop.permute.xlu0 %2079
      %2083 = vset.pattern.permute.xlu0 0
      %2084 = vperm.xlu0 %2083, %v2038
      %v2085 = vpop.permute.xlu0 %2084
      %2088 = vset.pattern.permute.xlu0 0
      %2089 = vperm.xlu0 %2088, %v2039
      %v2090 = vpop.permute.xlu0 %2089
      %2093 = vset.pattern.permute.xlu0 0
      %2094 = vperm.xlu0 %2093, %v2040
      %v2095 = vpop.permute.xlu0 %2094
      %2098 = vset.pattern.permute.xlu0 0
      %2099 = vperm.xlu0 %2098, %v2041
      %v2100 = vpop.permute.xlu0 %2099
      %2103 = vset.pattern.permute.xlu0 0
      %2104 = vperm.xlu0 %2103, %v2042
      %v2105 = vpop.permute.xlu0 %2104
      %2108 = vset.pattern.permute.xlu0 0
      %2109 = vperm.xlu0 %2108, %v2043
      %v2110 = vpop.permute.xlu0 %2109
      %2113 = vset.pattern.permute.xlu0 0
      %2114 = vperm.xlu0 %2113, %v2044
      %v2115 = vpop.permute.xlu0 %2114
      %2118 = vset.pattern.permute.xlu0 0
      %2119 = vperm.xlu0 %2118, %v2045
      %v2120 = vpop.permute.xlu0 %2119
      %2123 = vset.pattern.permute.xlu0 0
      %2124 = vperm.xlu0 %2123, %v2046
      %v2125 = vpop.permute.xlu0 %2124
      %v2127 = vmul.f32 %v2050, %v1953
      %v2128 = vmul.f32 %v2055, %v1956
      %v2129 = vmul.f32 %v2060, %v1961
      %v2130 = vmul.f32 %v2065, %v1964
      %v2131 = vmul.f32 %v2070, %v1969
      %v2132 = vmul.f32 %v2075, %v1972
      %v2133 = vmul.f32 %v2080, %v1977
      %v2134 = vmul.f32 %v2085, %v1980
      %v2135 = vmul.f32 %v2090, %v1985
      %v2136 = vmul.f32 %v2095, %v1988
      %v2137 = vmul.f32 %v2100, %v1993
      %v2138 = vmul.f32 %v2105, %v1996
      %v2139 = vmul.f32 %v2110, %v2001
      %v2140 = vmul.f32 %v2115, %v2004
      %v2141 = vmul.f32 %v2120, %v2009
      %v2142 = vmul.f32 %v2125, %v2012
      %v2143 = vpack.c.bf16 %v2128, %v2127
      %v2144 = vpack.c.bf16 %v2130, %v2129
      %v2145 = vpack.c.bf16 %v2132, %v2131
      %v2146 = vpack.c.bf16 %v2134, %v2133
      %v2147 = vpack.c.bf16 %v2136, %v2135
      %v2148 = vpack.c.bf16 %v2138, %v2137
      %v2149 = vpack.c.bf16 %v2140, %v2139
      %v2150 = vpack.c.bf16 %v2142, %v2141
      %v2159 = vunpack.c.l.b16 %v2143
      %v2160 = vunpack.c.h.b16 %v2143
      %v2161 = vunpack.c.l.b16 %v2144
      %v2162 = vunpack.c.h.b16 %v2144
      %v2163 = vunpack.c.l.b16 %v2145
      %v2164 = vunpack.c.h.b16 %v2145
      %v2165 = vunpack.c.l.b16 %v2146
      %v2166 = vunpack.c.h.b16 %v2146
      %v2167 = vunpack.c.l.b16 %v2147
      %v2168 = vunpack.c.h.b16 %v2147
      %v2169 = vunpack.c.l.b16 %v2148
      %v2170 = vunpack.c.h.b16 %v2148
      %v2171 = vunpack.c.l.b16 %v2149
      %v2172 = vunpack.c.h.b16 %v2149
      %v2173 = vunpack.c.l.b16 %v2150
      %v2174 = vunpack.c.h.b16 %v2150
      %v2175 = vpack.c.b16 %v2159, %v2159
      %v2176 = vpack.c.b16 %v2160, %v2160
      %v2177 = vpack.c.b16 %v2161, %v2161
      %v2178 = vpack.c.b16 %v2162, %v2162
      %v2179 = vpack.c.b16 %v2163, %v2163
      %v2180 = vpack.c.b16 %v2164, %v2164
      %v2181 = vpack.c.b16 %v2165, %v2165
      %v2182 = vpack.c.b16 %v2166, %v2166
      %v2183 = vpack.c.b16 %v2167, %v2167
      %v2184 = vpack.c.b16 %v2168, %v2168
      %v2185 = vpack.c.b16 %v2169, %v2169
      %v2186 = vpack.c.b16 %v2170, %v2170
      %v2187 = vpack.c.b16 %v2171, %v2171
      %v2188 = vpack.c.b16 %v2172, %v2172
      %v2189 = vpack.c.b16 %v2173, %v2173
      %v2190 = vpack.c.b16 %v2174, %v2174
      %2207 = vst [vmem:[%s527] sm:$0xf] %v2175
      %2208 = vst [vmem:[%s527 + $0x4] sm:$0xf] %v2176
      %2209 = vst [vmem:[%s527 + $0x8] sm:$0xf] %v2177
      %2210 = vst [vmem:[%s527 + $0xc] sm:$0xf] %v2178
      %2211 = vst [vmem:[%s527 + $0x10] sm:$0xf] %v2179
      %2212 = vst [vmem:[%s527 + $0x14] sm:$0xf] %v2180
      %2213 = vst [vmem:[%s527 + $0x18] sm:$0xf] %v2181
      %2214 = vst [vmem:[%s527 + $0x1c] sm:$0xf] %v2182
      %2215 = vst [vmem:[%s527 + $0x20] sm:$0xf] %v2183
      %2216 = vst [vmem:[%s527 + $0x24] sm:$0xf] %v2184
      %2217 = vst [vmem:[%s527 + $0x28] sm:$0xf] %v2185
      %2218 = vst [vmem:[%s527 + $0x2c] sm:$0xf] %v2186
      %2219 = vst [vmem:[%s527 + $0x30] sm:$0xf] %v2187
      %2220 = vst [vmem:[%s527 + $0x34] sm:$0xf] %v2188
      %2221 = vst [vmem:[%s527 + $0x38] sm:$0xf] %v2189
      %2222 = vst [vmem:[%s527 + $0x3c] sm:$0xf] %v2190
      %s2223 = smul.u32 16, %s26
      %p2224 = scmp.lt.s32.totalorder %s2223, 31
      %s2225 = scalar_select %p2224, %s2223, 31
      %s2226 = smul.addr %s2225, 8
      %s2227 = scalar_lea.vmem %s13, %s2226
      %s2228 = smul.u32 16, %s26
      %p2229 = scmp.lt.s32.totalorder %s2228, 31
      %s2230 = scalar_select %p2229, %s2228, 31
      %s2231 = smul.addr %s2230, 4
      %s2232 = scalar_lea.vmem %s14, %s2231
      // Predicated region
      $region73: #{gcnnm_forward.2} parent=71 // pred_check
        %p2233 = pneg %p332
      $region74: #{gcnnm_forward.2} parent=71 // pred_check_branch
        %2235 = sbr.rel (%p2233) target = $region76
      $region75: #{gcnnm_forward.2} parent=71 // pred_region
        %s2236 = smul.u32 16, %s26
      $region76: #{gcnnm_forward.2} parent=71 // pred_fallthru
        _
      // Predicated region
      $region77: #{gcnnm_forward.2} parent=71 // pred_check
        %p2237 = pneg %p358
      $region78: #{gcnnm_forward.2} parent=71 // pred_check_branch
        %2239 = sbr.rel (%p2237) target = $region80
      $region79: #{gcnnm_forward.2} parent=71 // pred_region
        %s2240 = smul.u32 16, %s26
      $region80: #{gcnnm_forward.2} parent=71 // pred_fallthru
        _
    $region72: #{gcnnm_forward.2} parent=5 // pred_fallthru
      _
    %p2241 = scmp.le.s32.totalorder 2, %s21
    // Predicated region
    $region81: #{gcnnm_forward.2} parent=5 // pred_check
      %p2242 = pneg %p2241
    $region82: #{gcnnm_forward.2} parent=5 // pred_check_branch
      %2244 = sbr.rel (%p2242) target = $region84
    $region83: #{gcnnm_forward.2} parent=5 // pred_region
      %s2245 = ssub.s32 %s21, 2
      // Predicated region
      $region85: #{gcnnm_forward.2} parent=83 // pred_check
        %p2246 = pneg %p338
      $region86: #{gcnnm_forward.2} parent=83 // pred_check_branch
        %2248 = sbr.rel (%p2246) target = $region88
      $region87: #{gcnnm_forward.2} parent=83 // pred_region
        %s2249 = smul.u32 16, %s27
        %p2250 = scmp.lt.s32.totalorder %s2249, 31
        %s2251 = scalar_select %p2250, %s2249, 31
        %s2252 = smul.addr %s2251, 8
        %s2253 = scalar_lea.vmem %s13, %s2252
      $region88: #{gcnnm_forward.2} parent=83 // pred_fallthru
        _
      // Predicated region
      $region89: #{gcnnm_forward.2} parent=83 // pred_check
        %p2254 = pneg %p364
      $region90: #{gcnnm_forward.2} parent=83 // pred_check_branch
        %2256 = sbr.rel (%p2254) target = $region92
      $region91: #{gcnnm_forward.2} parent=83 // pred_region
        %s2257 = smul.u32 16, %s27
        %p2258 = scmp.lt.s32.totalorder %s2257, 31
        %s2259 = scalar_select %p2258, %s2257, 31
        %s2260 = smul.addr %s2259, 4
        %s2261 = scalar_lea.vmem %s14, %s2260
      $region92: #{gcnnm_forward.2} parent=83 // pred_fallthru
        _
    $region84: #{gcnnm_forward.2} parent=5 // pred_fallthru
      _
  $region6: #{gcnnm_forward.2} parent=0 // loop_footer
    %s25 = sadd.s32 1, %s21
  $region7: #{gcnnm_forward.2} parent=0 // loop_footer_branch
    %20 = sbr.rel target = $region3
  $region8: #{gcnnm_forward.2} parent=0 // loop_exit
    _

// kernel: gcnnm_forward.3
$region0: #{gcnnm_forward.3}
  #allocation0 [shape = 'u32[]', space=smem, size = 0x4, offset = 0x4, fixed_abs, tag = 'smem constant byte address 0x4 - core index']
  #allocation1 [shape = 'u32[144,128]{1,0:T(1,128)}', space=vmem, size = 0x12000, scoped, tag = 'internal scratch']
  %s0 = inlined_call_operand.vmem [shape: f32[256,128], index: 0, kind: input, shape index: {}, may-alias: {0,13}]
  %s1 = inlined_call_operand.vmem [shape: bf16[256,256], index: 1, kind: input, shape index: {}]
  %s2 = inlined_call_operand.vmem [shape: bf16[256,128], index: 2, kind: input, shape index: {}]
  %s3 = inlined_call_operand.vmem [shape: f32[1,128], index: 3, kind: input, shape index: {}]
  %s4 = inlined_call_operand.vmem [shape: f32[1,128], index: 4, kind: input, shape index: {}]
  %s5 = inlined_call_operand.vmem [shape: bf16[128,256], index: 5, kind: input, shape index: {}]
  %s6 = inlined_call_operand.vmem [shape: f32[1,256], index: 6, kind: input, shape index: {}]
  %s7 = inlined_call_operand.vmem [shape: bf16[128,128], index: 7, kind: input, shape index: {}]
  %s8 = inlined_call_operand.vmem [shape: f32[1,128], index: 8, kind: input, shape index: {}]
  %s9 = inlined_call_operand.vmem [shape: bf16[128,128], index: 9, kind: input, shape index: {}]
  %s10 = inlined_call_operand.vmem [shape: f32[1,128], index: 10, kind: input, shape index: {}]
  %s11 = inlined_call_operand.vmem [shape: bf16[128,8], index: 11, kind: input, shape index: {}]
  %s12 = inlined_call_operand.vmem [shape: bf16[8,128], index: 12, kind: input, shape index: {}]
  %s13 = inlined_call_operand.vmem [shape: f32[256,128], index: 13, kind: output, shape index: {}, may-alias: {0,13}]
  %s14 = sld [smem:[#allocation0]]
  $region85: #{gcnnm_forward.3} parent=0
    _
  %s16 = ssub.s32 1, %s14
  %s17 = scalar_select 0, %s16, %s14
  loop: start=0, step=1, limit=4
  $region2: #{gcnnm_forward.3} parent=0 // loop_pre_header
    _
  $region3: #{gcnnm_forward.3} parent=0 // loop_header
    %s19 = sphi 0, %s23
    %p20 = scmp.ge.s32.totalorder %s19, 4
    %s29 = sphi 0, %s31
    %s32 = sphi 0, %s29
    %s33 = sphi 0, %s32
    %s49 = sphi 0, %s33
    %s55 = sphi 0, %s57
    %s58 = sphi 0, %s55
    %s59 = sphi 0, %s58
    %s75 = sphi 0, %s59
    %s79 = sphi 0, %s79
    %s81 = sphi 0, %s79
    %s82 = sphi 0, %s81
    %s96 = sphi 0, %s82
    %s100 = sphi 0, %s100
    %s102 = sphi 0, %s100
    %s103 = sphi 0, %s102
    %s117 = sphi 0, %s103
    %s121 = sphi 0, %s121
    %s123 = sphi 0, %s121
    %s124 = sphi 0, %s123
    %s138 = sphi 0, %s124
    %s142 = sphi 0, %s142
    %s144 = sphi 0, %s142
    %s145 = sphi 0, %s144
    %s159 = sphi 0, %s145
    %s163 = sphi 0, %s163
    %s165 = sphi 0, %s163
    %s166 = sphi 0, %s165
    %s180 = sphi 0, %s166
    %s184 = sphi 0, %s184
    %s186 = sphi 0, %s184
    %s187 = sphi 0, %s186
    %s201 = sphi 0, %s187
    %s205 = sphi 0, %s205
    %s207 = sphi 0, %s205
    %s208 = sphi 0, %s207
    %s222 = sphi 0, %s208
    %s226 = sphi 0, %s226
    %s228 = sphi 0, %s226
    %s229 = sphi 0, %s228
    %s243 = sphi 0, %s229
    %s247 = sphi 0, %s247
    %s249 = sphi 0, %s247
    %s250 = sphi 0, %s249
    %s264 = sphi 0, %s250
    %s268 = sphi 0, %s268
    %s270 = sphi 0, %s268
    %s271 = sphi 0, %s270
    %s285 = sphi 0, %s271
    %s289 = sphi 0, %s289
    %s291 = sphi 0, %s289
    %s292 = sphi 0, %s291
    %s306 = sphi 0, %s292
    %s312 = sphi 0, %s314
    %s315 = sphi 0, %s312
    %s316 = sphi 0, %s315
    %s332 = sphi 0, %s316
  $region4: #{gcnnm_forward.3} parent=0 // loop_header_branch
    %22 = sbr.rel (%p20) target = $region8
  $region5: #{gcnnm_forward.3} parent=0 // loop_body
    %s24 = ssub.s32 %s19, 1
    %s25 = ssub.s32 %s19, 2
    %s26 = sadd.s32 %s19, 1
    %s27 = ssub.s32 %s19, %s26
    %p28 = scmp.eq.s32.totalorder %s27, 0
    %s30 = sadd.s32 %s29, 1
    %s31 = scalar_select %p28, %s29, %s30
    %p34 = pneg %p28
    %p35 = scmp.eq.s32.totalorder %s19, 1
    %p36 = por %p34, %p35
    %p37 = scmp.ne.s32.totalorder %s29, %s32
    %p38 = scmp.eq.s32.totalorder %s19, 0
    %p39 = por %p37, %p38
    %p40 = scmp.ne.s32.totalorder %s29, %s32
    %p41 = scmp.eq.s32.totalorder %s24, 1
    %p42 = por %p40, %p41
    %p43 = scmp.ne.s32.totalorder %s32, %s33
    %p44 = scmp.eq.s32.totalorder %s24, 0
    %p45 = por %p43, %p44
    %p46 = scmp.ne.s32.totalorder %s32, %s33
    %p47 = scmp.eq.s32.totalorder %s25, 1
    %p48 = por %p46, %p47
    %p50 = scmp.ne.s32.totalorder %s33, %s49
    %p51 = scmp.eq.s32.totalorder %s25, 0
    %p52 = por %p50, %p51
    %s53 = ssub.s32 %s19, %s26
    %p54 = scmp.eq.s32.totalorder %s53, 0
    %s56 = sadd.s32 %s55, 1
    %s57 = scalar_select %p54, %s55, %s56
    %p60 = pneg %p54
    %p61 = scmp.eq.s32.totalorder %s19, 1
    %p62 = por %p60, %p61
    %p63 = scmp.ne.s32.totalorder %s55, %s58
    %p64 = scmp.eq.s32.totalorder %s19, 0
    %p65 = por %p63, %p64
    %p66 = scmp.ne.s32.totalorder %s55, %s58
    %p67 = scmp.eq.s32.totalorder %s24, 1
    %p68 = por %p66, %p67
    %p69 = scmp.ne.s32.totalorder %s58, %s59
    %p70 = scmp.eq.s32.totalorder %s24, 0
    %p71 = por %p69, %p70
    %p72 = scmp.ne.s32.totalorder %s58, %s59
    %p73 = scmp.eq.s32.totalorder %s25, 1
    %p74 = por %p72, %p73
    %p76 = scmp.ne.s32.totalorder %s59, %s75
    %p77 = scmp.eq.s32.totalorder %s25, 0
    %p78 = por %p76, %p77
    %s80 = sadd.s32 %s79, 1
    %p83 = scmp.eq.s32.totalorder %s19, 1
    %p84 = scmp.ne.s32.totalorder %s79, %s81
    %p85 = scmp.eq.s32.totalorder %s19, 0
    %p86 = por %p84, %p85
    %p87 = scmp.ne.s32.totalorder %s79, %s81
    %p88 = scmp.eq.s32.totalorder %s24, 1
    %p89 = por %p87, %p88
    %p90 = scmp.ne.s32.totalorder %s81, %s82
    %p91 = scmp.eq.s32.totalorder %s24, 0
    %p92 = por %p90, %p91
    %p93 = scmp.ne.s32.totalorder %s81, %s82
    %p94 = scmp.eq.s32.totalorder %s25, 1
    %p95 = por %p93, %p94
    %p97 = scmp.ne.s32.totalorder %s82, %s96
    %p98 = scmp.eq.s32.totalorder %s25, 0
    %p99 = por %p97, %p98
    %s101 = sadd.s32 %s100, 1
    %p104 = scmp.eq.s32.totalorder %s19, 1
    %p105 = scmp.ne.s32.totalorder %s100, %s102
    %p106 = scmp.eq.s32.totalorder %s19, 0
    %p107 = por %p105, %p106
    %p108 = scmp.ne.s32.totalorder %s100, %s102
    %p109 = scmp.eq.s32.totalorder %s24, 1
    %p110 = por %p108, %p109
    %p111 = scmp.ne.s32.totalorder %s102, %s103
    %p112 = scmp.eq.s32.totalorder %s24, 0
    %p113 = por %p111, %p112
    %p114 = scmp.ne.s32.totalorder %s102, %s103
    %p115 = scmp.eq.s32.totalorder %s25, 1
    %p116 = por %p114, %p115
    %p118 = scmp.ne.s32.totalorder %s103, %s117
    %p119 = scmp.eq.s32.totalorder %s25, 0
    %p120 = por %p118, %p119
    %s122 = sadd.s32 %s121, 1
    %p125 = scmp.eq.s32.totalorder %s19, 1
    %p126 = scmp.ne.s32.totalorder %s121, %s123
    %p127 = scmp.eq.s32.totalorder %s19, 0
    %p128 = por %p126, %p127
    %p129 = scmp.ne.s32.totalorder %s121, %s123
    %p130 = scmp.eq.s32.totalorder %s24, 1
    %p131 = por %p129, %p130
    %p132 = scmp.ne.s32.totalorder %s123, %s124
    %p133 = scmp.eq.s32.totalorder %s24, 0
    %p134 = por %p132, %p133
    %p135 = scmp.ne.s32.totalorder %s123, %s124
    %p136 = scmp.eq.s32.totalorder %s25, 1
    %p137 = por %p135, %p136
    %p139 = scmp.ne.s32.totalorder %s124, %s138
    %p140 = scmp.eq.s32.totalorder %s25, 0
    %p141 = por %p139, %p140
    %s143 = sadd.s32 %s142, 1
    %p146 = scmp.eq.s32.totalorder %s19, 1
    %p147 = scmp.ne.s32.totalorder %s142, %s144
    %p148 = scmp.eq.s32.totalorder %s19, 0
    %p149 = por %p147, %p148
    %p150 = scmp.ne.s32.totalorder %s142, %s144
    %p151 = scmp.eq.s32.totalorder %s24, 1
    %p152 = por %p150, %p151
    %p153 = scmp.ne.s32.totalorder %s144, %s145
    %p154 = scmp.eq.s32.totalorder %s24, 0
    %p155 = por %p153, %p154
    %p156 = scmp.ne.s32.totalorder %s144, %s145
    %p157 = scmp.eq.s32.totalorder %s25, 1
    %p158 = por %p156, %p157
    %p160 = scmp.ne.s32.totalorder %s145, %s159
    %p161 = scmp.eq.s32.totalorder %s25, 0
    %p162 = por %p160, %p161
    %s164 = sadd.s32 %s163, 1
    %p167 = scmp.eq.s32.totalorder %s19, 1
    %p168 = scmp.ne.s32.totalorder %s163, %s165
    %p169 = scmp.eq.s32.totalorder %s19, 0
    %p170 = por %p168, %p169
    %p171 = scmp.ne.s32.totalorder %s163, %s165
    %p172 = scmp.eq.s32.totalorder %s24, 1
    %p173 = por %p171, %p172
    %p174 = scmp.ne.s32.totalorder %s165, %s166
    %p175 = scmp.eq.s32.totalorder %s24, 0
    %p176 = por %p174, %p175
    %p177 = scmp.ne.s32.totalorder %s165, %s166
    %p178 = scmp.eq.s32.totalorder %s25, 1
    %p179 = por %p177, %p178
    %p181 = scmp.ne.s32.totalorder %s166, %s180
    %p182 = scmp.eq.s32.totalorder %s25, 0
    %p183 = por %p181, %p182
    %s185 = sadd.s32 %s184, 1
    %p188 = scmp.eq.s32.totalorder %s19, 1
    %p189 = scmp.ne.s32.totalorder %s184, %s186
    %p190 = scmp.eq.s32.totalorder %s19, 0
    %p191 = por %p189, %p190
    %p192 = scmp.ne.s32.totalorder %s184, %s186
    %p193 = scmp.eq.s32.totalorder %s24, 1
    %p194 = por %p192, %p193
    %p195 = scmp.ne.s32.totalorder %s186, %s187
    %p196 = scmp.eq.s32.totalorder %s24, 0
    %p197 = por %p195, %p196
    %p198 = scmp.ne.s32.totalorder %s186, %s187
    %p199 = scmp.eq.s32.totalorder %s25, 1
    %p200 = por %p198, %p199
    %p202 = scmp.ne.s32.totalorder %s187, %s201
    %p203 = scmp.eq.s32.totalorder %s25, 0
    %p204 = por %p202, %p203
    %s206 = sadd.s32 %s205, 1
    %p209 = scmp.eq.s32.totalorder %s19, 1
    %p210 = scmp.ne.s32.totalorder %s205, %s207
    %p211 = scmp.eq.s32.totalorder %s19, 0
    %p212 = por %p210, %p211
    %p213 = scmp.ne.s32.totalorder %s205, %s207
    %p214 = scmp.eq.s32.totalorder %s24, 1
    %p215 = por %p213, %p214
    %p216 = scmp.ne.s32.totalorder %s207, %s208
    %p217 = scmp.eq.s32.totalorder %s24, 0
    %p218 = por %p216, %p217
    %p219 = scmp.ne.s32.totalorder %s207, %s208
    %p220 = scmp.eq.s32.totalorder %s25, 1
    %p221 = por %p219, %p220
    %p223 = scmp.ne.s32.totalorder %s208, %s222
    %p224 = scmp.eq.s32.totalorder %s25, 0
    %p225 = por %p223, %p224
    %s227 = sadd.s32 %s226, 1
    %p230 = scmp.eq.s32.totalorder %s19, 1
    %p231 = scmp.ne.s32.totalorder %s226, %s228
    %p232 = scmp.eq.s32.totalorder %s19, 0
    %p233 = por %p231, %p232
    %p234 = scmp.ne.s32.totalorder %s226, %s228
    %p235 = scmp.eq.s32.totalorder %s24, 1
    %p236 = por %p234, %p235
    %p237 = scmp.ne.s32.totalorder %s228, %s229
    %p238 = scmp.eq.s32.totalorder %s24, 0
    %p239 = por %p237, %p238
    %p240 = scmp.ne.s32.totalorder %s228, %s229
    %p241 = scmp.eq.s32.totalorder %s25, 1
    %p242 = por %p240, %p241
    %p244 = scmp.ne.s32.totalorder %s229, %s243
    %p245 = scmp.eq.s32.totalorder %s25, 0
    %p246 = por %p244, %p245
    %s248 = sadd.s32 %s247, 1
    %p251 = scmp.eq.s32.totalorder %s19, 1
    %p252 = scmp.ne.s32.totalorder %s247, %s249
    %p253 = scmp.eq.s32.totalorder %s19, 0
    %p254 = por %p252, %p253
    %p255 = scmp.ne.s32.totalorder %s247, %s249
    %p256 = scmp.eq.s32.totalorder %s24, 1
    %p257 = por %p255, %p256
    %p258 = scmp.ne.s32.totalorder %s249, %s250
    %p259 = scmp.eq.s32.totalorder %s24, 0
    %p260 = por %p258, %p259
    %p261 = scmp.ne.s32.totalorder %s249, %s250
    %p262 = scmp.eq.s32.totalorder %s25, 1
    %p263 = por %p261, %p262
    %p265 = scmp.ne.s32.totalorder %s250, %s264
    %p266 = scmp.eq.s32.totalorder %s25, 0
    %p267 = por %p265, %p266
    %s269 = sadd.s32 %s268, 1
    %p272 = scmp.eq.s32.totalorder %s19, 1
    %p273 = scmp.ne.s32.totalorder %s268, %s270
    %p274 = scmp.eq.s32.totalorder %s19, 0
    %p275 = por %p273, %p274
    %p276 = scmp.ne.s32.totalorder %s268, %s270
    %p277 = scmp.eq.s32.totalorder %s24, 1
    %p278 = por %p276, %p277
    %p279 = scmp.ne.s32.totalorder %s270, %s271
    %p280 = scmp.eq.s32.totalorder %s24, 0
    %p281 = por %p279, %p280
    %p282 = scmp.ne.s32.totalorder %s270, %s271
    %p283 = scmp.eq.s32.totalorder %s25, 1
    %p284 = por %p282, %p283
    %p286 = scmp.ne.s32.totalorder %s271, %s285
    %p287 = scmp.eq.s32.totalorder %s25, 0
    %p288 = por %p286, %p287
    %s290 = sadd.s32 %s289, 1
    %p293 = scmp.eq.s32.totalorder %s19, 1
    %p294 = scmp.ne.s32.totalorder %s289, %s291
    %p295 = scmp.eq.s32.totalorder %s19, 0
    %p296 = por %p294, %p295
    %p297 = scmp.ne.s32.totalorder %s289, %s291
    %p298 = scmp.eq.s32.totalorder %s24, 1
    %p299 = por %p297, %p298
    %p300 = scmp.ne.s32.totalorder %s291, %s292
    %p301 = scmp.eq.s32.totalorder %s24, 0
    %p302 = por %p300, %p301
    %p303 = scmp.ne.s32.totalorder %s291, %s292
    %p304 = scmp.eq.s32.totalorder %s25, 1
    %p305 = por %p303, %p304
    %p307 = scmp.ne.s32.totalorder %s292, %s306
    %p308 = scmp.eq.s32.totalorder %s25, 0
    %p309 = por %p307, %p308
    %s310 = ssub.s32 %s19, %s26
    %p311 = scmp.eq.s32.totalorder %s310, 0
    %s313 = sadd.s32 %s312, 1
    %s314 = scalar_select %p311, %s312, %s313
    %p317 = pneg %p311
    %p318 = scmp.eq.s32.totalorder %s19, 1
    %p319 = por %p317, %p318
    %p320 = scmp.ne.s32.totalorder %s312, %s315
    %p321 = scmp.eq.s32.totalorder %s19, 0
    %p322 = por %p320, %p321
    %p323 = scmp.ne.s32.totalorder %s312, %s315
    %p324 = scmp.eq.s32.totalorder %s24, 1
    %p325 = por %p323, %p324
    %p326 = scmp.ne.s32.totalorder %s315, %s316
    %p327 = scmp.eq.s32.totalorder %s24, 0
    %p328 = por %p326, %p327
    %p329 = scmp.ne.s32.totalorder %s315, %s316
    %p330 = scmp.eq.s32.totalorder %s25, 1
    %p331 = por %p329, %p330
    %p333 = scmp.ne.s32.totalorder %s316, %s332
    %p334 = scmp.eq.s32.totalorder %s25, 0
    %p335 = por %p333, %p334
    %p336 = scmp.le.s32.totalorder 1, %s19
    %p337 = scmp.lt.s32.totalorder %s19, 3
    %p338 = pnand %p336, %p337
    %p339 = pneg %p338
    // Predicated region
    $region9: #{gcnnm_forward.3} parent=5 // pred_check
      _
    $region10: #{gcnnm_forward.3} parent=5 // pred_check_branch
      %341 = sbr.rel (%p338) target = $region12
    $region11: #{gcnnm_forward.3} parent=5 // pred_region
      %s342 = ssub.s32 %s19, 1
      // Predicated region
      $region13: #{gcnnm_forward.3} parent=11 // pred_check
        %p343 = pneg %p92
      $region14: #{gcnnm_forward.3} parent=11 // pred_check_branch
        %345 = sbr.rel (%p343) target = $region16
      $region15: #{gcnnm_forward.3} parent=11 // pred_region
        _
      $region16: #{gcnnm_forward.3} parent=11 // pred_fallthru
        _
      // Predicated region
      $region17: #{gcnnm_forward.3} parent=11 // pred_check
        %p346 = pneg %p113
      $region18: #{gcnnm_forward.3} parent=11 // pred_check_branch
        %348 = sbr.rel (%p346) target = $region20
      $region19: #{gcnnm_forward.3} parent=11 // pred_region
        _
      $region20: #{gcnnm_forward.3} parent=11 // pred_fallthru
        _
      // Predicated region
      $region21: #{gcnnm_forward.3} parent=11 // pred_check
        %p349 = pneg %p134
      $region22: #{gcnnm_forward.3} parent=11 // pred_check_branch
        %351 = sbr.rel (%p349) target = $region24
      $region23: #{gcnnm_forward.3} parent=11 // pred_region
        _
      $region24: #{gcnnm_forward.3} parent=11 // pred_fallthru
        _
      // Predicated region
      $region25: #{gcnnm_forward.3} parent=11 // pred_check
        %p352 = pneg %p155
      $region26: #{gcnnm_forward.3} parent=11 // pred_check_branch
        %354 = sbr.rel (%p352) target = $region28
      $region27: #{gcnnm_forward.3} parent=11 // pred_region
        _
      $region28: #{gcnnm_forward.3} parent=11 // pred_fallthru
        _
      // Predicated region
      $region29: #{gcnnm_forward.3} parent=11 // pred_check
        %p355 = pneg %p176
      $region30: #{gcnnm_forward.3} parent=11 // pred_check_branch
        %357 = sbr.rel (%p355) target = $region32
      $region31: #{gcnnm_forward.3} parent=11 // pred_region
        _
      $region32: #{gcnnm_forward.3} parent=11 // pred_fallthru
        _
      // Predicated region
      $region33: #{gcnnm_forward.3} parent=11 // pred_check
        %p358 = pneg %p197
      $region34: #{gcnnm_forward.3} parent=11 // pred_check_branch
        %360 = sbr.rel (%p358) target = $region36
      $region35: #{gcnnm_forward.3} parent=11 // pred_region
        _
      $region36: #{gcnnm_forward.3} parent=11 // pred_fallthru
        _
      // Predicated region
      $region37: #{gcnnm_forward.3} parent=11 // pred_check
        %p361 = pneg %p218
      $region38: #{gcnnm_forward.3} parent=11 // pred_check_branch
        %363 = sbr.rel (%p361) target = $region40
      $region39: #{gcnnm_forward.3} parent=11 // pred_region
        _
      $region40: #{gcnnm_forward.3} parent=11 // pred_fallthru
        _
      // Predicated region
      $region41: #{gcnnm_forward.3} parent=11 // pred_check
        %p364 = pneg %p239
      $region42: #{gcnnm_forward.3} parent=11 // pred_check_branch
        %366 = sbr.rel (%p364) target = $region44
      $region43: #{gcnnm_forward.3} parent=11 // pred_region
        _
      $region44: #{gcnnm_forward.3} parent=11 // pred_fallthru
        _
      // Predicated region
      $region45: #{gcnnm_forward.3} parent=11 // pred_check
        %p367 = pneg %p260
      $region46: #{gcnnm_forward.3} parent=11 // pred_check_branch
        %369 = sbr.rel (%p367) target = $region48
      $region47: #{gcnnm_forward.3} parent=11 // pred_region
        _
      $region48: #{gcnnm_forward.3} parent=11 // pred_fallthru
        _
      // Predicated region
      $region49: #{gcnnm_forward.3} parent=11 // pred_check
        %p370 = pneg %p281
      $region50: #{gcnnm_forward.3} parent=11 // pred_check_branch
        %372 = sbr.rel (%p370) target = $region52
      $region51: #{gcnnm_forward.3} parent=11 // pred_region
        _
      $region52: #{gcnnm_forward.3} parent=11 // pred_fallthru
        _
      // Predicated region
      $region53: #{gcnnm_forward.3} parent=11 // pred_check
        %p373 = pneg %p302
      $region54: #{gcnnm_forward.3} parent=11 // pred_check_branch
        %375 = sbr.rel (%p373) target = $region56
      $region55: #{gcnnm_forward.3} parent=11 // pred_region
        _
      $region56: #{gcnnm_forward.3} parent=11 // pred_fallthru
        _
    $region12: #{gcnnm_forward.3} parent=5 // pred_fallthru
      _
    %p376 = scmp.lt.s32.totalorder %s19, 2
    // Predicated region
    $region57: #{gcnnm_forward.3} parent=5 // pred_check
      %p377 = pneg %p376
    $region58: #{gcnnm_forward.3} parent=5 // pred_check_branch
      %379 = sbr.rel (%p377) target = $region60
    $region59: #{gcnnm_forward.3} parent=5 // pred_region
      // Predicated region
      $region61: #{gcnnm_forward.3} parent=59 // pred_check
        %p380 = pneg %p39
      $region62: #{gcnnm_forward.3} parent=59 // pred_check_branch
        %382 = sbr.rel (%p380) target = $region64
      $region63: #{gcnnm_forward.3} parent=59 // pred_region
        %s383 = smul.u32 16, %s19
        %p384 = scmp.lt.s32.totalorder %s383, 31
        %s385 = scalar_select %p384, %s383, 31
        %s386 = smul.addr %s385, 8
        %s387 = scalar_lea.vmem %s0, %s386
        %s388 = smul.u32 16, %s19
      $region64: #{gcnnm_forward.3} parent=59 // pred_fallthru
        _
      // Predicated region
      $region65: #{gcnnm_forward.3} parent=59 // pred_check
        %p389 = pneg %p65
      $region66: #{gcnnm_forward.3} parent=59 // pred_check_branch
        %391 = sbr.rel (%p389) target = $region68
      $region67: #{gcnnm_forward.3} parent=59 // pred_region
        %s392 = smul.u32 16, %s19
        %p393 = scmp.lt.s32.totalorder %s392, 31
        %s394 = scalar_select %p393, %s392, 31
        %s395 = smul.addr %s394, 2
        %s396 = smul.addr %s395, 4
        %s397 = scalar_lea.vmem %s1, %s396
        %s398 = smul.u32 16, %s19
      $region68: #{gcnnm_forward.3} parent=59 // pred_fallthru
        _
    $region60: #{gcnnm_forward.3} parent=5 // pred_fallthru
      _
    %p399 = scmp.le.s32.totalorder 1, %s19
    %p400 = scmp.lt.s32.totalorder %s19, 3
    %p401 = pnand %p399, %p400
    %p402 = pneg %p401
    // Predicated region
    $region69: #{gcnnm_forward.3} parent=5 // pred_check
      _
    $region70: #{gcnnm_forward.3} parent=5 // pred_check_branch
      %404 = sbr.rel (%p401) target = $region72
    $region71: #{gcnnm_forward.3} parent=5 // pred_region
      %s405 = ssub.s32 %s19, 1
      %s406 = smul.u32 16, %s24
      %p407 = scmp.lt.s32.totalorder %s406, 31
      %s408 = scalar_select %p407, %s406, 31
      %s409 = smul.addr %s408, 8
      %s410 = scalar_lea.vmem %s0, %s409
      %p411 = pneg %p45
      %p412 = pneg %p42
      %s413 = smul.u32 16, %s24
      %p414 = scmp.lt.s32.totalorder %s413, 31
      %s415 = scalar_select %p414, %s413, 31
      %s416 = smul.addr %s415, 2
      %s417 = smul.addr %s416, 4
      %s418 = scalar_lea.vmem %s1, %s417
      %p419 = pneg %p71
      %p420 = pneg %p68
      %p421 = pneg %p92
      %p422 = pneg %p89
      %p423 = pneg %p113
      %p424 = pneg %p110
      %p425 = pneg %p134
      %p426 = pneg %p131
      %p427 = pneg %p155
      %p428 = pneg %p152
      %p429 = pneg %p176
      %p430 = pneg %p173
      %p431 = pneg %p197
      %p432 = pneg %p194
      %p433 = pneg %p218
      %p434 = pneg %p215
      %p435 = pneg %p239
      %p436 = pneg %p236
      %p437 = pneg %p260
      %p438 = pneg %p257
      %p439 = pneg %p281
      %p440 = pneg %p278
      %p441 = pneg %p302
      %p442 = pneg %p299
      %p443 = pneg %p328
      %p444 = pneg %p325
      %s445 = smul.u32 16, %s24
      %p446 = scmp.lt.s32.totalorder %s445, 31
      %s447 = scalar_select %p446, %s445, 31
      %s448 = smul.addr %s447, 8
      %s449 = scalar_lea.vmem %s13, %s448
      %s450 = smul.u32 16, %s24
      %p451 = scmp.lt.s32.totalorder %s450, 31
      %s452 = scalar_select %p451, %s450, 31
      %s453 = smul.addr %s452, 8
      %s454 = scalar_lea.vmem %s0, %s453
      %s455 = smul.u32 16, %s24
      %s456 = smul.u32 16, %s24
      %p457 = scmp.lt.s32.totalorder %s456, 31
      %s458 = scalar_select %p457, %s456, 31
      %s459 = smul.addr %s458, 2
      %s460 = smul.addr %s459, 4
      %s461 = scalar_lea.vmem %s1, %s460
      %s462 = smul.u32 16, %s24
      %s463 = smul.u32 16, %s24
      %p464 = scmp.lt.s32.totalorder %s463, 31
      %s465 = scalar_select %p464, %s463, 31
      %s466 = smul.addr %s465, 8
      %s467 = scalar_lea.vmem %s13, %s466
      %s468 = smul.u32 16, %s24
      %v470 = vld [vmem:[%s454] sm:$0xff]
      %v471 = vld [vmem:[%s454 + $0x8] sm:$0xff]
      %v472 = vld [vmem:[%s454 + $0x10] sm:$0xff]
      %v473 = vld [vmem:[%s454 + $0x18] sm:$0xff]
      %v474 = vld [vmem:[%s454 + $0x20] sm:$0xff]
      %v475 = vld [vmem:[%s454 + $0x28] sm:$0xff]
      %v476 = vld [vmem:[%s454 + $0x30] sm:$0xff]
      %v477 = vld [vmem:[%s454 + $0x38] sm:$0xff]
      %v478 = vld [vmem:[%s454 + $0x40] sm:$0xff]
      %v479 = vld [vmem:[%s454 + $0x48] sm:$0xff]
      %v480 = vld [vmem:[%s454 + $0x50] sm:$0xff]
      %v481 = vld [vmem:[%s454 + $0x58] sm:$0xff]
      %v482 = vld [vmem:[%s454 + $0x60] sm:$0xff]
      %v483 = vld [vmem:[%s454 + $0x68] sm:$0xff]
      %v484 = vld [vmem:[%s454 + $0x70] sm:$0xff]
      %v485 = vld [vmem:[%s454 + $0x78] sm:$0xff]
      %v486 = vld [vmem:[%s461] sm:$0xff]
      %v487 = vld [vmem:[%s461 + $0x8] sm:$0xff]
      %v488 = vld [vmem:[%s461 + $0x10] sm:$0xff]
      %v489 = vld [vmem:[%s461 + $0x18] sm:$0xff]
      %v490 = vld [vmem:[%s461 + $0x20] sm:$0xff]
      %v491 = vld [vmem:[%s461 + $0x28] sm:$0xff]
      %v492 = vld [vmem:[%s461 + $0x30] sm:$0xff]
      %v493 = vld [vmem:[%s461 + $0x38] sm:$0xff]
      %v494 = vld [vmem:[%s461 + $0x40] sm:$0xff]
      %v495 = vld [vmem:[%s461 + $0x48] sm:$0xff]
      %v496 = vld [vmem:[%s461 + $0x50] sm:$0xff]
      %v497 = vld [vmem:[%s461 + $0x58] sm:$0xff]
      %v498 = vld [vmem:[%s461 + $0x60] sm:$0xff]
      %v499 = vld [vmem:[%s461 + $0x68] sm:$0xff]
      %v500 = vld [vmem:[%s461 + $0x70] sm:$0xff]
      %v501 = vld [vmem:[%s461 + $0x78] sm:$0xff]
      %v502 = vunpack.c.l.bf16 %v486
      %v503 = vunpack.c.h.bf16 %v486
      %v504 = vunpack.c.l.bf16 %v487
      %v505 = vunpack.c.h.bf16 %v487
      %v506 = vunpack.c.l.bf16 %v488
      %v507 = vunpack.c.h.bf16 %v488
      %v508 = vunpack.c.l.bf16 %v489
      %v509 = vunpack.c.h.bf16 %v489
      %v510 = vunpack.c.l.bf16 %v490
      %v511 = vunpack.c.h.bf16 %v490
      %v512 = vunpack.c.l.bf16 %v491
      %v513 = vunpack.c.h.bf16 %v491
      %v514 = vunpack.c.l.bf16 %v492
      %v515 = vunpack.c.h.bf16 %v492
      %v516 = vunpack.c.l.bf16 %v493
      %v517 = vunpack.c.h.bf16 %v493
      %v518 = vunpack.c.l.bf16 %v494
      %v519 = vunpack.c.h.bf16 %v494
      %v520 = vunpack.c.l.bf16 %v495
      %v521 = vunpack.c.h.bf16 %v495
      %v522 = vunpack.c.l.bf16 %v496
      %v523 = vunpack.c.h.bf16 %v496
      %v524 = vunpack.c.l.bf16 %v497
      %v525 = vunpack.c.h.bf16 %v497
      %v526 = vunpack.c.l.bf16 %v498
      %v527 = vunpack.c.h.bf16 %v498
      %v528 = vunpack.c.l.bf16 %v499
      %v529 = vunpack.c.h.bf16 %v499
      %v530 = vunpack.c.l.bf16 %v500
      %v531 = vunpack.c.h.bf16 %v500
      %v532 = vunpack.c.l.bf16 %v501
      %v533 = vunpack.c.h.bf16 %v501
      %v534 = vadd.f32 %v502, %v503
      %535 = vadd.xlane.f32.xlu0 %v534
      %v536 = vpop.xlane.xlu0 %535
      %v537 = vadd.f32 %v504, %v505
      %538 = vadd.xlane.f32.xlu0 %v537
      %v539 = vpop.xlane.xlu0 %538
      %v540 = vadd.f32 %v506, %v507
      %541 = vadd.xlane.f32.xlu0 %v540
      %v542 = vpop.xlane.xlu0 %541
      %v543 = vadd.f32 %v508, %v509
      %544 = vadd.xlane.f32.xlu0 %v543
      %v545 = vpop.xlane.xlu0 %544
      %v546 = vadd.f32 %v510, %v511
      %547 = vadd.xlane.f32.xlu0 %v546
      %v548 = vpop.xlane.xlu0 %547
      %v549 = vadd.f32 %v512, %v513
      %550 = vadd.xlane.f32.xlu0 %v549
      %v551 = vpop.xlane.xlu0 %550
      %v552 = vadd.f32 %v514, %v515
      %553 = vadd.xlane.f32.xlu0 %v552
      %v554 = vpop.xlane.xlu0 %553
      %v555 = vadd.f32 %v516, %v517
      %556 = vadd.xlane.f32.xlu0 %v555
      %v557 = vpop.xlane.xlu0 %556
      %v558 = vadd.f32 %v518, %v519
      %559 = vadd.xlane.f32.xlu0 %v558
      %v560 = vpop.xlane.xlu0 %559
      %v561 = vadd.f32 %v520, %v521
      %562 = vadd.xlane.f32.xlu0 %v561
      %v563 = vpop.xlane.xlu0 %562
      %v564 = vadd.f32 %v522, %v523
      %565 = vadd.xlane.f32.xlu0 %v564
      %v566 = vpop.xlane.xlu0 %565
      %v567 = vadd.f32 %v524, %v525
      %568 = vadd.xlane.f32.xlu0 %v567
      %v569 = vpop.xlane.xlu0 %568
      %v570 = vadd.f32 %v526, %v527
      %571 = vadd.xlane.f32.xlu0 %v570
      %v572 = vpop.xlane.xlu0 %571
      %v573 = vadd.f32 %v528, %v529
      %574 = vadd.xlane.f32.xlu0 %v573
      %v575 = vpop.xlane.xlu0 %574
      %v576 = vadd.f32 %v530, %v531
      %577 = vadd.xlane.f32.xlu0 %v576
      %v578 = vpop.xlane.xlu0 %577
      %v579 = vadd.f32 %v532, %v533
      %580 = vadd.xlane.f32.xlu0 %v579
      %v581 = vpop.xlane.xlu0 %580
      %v582 = vmax.f32 %v536, 1e-06
      %v583 = vmax.f32 %v539, 1e-06
      %v584 = vmax.f32 %v542, 1e-06
      %v585 = vmax.f32 %v545, 1e-06
      %v586 = vmax.f32 %v548, 1e-06
      %v587 = vmax.f32 %v551, 1e-06
      %v588 = vmax.f32 %v554, 1e-06
      %v589 = vmax.f32 %v557, 1e-06
      %v590 = vmax.f32 %v560, 1e-06
      %v591 = vmax.f32 %v563, 1e-06
      %v592 = vmax.f32 %v566, 1e-06
      %v593 = vmax.f32 %v569, 1e-06
      %v594 = vmax.f32 %v572, 1e-06
      %v595 = vmax.f32 %v575, 1e-06
      %v596 = vmax.f32 %v578, 1e-06
      %v597 = vmax.f32 %v581, 1e-06
      %v598 = vrsqrt.pop %v582
      %v599 = vrsqrt.pop %v583
      %v600 = vrsqrt.pop %v584
      %v601 = vrsqrt.pop %v585
      %v602 = vrsqrt.pop %v586
      %v603 = vrsqrt.pop %v587
      %v604 = vrsqrt.pop %v588
      %v605 = vrsqrt.pop %v589
      %v606 = vrsqrt.pop %v590
      %v607 = vrsqrt.pop %v591
      %v608 = vrsqrt.pop %v592
      %v609 = vrsqrt.pop %v593
      %v610 = vrsqrt.pop %v594
      %v611 = vrsqrt.pop %v595
      %v612 = vrsqrt.pop %v596
      %v613 = vrsqrt.pop %v597
      %v614 = vld [vmem:[%s2] sm:$0xf]
      %v615 = vld [vmem:[%s2 + $0x4] sm:$0xf]
      %v616 = vld [vmem:[%s2 + $0x8] sm:$0xf]
      %v617 = vld [vmem:[%s2 + $0xc] sm:$0xf]
      %v618 = vld [vmem:[%s2 + $0x10] sm:$0xf]
      %v619 = vld [vmem:[%s2 + $0x14] sm:$0xf]
      %v620 = vld [vmem:[%s2 + $0x18] sm:$0xf]
      %v621 = vld [vmem:[%s2 + $0x1c] sm:$0xf]
      %v622 = vld [vmem:[%s2 + $0x20] sm:$0xf]
      %v623 = vld [vmem:[%s2 + $0x24] sm:$0xf]
      %v624 = vld [vmem:[%s2 + $0x28] sm:$0xf]
      %v625 = vld [vmem:[%s2 + $0x2c] sm:$0xf]
      %v626 = vld [vmem:[%s2 + $0x30] sm:$0xf]
      %v627 = vld [vmem:[%s2 + $0x34] sm:$0xf]
      %v628 = vld [vmem:[%s2 + $0x38] sm:$0xf]
      %v629 = vld [vmem:[%s2 + $0x3c] sm:$0xf]
      %v630 = vld [vmem:[%s2 + $0x40] sm:$0xf]
      %v631 = vld [vmem:[%s2 + $0x44] sm:$0xf]
      %v632 = vld [vmem:[%s2 + $0x48] sm:$0xf]
      %v633 = vld [vmem:[%s2 + $0x4c] sm:$0xf]
      %v634 = vld [vmem:[%s2 + $0x50] sm:$0xf]
      %v635 = vld [vmem:[%s2 + $0x54] sm:$0xf]
      %v636 = vld [vmem:[%s2 + $0x58] sm:$0xf]
      %v637 = vld [vmem:[%s2 + $0x5c] sm:$0xf]
      %v638 = vld [vmem:[%s2 + $0x60] sm:$0xf]
      %v639 = vld [vmem:[%s2 + $0x64] sm:$0xf]
      %v640 = vld [vmem:[%s2 + $0x68] sm:$0xf]
      %v641 = vld [vmem:[%s2 + $0x6c] sm:$0xf]
      %v642 = vld [vmem:[%s2 + $0x70] sm:$0xf]
      %v643 = vld [vmem:[%s2 + $0x74] sm:$0xf]
      %v644 = vld [vmem:[%s2 + $0x78] sm:$0xf]
      %v645 = vld [vmem:[%s2 + $0x7c] sm:$0xf]
      %v662 = vunpack.c.l.b16 %v486
      %v663 = vunpack.c.h.b16 %v486
      %v664 = vunpack.c.l.b16 %v487
      %v665 = vunpack.c.h.b16 %v487
      %v666 = vunpack.c.l.b16 %v488
      %v667 = vunpack.c.h.b16 %v488
      %v668 = vunpack.c.l.b16 %v489
      %v669 = vunpack.c.h.b16 %v489
      %v670 = vunpack.c.l.b16 %v490
      %v671 = vunpack.c.h.b16 %v490
      %v672 = vunpack.c.l.b16 %v491
      %v673 = vunpack.c.h.b16 %v491
      %v674 = vunpack.c.l.b16 %v492
      %v675 = vunpack.c.h.b16 %v492
      %v676 = vunpack.c.l.b16 %v493
      %v677 = vunpack.c.h.b16 %v493
      %v678 = vunpack.c.l.b16 %v494
      %v679 = vunpack.c.h.b16 %v494
      %v680 = vunpack.c.l.b16 %v495
      %v681 = vunpack.c.h.b16 %v495
      %v682 = vunpack.c.l.b16 %v496
      %v683 = vunpack.c.h.b16 %v496
      %v684 = vunpack.c.l.b16 %v497
      %v685 = vunpack.c.h.b16 %v497
      %v686 = vunpack.c.l.b16 %v498
      %v687 = vunpack.c.h.b16 %v498
      %v688 = vunpack.c.l.b16 %v499
      %v689 = vunpack.c.h.b16 %v499
      %v690 = vunpack.c.l.b16 %v500
      %v691 = vunpack.c.h.b16 %v500
      %v692 = vunpack.c.l.b16 %v501
      %v693 = vunpack.c.h.b16 %v501
      %v694 = vpack.c.b16 %v664, %v662
      %v695 = vpack.c.b16 %v665, %v663
      %v696 = vpack.c.b16 %v668, %v666
      %v697 = vpack.c.b16 %v669, %v667
      %v698 = vpack.c.b16 %v672, %v670
      %v699 = vpack.c.b16 %v673, %v671
      %v700 = vpack.c.b16 %v676, %v674
      %v701 = vpack.c.b16 %v677, %v675
      %v702 = vpack.c.b16 %v680, %v678
      %v703 = vpack.c.b16 %v681, %v679
      %v704 = vpack.c.b16 %v684, %v682
      %v705 = vpack.c.b16 %v685, %v683
      %v706 = vpack.c.b16 %v688, %v686
      %v707 = vpack.c.b16 %v689, %v687
      %v708 = vpack.c.b16 %v692, %v690
      %v709 = vpack.c.b16 %v693, %v691
      %v758 = vunpack.c.l.b16 %v614
      %v759 = vunpack.c.l.b16 %v615
      %v760 = vunpack.c.l.b16 %v616
      %v761 = vunpack.c.l.b16 %v617
      %v762 = vunpack.c.l.b16 %v618
      %v763 = vunpack.c.l.b16 %v619
      %v764 = vunpack.c.l.b16 %v620
      %v765 = vunpack.c.l.b16 %v621
      %v766 = vunpack.c.l.b16 %v622
      %v767 = vunpack.c.l.b16 %v623
      %v768 = vunpack.c.l.b16 %v624
      %v769 = vunpack.c.l.b16 %v625
      %v770 = vunpack.c.l.b16 %v626
      %v771 = vunpack.c.l.b16 %v627
      %v772 = vunpack.c.l.b16 %v628
      %v773 = vunpack.c.l.b16 %v629
      %v774 = vunpack.c.l.b16 %v630
      %v775 = vunpack.c.l.b16 %v631
      %v776 = vunpack.c.l.b16 %v632
      %v777 = vunpack.c.l.b16 %v633
      %v778 = vunpack.c.l.b16 %v634
      %v779 = vunpack.c.l.b16 %v635
      %v780 = vunpack.c.l.b16 %v636
      %v781 = vunpack.c.l.b16 %v637
      %v782 = vunpack.c.l.b16 %v638
      %v783 = vunpack.c.l.b16 %v639
      %v784 = vunpack.c.l.b16 %v640
      %v785 = vunpack.c.l.b16 %v641
      %v786 = vunpack.c.l.b16 %v642
      %v787 = vunpack.c.l.b16 %v643
      %v788 = vunpack.c.l.b16 %v644
      %v789 = vunpack.c.l.b16 %v645
      %v790 = vpack.c.b16 %v759, %v758
      %v791 = vpack.c.b16 %v761, %v760
      %v792 = vpack.c.b16 %v763, %v762
      %v793 = vpack.c.b16 %v765, %v764
      %v794 = vpack.c.b16 %v767, %v766
      %v795 = vpack.c.b16 %v769, %v768
      %v796 = vpack.c.b16 %v771, %v770
      %v797 = vpack.c.b16 %v773, %v772
      %v798 = vpack.c.b16 %v775, %v774
      %v799 = vpack.c.b16 %v777, %v776
      %v800 = vpack.c.b16 %v779, %v778
      %v801 = vpack.c.b16 %v781, %v780
      %v802 = vpack.c.b16 %v783, %v782
      %v803 = vpack.c.b16 %v785, %v784
      %v804 = vpack.c.b16 %v787, %v786
      %v805 = vpack.c.b16 %v789, %v788
      %822 = vmatprep.subr.bf16.mxu0 0
      %823 = vmatpush1.bf16.msra.mxu0 %v790
      %824 = vmatprep.subr.bf16.mxu0 0
      %825 = vmatpush1.bf16.msra.mxu0 %v791
      %826 = vmatprep.subr.bf16.mxu0 0
      %827 = vmatpush1.bf16.msra.mxu0 %v792
      %828 = vmatprep.subr.bf16.mxu0 0
      %829 = vmatpush1.bf16.msra.mxu0 %v793
      %830 = vmatprep.subr.bf16.mxu0 0
      %831 = vmatpush1.bf16.msra.mxu0 %v794
      %832 = vmatprep.subr.bf16.mxu0 0
      %833 = vmatpush1.bf16.msra.mxu0 %v795
      %834 = vmatprep.subr.bf16.mxu0 0
      %835 = vmatpush1.bf16.msra.mxu0 %v796
      %836 = vmatprep.subr.bf16.mxu0 0
      %837 = vmatpush1.bf16.msra.mxu0 %v797
      %838 = vmatprep.subr.bf16.mxu0 0
      %839 = vmatpush1.bf16.msra.mxu0 %v798
      %840 = vmatprep.subr.bf16.mxu0 0
      %841 = vmatpush1.bf16.msra.mxu0 %v799
      %842 = vmatprep.subr.bf16.mxu0 0
      %843 = vmatpush1.bf16.msra.mxu0 %v800
      %844 = vmatprep.subr.bf16.mxu0 0
      %845 = vmatpush1.bf16.msra.mxu0 %v801
      %846 = vmatprep.subr.bf16.mxu0 0
      %847 = vmatpush1.bf16.msra.mxu0 %v802
      %848 = vmatprep.subr.bf16.mxu0 0
      %849 = vmatpush1.bf16.msra.mxu0 %v803
      %850 = vmatprep.subr.bf16.mxu0 0
      %851 = vmatpush1.bf16.msra.mxu0 %v804
      %852 = vmatprep.subr.bf16.mxu0 0
      %853 = vmatpush1.bf16.msra.mxu0 %v805
      %854 = vmatprep.mubr.bf16.mxu0 %v695
      %855 = vmatmul.mubr.bf16.gmra.mrb[0].mxu0 %v694
      %v856 = vpop.f32.mrb[0].mxu0
      %v857 = vadd.f32 0.0, %v856
      %v858 = vpop.f32.mrb[0].mxu0
      %v859 = vpop.f32.mrb[0].mxu0
      %v860 = vadd.f32 0.0, %v859
      %v861 = vpop.f32.mrb[0].mxu0
      %862 = vmatprep.mubr.bf16.mxu0 %v697
      %863 = vmatmul.mubr.bf16.gmra.mrb[0].mxu0 %v696
      %v864 = vpop.f32.mrb[0].mxu0
      %v865 = vadd.f32 0.0, %v864
      %v866 = vpop.f32.mrb[0].mxu0
      %v867 = vpop.f32.mrb[0].mxu0
      %v868 = vadd.f32 0.0, %v867
      %v869 = vpop.f32.mrb[0].mxu0
      %870 = vmatprep.mubr.bf16.mxu0 %v699
      %871 = vmatmul.mubr.bf16.gmra.mrb[0].mxu0 %v698
      %v872 = vpop.f32.mrb[0].mxu0
      %v873 = vadd.f32 0.0, %v872
      %v874 = vpop.f32.mrb[0].mxu0
      %v875 = vpop.f32.mrb[0].mxu0
      %v876 = vadd.f32 0.0, %v875
      %v877 = vpop.f32.mrb[0].mxu0
      %878 = vmatprep.mubr.bf16.mxu0 %v701
      %879 = vmatmul.mubr.bf16.gmra.mrb[0].mxu0 %v700
      %v880 = vpop.f32.mrb[0].mxu0
      %v881 = vadd.f32 0.0, %v880
      %v882 = vpop.f32.mrb[0].mxu0
      %v883 = vpop.f32.mrb[0].mxu0
      %v884 = vadd.f32 0.0, %v883
      %v885 = vpop.f32.mrb[0].mxu0
      %886 = vmatprep.mubr.bf16.mxu0 %v703
      %887 = vmatmul.mubr.bf16.gmra.mrb[0].mxu0 %v702
      %v888 = vpop.f32.mrb[0].mxu0
      %v889 = vadd.f32 0.0, %v888
      %v890 = vpop.f32.mrb[0].mxu0
      %v891 = vpop.f32.mrb[0].mxu0
      %v892 = vadd.f32 0.0, %v891
      %v893 = vpop.f32.mrb[0].mxu0
      %894 = vmatprep.mubr.bf16.mxu0 %v705
      %895 = vmatmul.mubr.bf16.gmra.mrb[0].mxu0 %v704
      %v896 = vpop.f32.mrb[0].mxu0
      %v897 = vadd.f32 0.0, %v896
      %v898 = vpop.f32.mrb[0].mxu0
      %v899 = vpop.f32.mrb[0].mxu0
      %v900 = vadd.f32 0.0, %v899
      %v901 = vpop.f32.mrb[0].mxu0
      %902 = vmatprep.mubr.bf16.mxu0 %v707
      %903 = vmatmul.mubr.bf16.gmra.mrb[0].mxu0 %v706
      %v904 = vpop.f32.mrb[0].mxu0
      %v905 = vadd.f32 0.0, %v904
      %v906 = vpop.f32.mrb[0].mxu0
      %v907 = vpop.f32.mrb[0].mxu0
      %v908 = vadd.f32 0.0, %v907
      %v909 = vpop.f32.mrb[0].mxu0
      %910 = vmatprep.mubr.bf16.mxu0 %v709
      %911 = vmatmul.mubr.bf16.gmra.mrb[0].mxu0 %v708
      %v912 = vpop.f32.mrb[0].mxu0
      %v913 = vadd.f32 0.0, %v912
      %v914 = vpop.f32.mrb[0].mxu0
      %v915 = vpop.f32.mrb[0].mxu0
      %v916 = vadd.f32 0.0, %v915
      %v917 = vpop.f32.mrb[0].mxu0
      %918 = vdwg.mxu0
      %v919 = vmul.f32 %v598, %v857
      %v920 = vmul.f32 %v599, %v860
      %v921 = vmul.f32 %v600, %v865
      %v922 = vmul.f32 %v601, %v868
      %v923 = vmul.f32 %v602, %v873
      %v924 = vmul.f32 %v603, %v876
      %v925 = vmul.f32 %v604, %v881
      %v926 = vmul.f32 %v605, %v884
      %v927 = vmul.f32 %v606, %v889
      %v928 = vmul.f32 %v607, %v892
      %v929 = vmul.f32 %v608, %v897
      %v930 = vmul.f32 %v609, %v900
      %v931 = vmul.f32 %v610, %v905
      %v932 = vmul.f32 %v611, %v908
      %v933 = vmul.f32 %v612, %v913
      %v934 = vmul.f32 %v613, %v916
      %v935 = vld [vmem:[%s3] sm:$0x1]
      %v936 = vld [vmem:[%s4] sm:$0x1]
      %937 = vadd.xlane.f32.xlu0 %v470
      %v938 = vpop.xlane.xlu0 %937
      %939 = vadd.xlane.f32.xlu0 %v471
      %v940 = vpop.xlane.xlu0 %939
      %941 = vadd.xlane.f32.xlu0 %v472
      %v942 = vpop.xlane.xlu0 %941
      %943 = vadd.xlane.f32.xlu0 %v473
      %v944 = vpop.xlane.xlu0 %943
      %945 = vadd.xlane.f32.xlu0 %v474
      %v946 = vpop.xlane.xlu0 %945
      %947 = vadd.xlane.f32.xlu0 %v475
      %v948 = vpop.xlane.xlu0 %947
      %949 = vadd.xlane.f32.xlu0 %v476
      %v950 = vpop.xlane.xlu0 %949
      %951 = vadd.xlane.f32.xlu0 %v477
      %v952 = vpop.xlane.xlu0 %951
      %953 = vadd.xlane.f32.xlu0 %v478
      %v954 = vpop.xlane.xlu0 %953
      %955 = vadd.xlane.f32.xlu0 %v479
      %v956 = vpop.xlane.xlu0 %955
      %957 = vadd.xlane.f32.xlu0 %v480
      %v958 = vpop.xlane.xlu0 %957
      %959 = vadd.xlane.f32.xlu0 %v481
      %v960 = vpop.xlane.xlu0 %959
      %961 = vadd.xlane.f32.xlu0 %v482
      %v962 = vpop.xlane.xlu0 %961
      %963 = vadd.xlane.f32.xlu0 %v483
      %v964 = vpop.xlane.xlu0 %963
      %965 = vadd.xlane.f32.xlu0 %v484
      %v966 = vpop.xlane.xlu0 %965
      %967 = vadd.xlane.f32.xlu0 %v485
      %v968 = vpop.xlane.xlu0 %967
      %v969 = vrcp.pop 128.0
      %v970 = vmul.f32 %v938, %v969
      %v971 = vmul.f32 %v940, %v969
      %v972 = vmul.f32 %v942, %v969
      %v973 = vmul.f32 %v944, %v969
      %v974 = vmul.f32 %v946, %v969
      %v975 = vmul.f32 %v948, %v969
      %v976 = vmul.f32 %v950, %v969
      %v977 = vmul.f32 %v952, %v969
      %v978 = vmul.f32 %v954, %v969
      %v979 = vmul.f32 %v956, %v969
      %v980 = vmul.f32 %v958, %v969
      %v981 = vmul.f32 %v960, %v969
      %v982 = vmul.f32 %v962, %v969
      %v983 = vmul.f32 %v964, %v969
      %v984 = vmul.f32 %v966, %v969
      %v985 = vmul.f32 %v968, %v969
      %v986 = vsub.f32 %v470, %v970
      %v987 = vsub.f32 %v471, %v971
      %v988 = vsub.f32 %v472, %v972
      %v989 = vsub.f32 %v473, %v973
      %v990 = vsub.f32 %v474, %v974
      %v991 = vsub.f32 %v475, %v975
      %v992 = vsub.f32 %v476, %v976
      %v993 = vsub.f32 %v477, %v977
      %v994 = vsub.f32 %v478, %v978
      %v995 = vsub.f32 %v479, %v979
      %v996 = vsub.f32 %v480, %v980
      %v997 = vsub.f32 %v481, %v981
      %v998 = vsub.f32 %v482, %v982
      %v999 = vsub.f32 %v483, %v983
      %v1000 = vsub.f32 %v484, %v984
      %v1001 = vsub.f32 %v485, %v985
      %v1002 = vmul.f32 %v986, %v986
      %v1003 = vmul.f32 %v987, %v987
      %v1004 = vmul.f32 %v988, %v988
      %v1005 = vmul.f32 %v989, %v989
      %v1006 = vmul.f32 %v990, %v990
      %v1007 = vmul.f32 %v991, %v991
      %v1008 = vmul.f32 %v992, %v992
      %v1009 = vmul.f32 %v993, %v993
      %v1010 = vmul.f32 %v994, %v994
      %v1011 = vmul.f32 %v995, %v995
      %v1012 = vmul.f32 %v996, %v996
      %v1013 = vmul.f32 %v997, %v997
      %v1014 = vmul.f32 %v998, %v998
      %v1015 = vmul.f32 %v999, %v999
      %v1016 = vmul.f32 %v1000, %v1000
      %v1017 = vmul.f32 %v1001, %v1001
      %1018 = vadd.xlane.f32.xlu0 %v1002
      %v1019 = vpop.xlane.xlu0 %1018
      %1020 = vadd.xlane.f32.xlu0 %v1003
      %v1021 = vpop.xlane.xlu0 %1020
      %1022 = vadd.xlane.f32.xlu0 %v1004
      %v1023 = vpop.xlane.xlu0 %1022
      %1024 = vadd.xlane.f32.xlu0 %v1005
      %v1025 = vpop.xlane.xlu0 %1024
      %1026 = vadd.xlane.f32.xlu0 %v1006
      %v1027 = vpop.xlane.xlu0 %1026
      %1028 = vadd.xlane.f32.xlu0 %v1007
      %v1029 = vpop.xlane.xlu0 %1028
      %1030 = vadd.xlane.f32.xlu0 %v1008
      %v1031 = vpop.xlane.xlu0 %1030
      %1032 = vadd.xlane.f32.xlu0 %v1009
      %v1033 = vpop.xlane.xlu0 %1032
      %1034 = vadd.xlane.f32.xlu0 %v1010
      %v1035 = vpop.xlane.xlu0 %1034
      %1036 = vadd.xlane.f32.xlu0 %v1011
      %v1037 = vpop.xlane.xlu0 %1036
      %1038 = vadd.xlane.f32.xlu0 %v1012
      %v1039 = vpop.xlane.xlu0 %1038
      %1040 = vadd.xlane.f32.xlu0 %v1013
      %v1041 = vpop.xlane.xlu0 %1040
      %1042 = vadd.xlane.f32.xlu0 %v1014
      %v1043 = vpop.xlane.xlu0 %1042
      %1044 = vadd.xlane.f32.xlu0 %v1015
      %v1045 = vpop.xlane.xlu0 %1044
      %1046 = vadd.xlane.f32.xlu0 %v1016
      %v1047 = vpop.xlane.xlu0 %1046
      %1048 = vadd.xlane.f32.xlu0 %v1017
      %v1049 = vpop.xlane.xlu0 %1048
      %v1050 = vrcp.pop 127.0
      %v1051 = vmul.f32 %v1019, %v1050
      %v1052 = vmul.f32 %v1021, %v1050
      %v1053 = vmul.f32 %v1023, %v1050
      %v1054 = vmul.f32 %v1025, %v1050
      %v1055 = vmul.f32 %v1027, %v1050
      %v1056 = vmul.f32 %v1029, %v1050
      %v1057 = vmul.f32 %v1031, %v1050
      %v1058 = vmul.f32 %v1033, %v1050
      %v1059 = vmul.f32 %v1035, %v1050
      %v1060 = vmul.f32 %v1037, %v1050
      %v1061 = vmul.f32 %v1039, %v1050
      %v1062 = vmul.f32 %v1041, %v1050
      %v1063 = vmul.f32 %v1043, %v1050
      %v1064 = vmul.f32 %v1045, %v1050
      %v1065 = vmul.f32 %v1047, %v1050
      %v1066 = vmul.f32 %v1049, %v1050
      %v1067 = vrsqrt.pop %v1051
      %v1068 = vmul.f32 %v1051, %v1067
      %vm1069 = vcmp.eq.f32.partialorder %v1051, inf
      %v1070 = vsel %vm1069, %v1051, %v1068
      %vm1071 = vcmp.eq.f32.partialorder %v1051, 0.0
      %v1072 = vand.u32 %v1051, 2147483648
      %v1073 = vsel %vm1071, %v1072, %v1070
      %v1074 = vrsqrt.pop %v1052
      %v1075 = vmul.f32 %v1052, %v1074
      %vm1076 = vcmp.eq.f32.partialorder %v1052, inf
      %v1077 = vsel %vm1076, %v1052, %v1075
      %vm1078 = vcmp.eq.f32.partialorder %v1052, 0.0
      %v1079 = vand.u32 %v1052, 2147483648
      %v1080 = vsel %vm1078, %v1079, %v1077
      %v1081 = vrsqrt.pop %v1053
      %v1082 = vmul.f32 %v1053, %v1081
      %vm1083 = vcmp.eq.f32.partialorder %v1053, inf
      %v1084 = vsel %vm1083, %v1053, %v1082
      %vm1085 = vcmp.eq.f32.partialorder %v1053, 0.0
      %v1086 = vand.u32 %v1053, 2147483648
      %v1087 = vsel %vm1085, %v1086, %v1084
      %v1088 = vrsqrt.pop %v1054
      %v1089 = vmul.f32 %v1054, %v1088
      %vm1090 = vcmp.eq.f32.partialorder %v1054, inf
      %v1091 = vsel %vm1090, %v1054, %v1089
      %vm1092 = vcmp.eq.f32.partialorder %v1054, 0.0
      %v1093 = vand.u32 %v1054, 2147483648
      %v1094 = vsel %vm1092, %v1093, %v1091
      %v1095 = vrsqrt.pop %v1055
      %v1096 = vmul.f32 %v1055, %v1095
      %vm1097 = vcmp.eq.f32.partialorder %v1055, inf
      %v1098 = vsel %vm1097, %v1055, %v1096
      %vm1099 = vcmp.eq.f32.partialorder %v1055, 0.0
      %v1100 = vand.u32 %v1055, 2147483648
      %v1101 = vsel %vm1099, %v1100, %v1098
      %v1102 = vrsqrt.pop %v1056
      %v1103 = vmul.f32 %v1056, %v1102
      %vm1104 = vcmp.eq.f32.partialorder %v1056, inf
      %v1105 = vsel %vm1104, %v1056, %v1103
      %vm1106 = vcmp.eq.f32.partialorder %v1056, 0.0
      %v1107 = vand.u32 %v1056, 2147483648
      %v1108 = vsel %vm1106, %v1107, %v1105
      %v1109 = vrsqrt.pop %v1057
      %v1110 = vmul.f32 %v1057, %v1109
      %vm1111 = vcmp.eq.f32.partialorder %v1057, inf
      %v1112 = vsel %vm1111, %v1057, %v1110
      %vm1113 = vcmp.eq.f32.partialorder %v1057, 0.0
      %v1114 = vand.u32 %v1057, 2147483648
      %v1115 = vsel %vm1113, %v1114, %v1112
      %v1116 = vrsqrt.pop %v1058
      %v1117 = vmul.f32 %v1058, %v1116
      %vm1118 = vcmp.eq.f32.partialorder %v1058, inf
      %v1119 = vsel %vm1118, %v1058, %v1117
      %vm1120 = vcmp.eq.f32.partialorder %v1058, 0.0
      %v1121 = vand.u32 %v1058, 2147483648
      %v1122 = vsel %vm1120, %v1121, %v1119
      %v1123 = vrsqrt.pop %v1059
      %v1124 = vmul.f32 %v1059, %v1123
      %vm1125 = vcmp.eq.f32.partialorder %v1059, inf
      %v1126 = vsel %vm1125, %v1059, %v1124
      %vm1127 = vcmp.eq.f32.partialorder %v1059, 0.0
      %v1128 = vand.u32 %v1059, 2147483648
      %v1129 = vsel %vm1127, %v1128, %v1126
      %v1130 = vrsqrt.pop %v1060
      %v1131 = vmul.f32 %v1060, %v1130
      %vm1132 = vcmp.eq.f32.partialorder %v1060, inf
      %v1133 = vsel %vm1132, %v1060, %v1131
      %vm1134 = vcmp.eq.f32.partialorder %v1060, 0.0
      %v1135 = vand.u32 %v1060, 2147483648
      %v1136 = vsel %vm1134, %v1135, %v1133
      %v1137 = vrsqrt.pop %v1061
      %v1138 = vmul.f32 %v1061, %v1137
      %vm1139 = vcmp.eq.f32.partialorder %v1061, inf
      %v1140 = vsel %vm1139, %v1061, %v1138
      %vm1141 = vcmp.eq.f32.partialorder %v1061, 0.0
      %v1142 = vand.u32 %v1061, 2147483648
      %v1143 = vsel %vm1141, %v1142, %v1140
      %v1144 = vrsqrt.pop %v1062
      %v1145 = vmul.f32 %v1062, %v1144
      %vm1146 = vcmp.eq.f32.partialorder %v1062, inf
      %v1147 = vsel %vm1146, %v1062, %v1145
      %vm1148 = vcmp.eq.f32.partialorder %v1062, 0.0
      %v1149 = vand.u32 %v1062, 2147483648
      %v1150 = vsel %vm1148, %v1149, %v1147
      %v1151 = vrsqrt.pop %v1063
      %v1152 = vmul.f32 %v1063, %v1151
      %vm1153 = vcmp.eq.f32.partialorder %v1063, inf
      %v1154 = vsel %vm1153, %v1063, %v1152
      %vm1155 = vcmp.eq.f32.partialorder %v1063, 0.0
      %v1156 = vand.u32 %v1063, 2147483648
      %v1157 = vsel %vm1155, %v1156, %v1154
      %v1158 = vrsqrt.pop %v1064
      %v1159 = vmul.f32 %v1064, %v1158
      %vm1160 = vcmp.eq.f32.partialorder %v1064, inf
      %v1161 = vsel %vm1160, %v1064, %v1159
      %vm1162 = vcmp.eq.f32.partialorder %v1064, 0.0
      %v1163 = vand.u32 %v1064, 2147483648
      %v1164 = vsel %vm1162, %v1163, %v1161
      %v1165 = vrsqrt.pop %v1065
      %v1166 = vmul.f32 %v1065, %v1165
      %vm1167 = vcmp.eq.f32.partialorder %v1065, inf
      %v1168 = vsel %vm1167, %v1065, %v1166
      %vm1169 = vcmp.eq.f32.partialorder %v1065, 0.0
      %v1170 = vand.u32 %v1065, 2147483648
      %v1171 = vsel %vm1169, %v1170, %v1168
      %v1172 = vrsqrt.pop %v1066
      %v1173 = vmul.f32 %v1066, %v1172
      %vm1174 = vcmp.eq.f32.partialorder %v1066, inf
      %v1175 = vsel %vm1174, %v1066, %v1173
      %vm1176 = vcmp.eq.f32.partialorder %v1066, 0.0
      %v1177 = vand.u32 %v1066, 2147483648
      %v1178 = vsel %vm1176, %v1177, %v1175
      %v1179 = vadd.f32 %v1073, 1e-06
      %v1180 = vadd.f32 %v1080, 1e-06
      %v1181 = vadd.f32 %v1087, 1e-06
      %v1182 = vadd.f32 %v1094, 1e-06
      %v1183 = vadd.f32 %v1101, 1e-06
      %v1184 = vadd.f32 %v1108, 1e-06
      %v1185 = vadd.f32 %v1115, 1e-06
      %v1186 = vadd.f32 %v1122, 1e-06
      %v1187 = vadd.f32 %v1129, 1e-06
      %v1188 = vadd.f32 %v1136, 1e-06
      %v1189 = vadd.f32 %v1143, 1e-06
      %v1190 = vadd.f32 %v1150, 1e-06
      %v1191 = vadd.f32 %v1157, 1e-06
      %v1192 = vadd.f32 %v1164, 1e-06
      %v1193 = vadd.f32 %v1171, 1e-06
      %v1194 = vadd.f32 %v1178, 1e-06
      %v1195 = vrcp.pop %v1179
      %v1196 = vrcp.pop %v1180
      %v1197 = vrcp.pop %v1181
      %v1198 = vrcp.pop %v1182
      %v1199 = vrcp.pop %v1183
      %v1200 = vrcp.pop %v1184
      %v1201 = vrcp.pop %v1185
      %v1202 = vrcp.pop %v1186
      %v1203 = vrcp.pop %v1187
      %v1204 = vrcp.pop %v1188
      %v1205 = vrcp.pop %v1189
      %v1206 = vrcp.pop %v1190
      %v1207 = vrcp.pop %v1191
      %v1208 = vrcp.pop %v1192
      %v1209 = vrcp.pop %v1193
      %v1210 = vrcp.pop %v1194
      %v1211 = vmul.f32 %v986, %v1195
      %v1212 = vmul.f32 %v987, %v1196
      %v1213 = vmul.f32 %v988, %v1197
      %v1214 = vmul.f32 %v989, %v1198
      %v1215 = vmul.f32 %v990, %v1199
      %v1216 = vmul.f32 %v991, %v1200
      %v1217 = vmul.f32 %v992, %v1201
      %v1218 = vmul.f32 %v993, %v1202
      %v1219 = vmul.f32 %v994, %v1203
      %v1220 = vmul.f32 %v995, %v1204
      %v1221 = vmul.f32 %v996, %v1205
      %v1222 = vmul.f32 %v997, %v1206
      %v1223 = vmul.f32 %v998, %v1207
      %v1224 = vmul.f32 %v999, %v1208
      %v1225 = vmul.f32 %v1000, %v1209
      %v1226 = vmul.f32 %v1001, %v1210
      %v1228 = vlaneseq
      %v1229 = vshrl.u32 %v1228, 7
      %v1230 = vsub.s32 0, %v1229
      %v1231 = vrot.slane %v935, %v1230
      %v1233 = vmul.f32 %v1211, %v1231
      %v1234 = vmul.f32 %v1212, %v1231
      %v1235 = vmul.f32 %v1213, %v1231
      %v1236 = vmul.f32 %v1214, %v1231
      %v1237 = vmul.f32 %v1215, %v1231
      %v1238 = vmul.f32 %v1216, %v1231
      %v1239 = vmul.f32 %v1217, %v1231
      %v1240 = vmul.f32 %v1218, %v1231
      %v1241 = vmul.f32 %v1219, %v1231
      %v1242 = vmul.f32 %v1220, %v1231
      %v1243 = vmul.f32 %v1221, %v1231
      %v1244 = vmul.f32 %v1222, %v1231
      %v1245 = vmul.f32 %v1223, %v1231
      %v1246 = vmul.f32 %v1224, %v1231
      %v1247 = vmul.f32 %v1225, %v1231
      %v1248 = vmul.f32 %v1226, %v1231
      %v1250 = vlaneseq
      %v1251 = vshrl.u32 %v1250, 7
      %v1252 = vsub.s32 0, %v1251
      %v1253 = vrot.slane %v936, %v1252
      %v1255 = vadd.f32 %v1233, %v1253
      %v1256 = vadd.f32 %v1234, %v1253
      %v1257 = vadd.f32 %v1235, %v1253
      %v1258 = vadd.f32 %v1236, %v1253
      %v1259 = vadd.f32 %v1237, %v1253
      %v1260 = vadd.f32 %v1238, %v1253
      %v1261 = vadd.f32 %v1239, %v1253
      %v1262 = vadd.f32 %v1240, %v1253
      %v1263 = vadd.f32 %v1241, %v1253
      %v1264 = vadd.f32 %v1242, %v1253
      %v1265 = vadd.f32 %v1243, %v1253
      %v1266 = vadd.f32 %v1244, %v1253
      %v1267 = vadd.f32 %v1245, %v1253
      %v1268 = vadd.f32 %v1246, %v1253
      %v1269 = vadd.f32 %v1247, %v1253
      %v1270 = vadd.f32 %v1248, %v1253
      %v1271 = vpack.c.bf16 %v1256, %v1255
      %v1272 = vpack.c.bf16 %v1258, %v1257
      %v1273 = vpack.c.bf16 %v1260, %v1259
      %v1274 = vpack.c.bf16 %v1262, %v1261
      %v1275 = vpack.c.bf16 %v1264, %v1263
      %v1276 = vpack.c.bf16 %v1266, %v1265
      %v1277 = vpack.c.bf16 %v1268, %v1267
      %v1278 = vpack.c.bf16 %v1270, %v1269
      %v1279 = vld [vmem:[%s5] sm:$0xff]
      %v1280 = vld [vmem:[%s5 + $0x8] sm:$0xff]
      %v1281 = vld [vmem:[%s5 + $0x10] sm:$0xff]
      %v1282 = vld [vmem:[%s5 + $0x18] sm:$0xff]
      %v1283 = vld [vmem:[%s5 + $0x20] sm:$0xff]
      %v1284 = vld [vmem:[%s5 + $0x28] sm:$0xff]
      %v1285 = vld [vmem:[%s5 + $0x30] sm:$0xff]
      %v1286 = vld [vmem:[%s5 + $0x38] sm:$0xff]
      %v1287 = vld [vmem:[%s5 + $0x40] sm:$0xff]
      %v1288 = vld [vmem:[%s5 + $0x48] sm:$0xff]
      %v1289 = vld [vmem:[%s5 + $0x50] sm:$0xff]
      %v1290 = vld [vmem:[%s5 + $0x58] sm:$0xff]
      %v1291 = vld [vmem:[%s5 + $0x60] sm:$0xff]
      %v1292 = vld [vmem:[%s5 + $0x68] sm:$0xff]
      %v1293 = vld [vmem:[%s5 + $0x70] sm:$0xff]
      %v1294 = vld [vmem:[%s5 + $0x78] sm:$0xff]
      %v1295 = vld [vmem:[%s6] sm:$0x3]
      %v1297 = vlaneseq
      %v1298 = vshrl.u32 %v1297, 7
      %v1299 = vsub.s32 0, %v1298
      %v1300 = vrot.slane %v1295, %v1299
      %v1301 = vlaneseq
      %v1302 = vshrl.u32 %v1301, 7
      %v1303 = vsub.s32 1, %v1302
      %v1304 = vrot.slane %v1295, %v1303
      %v1323 = vunpack.c.l.b16 %v1279
      %v1324 = vunpack.c.h.b16 %v1279
      %v1325 = vunpack.c.l.b16 %v1280
      %v1326 = vunpack.c.h.b16 %v1280
      %v1327 = vunpack.c.l.b16 %v1281
      %v1328 = vunpack.c.h.b16 %v1281
      %v1329 = vunpack.c.l.b16 %v1282
      %v1330 = vunpack.c.h.b16 %v1282
      %v1331 = vunpack.c.l.b16 %v1283
      %v1332 = vunpack.c.h.b16 %v1283
      %v1333 = vunpack.c.l.b16 %v1284
      %v1334 = vunpack.c.h.b16 %v1284
      %v1335 = vunpack.c.l.b16 %v1285
      %v1336 = vunpack.c.h.b16 %v1285
      %v1337 = vunpack.c.l.b16 %v1286
      %v1338 = vunpack.c.h.b16 %v1286
      %v1339 = vunpack.c.l.b16 %v1287
      %v1340 = vunpack.c.h.b16 %v1287
      %v1341 = vunpack.c.l.b16 %v1288
      %v1342 = vunpack.c.h.b16 %v1288
      %v1343 = vunpack.c.l.b16 %v1289
      %v1344 = vunpack.c.h.b16 %v1289
      %v1345 = vunpack.c.l.b16 %v1290
      %v1346 = vunpack.c.h.b16 %v1290
      %v1347 = vunpack.c.l.b16 %v1291
      %v1348 = vunpack.c.h.b16 %v1291
      %v1349 = vunpack.c.l.b16 %v1292
      %v1350 = vunpack.c.h.b16 %v1292
      %v1351 = vunpack.c.l.b16 %v1293
      %v1352 = vunpack.c.h.b16 %v1293
      %v1353 = vunpack.c.l.b16 %v1294
      %v1354 = vunpack.c.h.b16 %v1294
      %v1355 = vpack.c.b16 %v1325, %v1323
      %v1356 = vpack.c.b16 %v1326, %v1324
      %v1357 = vpack.c.b16 %v1329, %v1327
      %v1358 = vpack.c.b16 %v1330, %v1328
      %v1359 = vpack.c.b16 %v1333, %v1331
      %v1360 = vpack.c.b16 %v1334, %v1332
      %v1361 = vpack.c.b16 %v1337, %v1335
      %v1362 = vpack.c.b16 %v1338, %v1336
      %v1363 = vpack.c.b16 %v1341, %v1339
      %v1364 = vpack.c.b16 %v1342, %v1340
      %v1365 = vpack.c.b16 %v1345, %v1343
      %v1366 = vpack.c.b16 %v1346, %v1344
      %v1367 = vpack.c.b16 %v1349, %v1347
      %v1368 = vpack.c.b16 %v1350, %v1348
      %v1369 = vpack.c.b16 %v1353, %v1351
      %v1370 = vpack.c.b16 %v1354, %v1352
      %1387 = vmatprep.subr.bf16.mxu0 %v1356
      %1388 = vmatpush1.bf16.msra.mxu0 %v1355
      %1389 = vmatprep.subr.bf16.mxu0 %v1358
      %1390 = vmatpush1.bf16.msra.mxu0 %v1357
      %1391 = vmatprep.subr.bf16.mxu0 %v1360
      %1392 = vmatpush1.bf16.msra.mxu0 %v1359
      %1393 = vmatprep.subr.bf16.mxu0 %v1362
      %1394 = vmatpush1.bf16.msra.mxu0 %v1361
      %1395 = vmatprep.subr.bf16.mxu0 %v1364
      %1396 = vmatpush1.bf16.msra.mxu0 %v1363
      %1397 = vmatprep.subr.bf16.mxu0 %v1366
      %1398 = vmatpush1.bf16.msra.mxu0 %v1365
      %1399 = vmatprep.subr.bf16.mxu0 %v1368
      %1400 = vmatpush1.bf16.msra.mxu0 %v1367
      %1401 = vmatprep.subr.bf16.mxu0 %v1370
      %1402 = vmatpush1.bf16.msra.mxu0 %v1369
      %1403 = vmatprep.subr.bf16.mxu0 0
      %1404 = vmatpush1.bf16.msra.mxu0 0
      %1405 = vmatprep.subr.bf16.mxu0 0
      %1406 = vmatpush1.bf16.msra.mxu0 0
      %1407 = vmatprep.subr.bf16.mxu0 0
      %1408 = vmatpush1.bf16.msra.mxu0 0
      %1409 = vmatprep.subr.bf16.mxu0 0
      %1410 = vmatpush1.bf16.msra.mxu0 0
      %1411 = vmatprep.subr.bf16.mxu0 0
      %1412 = vmatpush1.bf16.msra.mxu0 0
      %1413 = vmatprep.subr.bf16.mxu0 0
      %1414 = vmatpush1.bf16.msra.mxu0 0
      %1415 = vmatprep.subr.bf16.mxu0 0
      %1416 = vmatpush1.bf16.msra.mxu0 0
      %1417 = vmatprep.subr.bf16.mxu0 0
      %1418 = vmatpush1.bf16.msra.mxu0 0
      %1419 = vmatprep.mubr.bf16.mxu0 0
      %1420 = vmatmul.mubr.bf16.gmra.mrb[0].mxu0 %v1271
      %v1421 = vpop.f32.mrb[0].mxu0
      %v1422 = vadd.f32 %v1300, %v1421
      %v1423 = vpop.f32.mrb[0].mxu0
      %v1424 = vadd.f32 %v1304, %v1423
      %v1425 = vpop.f32.mrb[0].mxu0
      %v1426 = vadd.f32 %v1300, %v1425
      %v1427 = vpop.f32.mrb[0].mxu0
      %v1428 = vadd.f32 %v1304, %v1427
      %1429 = vmatprep.mubr.bf16.mxu0 0
      %1430 = vmatmul.mubr.bf16.gmra.mrb[0].mxu0 %v1272
      %v1431 = vpop.f32.mrb[0].mxu0
      %v1432 = vadd.f32 %v1300, %v1431
      %v1433 = vpop.f32.mrb[0].mxu0
      %v1434 = vadd.f32 %v1304, %v1433
      %v1435 = vpop.f32.mrb[0].mxu0
      %v1436 = vadd.f32 %v1300, %v1435
      %v1437 = vpop.f32.mrb[0].mxu0
      %v1438 = vadd.f32 %v1304, %v1437
      %1439 = vmatprep.mubr.bf16.mxu0 0
      %1440 = vmatmul.mubr.bf16.gmra.mrb[0].mxu0 %v1273
      %v1441 = vpop.f32.mrb[0].mxu0
      %v1442 = vadd.f32 %v1300, %v1441
      %v1443 = vpop.f32.mrb[0].mxu0
      %v1444 = vadd.f32 %v1304, %v1443
      %v1445 = vpop.f32.mrb[0].mxu0
      %v1446 = vadd.f32 %v1300, %v1445
      %v1447 = vpop.f32.mrb[0].mxu0
      %v1448 = vadd.f32 %v1304, %v1447
      %1449 = vmatprep.mubr.bf16.mxu0 0
      %1450 = vmatmul.mubr.bf16.gmra.mrb[0].mxu0 %v1274
      %v1451 = vpop.f32.mrb[0].mxu0
      %v1452 = vadd.f32 %v1300, %v1451
      %v1453 = vpop.f32.mrb[0].mxu0
      %v1454 = vadd.f32 %v1304, %v1453
      %v1455 = vpop.f32.mrb[0].mxu0
      %v1456 = vadd.f32 %v1300, %v1455
      %v1457 = vpop.f32.mrb[0].mxu0
      %v1458 = vadd.f32 %v1304, %v1457
      %1459 = vmatprep.mubr.bf16.mxu0 0
      %1460 = vmatmul.mubr.bf16.gmra.mrb[0].mxu0 %v1275
      %v1461 = vpop.f32.mrb[0].mxu0
      %v1462 = vadd.f32 %v1300, %v1461
      %v1463 = vpop.f32.mrb[0].mxu0
      %v1464 = vadd.f32 %v1304, %v1463
      %v1465 = vpop.f32.mrb[0].mxu0
      %v1466 = vadd.f32 %v1300, %v1465
      %v1467 = vpop.f32.mrb[0].mxu0
      %v1468 = vadd.f32 %v1304, %v1467
      %1469 = vmatprep.mubr.bf16.mxu0 0
      %1470 = vmatmul.mubr.bf16.gmra.mrb[0].mxu0 %v1276
      %v1471 = vpop.f32.mrb[0].mxu0
      %v1472 = vadd.f32 %v1300, %v1471
      %v1473 = vpop.f32.mrb[0].mxu0
      %v1474 = vadd.f32 %v1304, %v1473
      %v1475 = vpop.f32.mrb[0].mxu0
      %v1476 = vadd.f32 %v1300, %v1475
      %v1477 = vpop.f32.mrb[0].mxu0
      %v1478 = vadd.f32 %v1304, %v1477
      %1479 = vmatprep.mubr.bf16.mxu0 0
      %1480 = vmatmul.mubr.bf16.gmra.mrb[0].mxu0 %v1277
      %v1481 = vpop.f32.mrb[0].mxu0
      %v1482 = vadd.f32 %v1300, %v1481
      %v1483 = vpop.f32.mrb[0].mxu0
      %v1484 = vadd.f32 %v1304, %v1483
      %v1485 = vpop.f32.mrb[0].mxu0
      %v1486 = vadd.f32 %v1300, %v1485
      %v1487 = vpop.f32.mrb[0].mxu0
      %v1488 = vadd.f32 %v1304, %v1487
      %1489 = vmatprep.mubr.bf16.mxu0 0
      %1490 = vmatmul.mubr.bf16.gmra.mrb[0].mxu0 %v1278
      %v1491 = vpop.f32.mrb[0].mxu0
      %v1492 = vadd.f32 %v1300, %v1491
      %v1493 = vpop.f32.mrb[0].mxu0
      %v1494 = vadd.f32 %v1304, %v1493
      %v1495 = vpop.f32.mrb[0].mxu0
      %v1496 = vadd.f32 %v1300, %v1495
      %v1497 = vpop.f32.mrb[0].mxu0
      %v1498 = vadd.f32 %v1304, %v1497
      %1499 = vdwg.mxu0
      %v1500 = vpack.c.bf16 %v920, %v919
      %v1501 = vpack.c.bf16 %v922, %v921
      %v1502 = vpack.c.bf16 %v924, %v923
      %v1503 = vpack.c.bf16 %v926, %v925
      %v1504 = vpack.c.bf16 %v928, %v927
      %v1505 = vpack.c.bf16 %v930, %v929
      %v1506 = vpack.c.bf16 %v932, %v931
      %v1507 = vpack.c.bf16 %v934, %v933
      %v1508 = vld [vmem:[%s7] sm:$0xf]
      %v1509 = vld [vmem:[%s7 + $0x4] sm:$0xf]
      %v1510 = vld [vmem:[%s7 + $0x8] sm:$0xf]
      %v1511 = vld [vmem:[%s7 + $0xc] sm:$0xf]
      %v1512 = vld [vmem:[%s7 + $0x10] sm:$0xf]
      %v1513 = vld [vmem:[%s7 + $0x14] sm:$0xf]
      %v1514 = vld [vmem:[%s7 + $0x18] sm:$0xf]
      %v1515 = vld [vmem:[%s7 + $0x1c] sm:$0xf]
      %v1516 = vld [vmem:[%s7 + $0x20] sm:$0xf]
      %v1517 = vld [vmem:[%s7 + $0x24] sm:$0xf]
      %v1518 = vld [vmem:[%s7 + $0x28] sm:$0xf]
      %v1519 = vld [vmem:[%s7 + $0x2c] sm:$0xf]
      %v1520 = vld [vmem:[%s7 + $0x30] sm:$0xf]
      %v1521 = vld [vmem:[%s7 + $0x34] sm:$0xf]
      %v1522 = vld [vmem:[%s7 + $0x38] sm:$0xf]
      %v1523 = vld [vmem:[%s7 + $0x3c] sm:$0xf]
      %v1524 = vld [vmem:[%s8] sm:$0x1]
      %v1526 = vlaneseq
      %v1527 = vshrl.u32 %v1526, 7
      %v1528 = vsub.s32 0, %v1527
      %v1529 = vrot.slane %v1524, %v1528
      %v1547 = vunpack.c.l.b16 %v1508
      %v1548 = vunpack.c.l.b16 %v1509
      %v1549 = vunpack.c.l.b16 %v1510
      %v1550 = vunpack.c.l.b16 %v1511
      %v1551 = vunpack.c.l.b16 %v1512
      %v1552 = vunpack.c.l.b16 %v1513
      %v1553 = vunpack.c.l.b16 %v1514
      %v1554 = vunpack.c.l.b16 %v1515
      %v1555 = vunpack.c.l.b16 %v1516
      %v1556 = vunpack.c.l.b16 %v1517
      %v1557 = vunpack.c.l.b16 %v1518
      %v1558 = vunpack.c.l.b16 %v1519
      %v1559 = vunpack.c.l.b16 %v1520
      %v1560 = vunpack.c.l.b16 %v1521
      %v1561 = vunpack.c.l.b16 %v1522
      %v1562 = vunpack.c.l.b16 %v1523
      %v1563 = vpack.c.b16 %v1548, %v1547
      %v1564 = vpack.c.b16 %v1550, %v1549
      %v1565 = vpack.c.b16 %v1552, %v1551
      %v1566 = vpack.c.b16 %v1554, %v1553
      %v1567 = vpack.c.b16 %v1556, %v1555
      %v1568 = vpack.c.b16 %v1558, %v1557
      %v1569 = vpack.c.b16 %v1560, %v1559
      %v1570 = vpack.c.b16 %v1562, %v1561
      %1579 = vmatprep.subr.bf16.mxu0 0
      %1580 = vmatpush1.bf16.msra.mxu0 %v1563
      %1581 = vmatprep.subr.bf16.mxu0 0
      %1582 = vmatpush1.bf16.msra.mxu0 %v1564
      %1583 = vmatprep.subr.bf16.mxu0 0
      %1584 = vmatpush1.bf16.msra.mxu0 %v1565
      %1585 = vmatprep.subr.bf16.mxu0 0
      %1586 = vmatpush1.bf16.msra.mxu0 %v1566
      %1587 = vmatprep.subr.bf16.mxu0 0
      %1588 = vmatpush1.bf16.msra.mxu0 %v1567
      %1589 = vmatprep.subr.bf16.mxu0 0
      %1590 = vmatpush1.bf16.msra.mxu0 %v1568
      %1591 = vmatprep.subr.bf16.mxu0 0
      %1592 = vmatpush1.bf16.msra.mxu0 %v1569
      %1593 = vmatprep.subr.bf16.mxu0 0
      %1594 = vmatpush1.bf16.msra.mxu0 %v1570
      %1595 = vmatprep.subr.bf16.mxu0 0
      %1596 = vmatpush1.bf16.msra.mxu0 0
      %1597 = vmatprep.subr.bf16.mxu0 0
      %1598 = vmatpush1.bf16.msra.mxu0 0
      %1599 = vmatprep.subr.bf16.mxu0 0
      %1600 = vmatpush1.bf16.msra.mxu0 0
      %1601 = vmatprep.subr.bf16.mxu0 0
      %1602 = vmatpush1.bf16.msra.mxu0 0
      %1603 = vmatprep.subr.bf16.mxu0 0
      %1604 = vmatpush1.bf16.msra.mxu0 0
      %1605 = vmatprep.subr.bf16.mxu0 0
      %1606 = vmatpush1.bf16.msra.mxu0 0
      %1607 = vmatprep.subr.bf16.mxu0 0
      %1608 = vmatpush1.bf16.msra.mxu0 0
      %1609 = vmatprep.subr.bf16.mxu0 0
      %1610 = vmatpush1.bf16.msra.mxu0 0
      %1611 = vmatprep.mubr.bf16.mxu0 0
      %1612 = vmatmul.mubr.bf16.gmra.mrb[0].mxu0 %v1500
      %v1613 = vpop.f32.mrb[0].mxu0
      %v1614 = vadd.f32 %v1529, %v1613
      %v1615 = vpop.f32.mrb[0].mxu0
      %v1616 = vpop.f32.mrb[0].mxu0
      %v1617 = vadd.f32 %v1529, %v1616
      %v1618 = vpop.f32.mrb[0].mxu0
      %1619 = vmatprep.mubr.bf16.mxu0 0
      %1620 = vmatmul.mubr.bf16.gmra.mrb[0].mxu0 %v1501
      %v1621 = vpop.f32.mrb[0].mxu0
      %v1622 = vadd.f32 %v1529, %v1621
      %v1623 = vpop.f32.mrb[0].mxu0
      %v1624 = vpop.f32.mrb[0].mxu0
      %v1625 = vadd.f32 %v1529, %v1624
      %v1626 = vpop.f32.mrb[0].mxu0
      %1627 = vmatprep.mubr.bf16.mxu0 0
      %1628 = vmatmul.mubr.bf16.gmra.mrb[0].mxu0 %v1502
      %v1629 = vpop.f32.mrb[0].mxu0
      %v1630 = vadd.f32 %v1529, %v1629
      %v1631 = vpop.f32.mrb[0].mxu0
      %v1632 = vpop.f32.mrb[0].mxu0
      %v1633 = vadd.f32 %v1529, %v1632
      %v1634 = vpop.f32.mrb[0].mxu0
      %1635 = vmatprep.mubr.bf16.mxu0 0
      %1636 = vmatmul.mubr.bf16.gmra.mrb[0].mxu0 %v1503
      %v1637 = vpop.f32.mrb[0].mxu0
      %v1638 = vadd.f32 %v1529, %v1637
      %v1639 = vpop.f32.mrb[0].mxu0
      %v1640 = vpop.f32.mrb[0].mxu0
      %v1641 = vadd.f32 %v1529, %v1640
      %v1642 = vpop.f32.mrb[0].mxu0
      %1643 = vmatprep.mubr.bf16.mxu0 0
      %1644 = vmatmul.mubr.bf16.gmra.mrb[0].mxu0 %v1504
      %v1645 = vpop.f32.mrb[0].mxu0
      %v1646 = vadd.f32 %v1529, %v1645
      %v1647 = vpop.f32.mrb[0].mxu0
      %v1648 = vpop.f32.mrb[0].mxu0
      %v1649 = vadd.f32 %v1529, %v1648
      %v1650 = vpop.f32.mrb[0].mxu0
      %1651 = vmatprep.mubr.bf16.mxu0 0
      %1652 = vmatmul.mubr.bf16.gmra.mrb[0].mxu0 %v1505
      %v1653 = vpop.f32.mrb[0].mxu0
      %v1654 = vadd.f32 %v1529, %v1653
      %v1655 = vpop.f32.mrb[0].mxu0
      %v1656 = vpop.f32.mrb[0].mxu0
      %v1657 = vadd.f32 %v1529, %v1656
      %v1658 = vpop.f32.mrb[0].mxu0
      %1659 = vmatprep.mubr.bf16.mxu0 0
      %1660 = vmatmul.mubr.bf16.gmra.mrb[0].mxu0 %v1506
      %v1661 = vpop.f32.mrb[0].mxu0
      %v1662 = vadd.f32 %v1529, %v1661
      %v1663 = vpop.f32.mrb[0].mxu0
      %v1664 = vpop.f32.mrb[0].mxu0
      %v1665 = vadd.f32 %v1529, %v1664
      %v1666 = vpop.f32.mrb[0].mxu0
      %1667 = vmatprep.mubr.bf16.mxu0 0
      %1668 = vmatmul.mubr.bf16.gmra.mrb[0].mxu0 %v1507
      %v1669 = vpop.f32.mrb[0].mxu0
      %v1670 = vadd.f32 %v1529, %v1669
      %v1671 = vpop.f32.mrb[0].mxu0
      %v1672 = vpop.f32.mrb[0].mxu0
      %v1673 = vadd.f32 %v1529, %v1672
      %v1674 = vpop.f32.mrb[0].mxu0
      %1675 = vdwg.mxu0
      %v1676 = vsub.f32 %v1424, %v1614
      %v1677 = vsub.f32 %v1428, %v1617
      %v1678 = vsub.f32 %v1434, %v1622
      %v1679 = vsub.f32 %v1438, %v1625
      %v1680 = vsub.f32 %v1444, %v1630
      %v1681 = vsub.f32 %v1448, %v1633
      %v1682 = vsub.f32 %v1454, %v1638
      %v1683 = vsub.f32 %v1458, %v1641
      %v1684 = vsub.f32 %v1464, %v1646
      %v1685 = vsub.f32 %v1468, %v1649
      %v1686 = vsub.f32 %v1474, %v1654
      %v1687 = vsub.f32 %v1478, %v1657
      %v1688 = vsub.f32 %v1484, %v1662
      %v1689 = vsub.f32 %v1488, %v1665
      %v1690 = vsub.f32 %v1494, %v1670
      %v1691 = vsub.f32 %v1498, %v1673
      %v1692 = vmul.f32 %v1422, %v1676
      %v1693 = vmul.f32 %v1426, %v1677
      %v1694 = vmul.f32 %v1432, %v1678
      %v1695 = vmul.f32 %v1436, %v1679
      %v1696 = vmul.f32 %v1442, %v1680
      %v1697 = vmul.f32 %v1446, %v1681
      %v1698 = vmul.f32 %v1452, %v1682
      %v1699 = vmul.f32 %v1456, %v1683
      %v1700 = vmul.f32 %v1462, %v1684
      %v1701 = vmul.f32 %v1466, %v1685
      %v1702 = vmul.f32 %v1472, %v1686
      %v1703 = vmul.f32 %v1476, %v1687
      %v1704 = vmul.f32 %v1482, %v1688
      %v1705 = vmul.f32 %v1486, %v1689
      %v1706 = vmul.f32 %v1492, %v1690
      %v1707 = vmul.f32 %v1496, %v1691
      %v1708 = vpack.c.bf16 %v1693, %v1692
      %v1709 = vpack.c.bf16 %v1695, %v1694
      %v1710 = vpack.c.bf16 %v1697, %v1696
      %v1711 = vpack.c.bf16 %v1699, %v1698
      %v1712 = vpack.c.bf16 %v1701, %v1700
      %v1713 = vpack.c.bf16 %v1703, %v1702
      %v1714 = vpack.c.bf16 %v1705, %v1704
      %v1715 = vpack.c.bf16 %v1707, %v1706
      %v1716 = vld [vmem:[%s11] sm:$0xf]
      %v1717 = vld [vmem:[%s11 + $0x4] sm:$0xf]
      %v1718 = vld [vmem:[%s11 + $0x8] sm:$0xf]
      %v1719 = vld [vmem:[%s11 + $0xc] sm:$0xf]
      %v1720 = vld [vmem:[%s11 + $0x10] sm:$0xf]
      %v1721 = vld [vmem:[%s11 + $0x14] sm:$0xf]
      %v1722 = vld [vmem:[%s11 + $0x18] sm:$0xf]
      %v1723 = vld [vmem:[%s11 + $0x1c] sm:$0xf]
      %v1724 = vld [vmem:[%s11 + $0x20] sm:$0xf]
      %v1725 = vld [vmem:[%s11 + $0x24] sm:$0xf]
      %v1726 = vld [vmem:[%s11 + $0x28] sm:$0xf]
      %v1727 = vld [vmem:[%s11 + $0x2c] sm:$0xf]
      %v1728 = vld [vmem:[%s11 + $0x30] sm:$0xf]
      %v1729 = vld [vmem:[%s11 + $0x34] sm:$0xf]
      %v1730 = vld [vmem:[%s11 + $0x38] sm:$0xf]
      %v1731 = vld [vmem:[%s11 + $0x3c] sm:$0xf]
      %v1748 = vunpack.c.l.b16 %v1716
      %v1749 = vunpack.c.l.b16 %v1717
      %v1750 = vunpack.c.l.b16 %v1718
      %v1751 = vunpack.c.l.b16 %v1719
      %v1752 = vunpack.c.l.b16 %v1720
      %v1753 = vunpack.c.l.b16 %v1721
      %v1754 = vunpack.c.l.b16 %v1722
      %v1755 = vunpack.c.l.b16 %v1723
      %v1756 = vunpack.c.l.b16 %v1724
      %v1757 = vunpack.c.l.b16 %v1725
      %v1758 = vunpack.c.l.b16 %v1726
      %v1759 = vunpack.c.l.b16 %v1727
      %v1760 = vunpack.c.l.b16 %v1728
      %v1761 = vunpack.c.l.b16 %v1729
      %v1762 = vunpack.c.l.b16 %v1730
      %v1763 = vunpack.c.l.b16 %v1731
      %v1764 = vpack.c.b16 %v1749, %v1748
      %v1765 = vpack.c.b16 %v1751, %v1750
      %v1766 = vpack.c.b16 %v1753, %v1752
      %v1767 = vpack.c.b16 %v1755, %v1754
      %v1768 = vpack.c.b16 %v1757, %v1756
      %v1769 = vpack.c.b16 %v1759, %v1758
      %v1770 = vpack.c.b16 %v1761, %v1760
      %v1771 = vpack.c.b16 %v1763, %v1762
      %1780 = vmatprep.subr.bf16.mxu0 0
      %1781 = vmatpush1.bf16.msra.mxu0 %v1764
      %1782 = vmatprep.subr.bf16.mxu0 0
      %1783 = vmatpush1.bf16.msra.mxu0 %v1765
      %1784 = vmatprep.subr.bf16.mxu0 0
      %1785 = vmatpush1.bf16.msra.mxu0 %v1766
      %1786 = vmatprep.subr.bf16.mxu0 0
      %1787 = vmatpush1.bf16.msra.mxu0 %v1767
      %1788 = vmatprep.subr.bf16.mxu0 0
      %1789 = vmatpush1.bf16.msra.mxu0 %v1768
      %1790 = vmatprep.subr.bf16.mxu0 0
      %1791 = vmatpush1.bf16.msra.mxu0 %v1769
      %1792 = vmatprep.subr.bf16.mxu0 0
      %1793 = vmatpush1.bf16.msra.mxu0 %v1770
      %1794 = vmatprep.subr.bf16.mxu0 0
      %1795 = vmatpush1.bf16.msra.mxu0 %v1771
      %1796 = vmatprep.subr.bf16.mxu0 0
      %1797 = vmatpush1.bf16.msra.mxu0 0
      %1798 = vmatprep.subr.bf16.mxu0 0
      %1799 = vmatpush1.bf16.msra.mxu0 0
      %1800 = vmatprep.subr.bf16.mxu0 0
      %1801 = vmatpush1.bf16.msra.mxu0 0
      %1802 = vmatprep.subr.bf16.mxu0 0
      %1803 = vmatpush1.bf16.msra.mxu0 0
      %1804 = vmatprep.subr.bf16.mxu0 0
      %1805 = vmatpush1.bf16.msra.mxu0 0
      %1806 = vmatprep.subr.bf16.mxu0 0
      %1807 = vmatpush1.bf16.msra.mxu0 0
      %1808 = vmatprep.subr.bf16.mxu0 0
      %1809 = vmatpush1.bf16.msra.mxu0 0
      %1810 = vmatprep.subr.bf16.mxu0 0
      %1811 = vmatpush1.bf16.msra.mxu0 0
      %1812 = vmatprep.mubr.bf16.mxu0 0
      %1813 = vmatmul.mubr.bf16.gmra.mrb[0].mxu0 %v1708
      %v1814 = vpop.f32.mrb[0].mxu0
      %v1815 = vadd.f32 0.0, %v1814
      %v1816 = vpop.f32.mrb[0].mxu0
      %v1817 = vpop.f32.mrb[0].mxu0
      %v1818 = vadd.f32 0.0, %v1817
      %v1819 = vpop.f32.mrb[0].mxu0
      %1820 = vmatprep.mubr.bf16.mxu0 0
      %1821 = vmatmul.mubr.bf16.gmra.mrb[0].mxu0 %v1709
      %v1822 = vpop.f32.mrb[0].mxu0
      %v1823 = vadd.f32 0.0, %v1822
      %v1824 = vpop.f32.mrb[0].mxu0
      %v1825 = vpop.f32.mrb[0].mxu0
      %v1826 = vadd.f32 0.0, %v1825
      %v1827 = vpop.f32.mrb[0].mxu0
      %1828 = vmatprep.mubr.bf16.mxu0 0
      %1829 = vmatmul.mubr.bf16.gmra.mrb[0].mxu0 %v1710
      %v1830 = vpop.f32.mrb[0].mxu0
      %v1831 = vadd.f32 0.0, %v1830
      %v1832 = vpop.f32.mrb[0].mxu0
      %v1833 = vpop.f32.mrb[0].mxu0
      %v1834 = vadd.f32 0.0, %v1833
      %v1835 = vpop.f32.mrb[0].mxu0
      %1836 = vmatprep.mubr.bf16.mxu0 0
      %1837 = vmatmul.mubr.bf16.gmra.mrb[0].mxu0 %v1711
      %v1838 = vpop.f32.mrb[0].mxu0
      %v1839 = vadd.f32 0.0, %v1838
      %v1840 = vpop.f32.mrb[0].mxu0
      %v1841 = vpop.f32.mrb[0].mxu0
      %v1842 = vadd.f32 0.0, %v1841
      %v1843 = vpop.f32.mrb[0].mxu0
      %1844 = vmatprep.mubr.bf16.mxu0 0
      %1845 = vmatmul.mubr.bf16.gmra.mrb[0].mxu0 %v1712
      %v1846 = vpop.f32.mrb[0].mxu0
      %v1847 = vadd.f32 0.0, %v1846
      %v1848 = vpop.f32.mrb[0].mxu0
      %v1849 = vpop.f32.mrb[0].mxu0
      %v1850 = vadd.f32 0.0, %v1849
      %v1851 = vpop.f32.mrb[0].mxu0
      %1852 = vmatprep.mubr.bf16.mxu0 0
      %1853 = vmatmul.mubr.bf16.gmra.mrb[0].mxu0 %v1713
      %v1854 = vpop.f32.mrb[0].mxu0
      %v1855 = vadd.f32 0.0, %v1854
      %v1856 = vpop.f32.mrb[0].mxu0
      %v1857 = vpop.f32.mrb[0].mxu0
      %v1858 = vadd.f32 0.0, %v1857
      %v1859 = vpop.f32.mrb[0].mxu0
      %1860 = vmatprep.mubr.bf16.mxu0 0
      %1861 = vmatmul.mubr.bf16.gmra.mrb[0].mxu0 %v1714
      %v1862 = vpop.f32.mrb[0].mxu0
      %v1863 = vadd.f32 0.0, %v1862
      %v1864 = vpop.f32.mrb[0].mxu0
      %v1865 = vpop.f32.mrb[0].mxu0
      %v1866 = vadd.f32 0.0, %v1865
      %v1867 = vpop.f32.mrb[0].mxu0
      %1868 = vmatprep.mubr.bf16.mxu0 0
      %1869 = vmatmul.mubr.bf16.gmra.mrb[0].mxu0 %v1715
      %v1870 = vpop.f32.mrb[0].mxu0
      %v1871 = vadd.f32 0.0, %v1870
      %v1872 = vpop.f32.mrb[0].mxu0
      %v1873 = vpop.f32.mrb[0].mxu0
      %v1874 = vadd.f32 0.0, %v1873
      %v1875 = vpop.f32.mrb[0].mxu0
      %1876 = vdwg.mxu0
      %v1877 = vxor.u32 %v1815, 2147483648
      %v1878 = vxor.u32 %v1818, 2147483648
      %v1879 = vxor.u32 %v1823, 2147483648
      %v1880 = vxor.u32 %v1826, 2147483648
      %v1881 = vxor.u32 %v1831, 2147483648
      %v1882 = vxor.u32 %v1834, 2147483648
      %v1883 = vxor.u32 %v1839, 2147483648
      %v1884 = vxor.u32 %v1842, 2147483648
      %v1885 = vxor.u32 %v1847, 2147483648
      %v1886 = vxor.u32 %v1850, 2147483648
      %v1887 = vxor.u32 %v1855, 2147483648
      %v1888 = vxor.u32 %v1858, 2147483648
      %v1889 = vxor.u32 %v1863, 2147483648
      %v1890 = vxor.u32 %v1866, 2147483648
      %v1891 = vxor.u32 %v1871, 2147483648
      %v1892 = vxor.u32 %v1874, 2147483648
      %v1893 = vmul.f32 %v1877, 1.442695
      %v1894 = vpow.pop %v1893
      %v1895 = vmul.f32 %v1878, 1.442695
      %v1896 = vpow.pop %v1895
      %v1897 = vmul.f32 %v1879, 1.442695
      %v1898 = vpow.pop %v1897
      %v1899 = vmul.f32 %v1880, 1.442695
      %v1900 = vpow.pop %v1899
      %v1901 = vmul.f32 %v1881, 1.442695
      %v1902 = vpow.pop %v1901
      %v1903 = vmul.f32 %v1882, 1.442695
      %v1904 = vpow.pop %v1903
      %v1905 = vmul.f32 %v1883, 1.442695
      %v1906 = vpow.pop %v1905
      %v1907 = vmul.f32 %v1884, 1.442695
      %v1908 = vpow.pop %v1907
      %v1909 = vmul.f32 %v1885, 1.442695
      %v1910 = vpow.pop %v1909
      %v1911 = vmul.f32 %v1886, 1.442695
      %v1912 = vpow.pop %v1911
      %v1913 = vmul.f32 %v1887, 1.442695
      %v1914 = vpow.pop %v1913
      %v1915 = vmul.f32 %v1888, 1.442695
      %v1916 = vpow.pop %v1915
      %v1917 = vmul.f32 %v1889, 1.442695
      %v1918 = vpow.pop %v1917
      %v1919 = vmul.f32 %v1890, 1.442695
      %v1920 = vpow.pop %v1919
      %v1921 = vmul.f32 %v1891, 1.442695
      %v1922 = vpow.pop %v1921
      %v1923 = vmul.f32 %v1892, 1.442695
      %v1924 = vpow.pop %v1923
      %v1925 = vadd.f32 %v1894, 1.0
      %v1926 = vadd.f32 %v1896, 1.0
      %v1927 = vadd.f32 %v1898, 1.0
      %v1928 = vadd.f32 %v1900, 1.0
      %v1929 = vadd.f32 %v1902, 1.0
      %v1930 = vadd.f32 %v1904, 1.0
      %v1931 = vadd.f32 %v1906, 1.0
      %v1932 = vadd.f32 %v1908, 1.0
      %v1933 = vadd.f32 %v1910, 1.0
      %v1934 = vadd.f32 %v1912, 1.0
      %v1935 = vadd.f32 %v1914, 1.0
      %v1936 = vadd.f32 %v1916, 1.0
      %v1937 = vadd.f32 %v1918, 1.0
      %v1938 = vadd.f32 %v1920, 1.0
      %v1939 = vadd.f32 %v1922, 1.0
      %v1940 = vadd.f32 %v1924, 1.0
      %v1941 = vrcp.pop %v1925
      %v1942 = vmul.f32 1.0, %v1941
      %v1943 = vrcp.pop %v1926
      %v1944 = vmul.f32 1.0, %v1943
      %v1945 = vrcp.pop %v1927
      %v1946 = vmul.f32 1.0, %v1945
      %v1947 = vrcp.pop %v1928
      %v1948 = vmul.f32 1.0, %v1947
      %v1949 = vrcp.pop %v1929
      %v1950 = vmul.f32 1.0, %v1949
      %v1951 = vrcp.pop %v1930
      %v1952 = vmul.f32 1.0, %v1951
      %v1953 = vrcp.pop %v1931
      %v1954 = vmul.f32 1.0, %v1953
      %v1955 = vrcp.pop %v1932
      %v1956 = vmul.f32 1.0, %v1955
      %v1957 = vrcp.pop %v1933
      %v1958 = vmul.f32 1.0, %v1957
      %v1959 = vrcp.pop %v1934
      %v1960 = vmul.f32 1.0, %v1959
      %v1961 = vrcp.pop %v1935
      %v1962 = vmul.f32 1.0, %v1961
      %v1963 = vrcp.pop %v1936
      %v1964 = vmul.f32 1.0, %v1963
      %v1965 = vrcp.pop %v1937
      %v1966 = vmul.f32 1.0, %v1965
      %v1967 = vrcp.pop %v1938
      %v1968 = vmul.f32 1.0, %v1967
      %v1969 = vrcp.pop %v1939
      %v1970 = vmul.f32 1.0, %v1969
      %v1971 = vrcp.pop %v1940
      %v1972 = vmul.f32 1.0, %v1971
      %v1973 = vpack.c.bf16 %v1944, %v1942
      %v1974 = vpack.c.bf16 %v1948, %v1946
      %v1975 = vpack.c.bf16 %v1952, %v1950
      %v1976 = vpack.c.bf16 %v1956, %v1954
      %v1977 = vpack.c.bf16 %v1960, %v1958
      %v1978 = vpack.c.bf16 %v1964, %v1962
      %v1979 = vpack.c.bf16 %v1968, %v1966
      %v1980 = vpack.c.bf16 %v1972, %v1970
      %v1981 = vld [vmem:[%s12] sm:$0xf]
      %vm1982 = vcmask 64512
      %v1984 = vsel %vm1982, %v1973, 0
      %v1987 = vsel %vm1982, %v1974, 0
      %v1990 = vsel %vm1982, %v1975, 0
      %v1993 = vsel %vm1982, %v1976, 0
      %v1996 = vsel %vm1982, %v1977, 0
      %v1999 = vsel %vm1982, %v1978, 0
      %v2002 = vsel %vm1982, %v1979, 0
      %v2005 = vsel %vm1982, %v1980, 0
      %vm2007 = vcmask 1043456
      %v2009 = vsel %vm2007, %v1981, 0
      %2011 = vmatprep.subr.bf16.mxu0 0
      %2012 = vmatpush1.bf16.msra.mxu0 %v2009
      %2013 = vmatprep.subr.bf16.mxu0 0
      %2014 = vmatpush1.bf16.msra.mxu0 0
      %2015 = vmatprep.subr.bf16.mxu0 0
      %2016 = vmatpush1.bf16.msra.mxu0 0
      %2017 = vmatprep.subr.bf16.mxu0 0
      %2018 = vmatpush1.bf16.msra.mxu0 0
      %2019 = vmatprep.subr.bf16.mxu0 0
      %2020 = vmatpush1.bf16.msra.mxu0 0
      %2021 = vmatprep.subr.bf16.mxu0 0
      %2022 = vmatpush1.bf16.msra.mxu0 0
      %2023 = vmatprep.subr.bf16.mxu0 0
      %2024 = vmatpush1.bf16.msra.mxu0 0
      %2025 = vmatprep.subr.bf16.mxu0 0
      %2026 = vmatpush1.bf16.msra.mxu0 0
      %2027 = vmatprep.subr.bf16.mxu0 0
      %2028 = vmatpush1.bf16.msra.mxu0 0
      %2029 = vmatprep.subr.bf16.mxu0 0
      %2030 = vmatpush1.bf16.msra.mxu0 0
      %2031 = vmatprep.subr.bf16.mxu0 0
      %2032 = vmatpush1.bf16.msra.mxu0 0
      %2033 = vmatprep.subr.bf16.mxu0 0
      %2034 = vmatpush1.bf16.msra.mxu0 0
      %2035 = vmatprep.subr.bf16.mxu0 0
      %2036 = vmatpush1.bf16.msra.mxu0 0
      %2037 = vmatprep.subr.bf16.mxu0 0
      %2038 = vmatpush1.bf16.msra.mxu0 0
      %2039 = vmatprep.subr.bf16.mxu0 0
      %2040 = vmatpush1.bf16.msra.mxu0 0
      %2041 = vmatprep.subr.bf16.mxu0 0
      %2042 = vmatpush1.bf16.msra.mxu0 0
      %2043 = vmatprep.mubr.bf16.mxu0 0
      %2044 = vmatmul.mubr.bf16.gmra.mrb[0].mxu0 %v1984
      %v2045 = vpop.f32.mrb[0].mxu0
      %v2046 = vadd.f32 0.0, %v2045
      %v2047 = vpop.f32.mrb[0].mxu0
      %v2048 = vpop.f32.mrb[0].mxu0
      %v2049 = vadd.f32 0.0, %v2048
      %v2050 = vpop.f32.mrb[0].mxu0
      %2051 = vmatprep.mubr.bf16.mxu0 0
      %2052 = vmatmul.mubr.bf16.gmra.mrb[0].mxu0 %v1987
      %v2053 = vpop.f32.mrb[0].mxu0
      %v2054 = vadd.f32 0.0, %v2053
      %v2055 = vpop.f32.mrb[0].mxu0
      %v2056 = vpop.f32.mrb[0].mxu0
      %v2057 = vadd.f32 0.0, %v2056
      %v2058 = vpop.f32.mrb[0].mxu0
      %2059 = vmatprep.mubr.bf16.mxu0 0
      %2060 = vmatmul.mubr.bf16.gmra.mrb[0].mxu0 %v1990
      %v2061 = vpop.f32.mrb[0].mxu0
      %v2062 = vadd.f32 0.0, %v2061
      %v2063 = vpop.f32.mrb[0].mxu0
      %v2064 = vpop.f32.mrb[0].mxu0
      %v2065 = vadd.f32 0.0, %v2064
      %v2066 = vpop.f32.mrb[0].mxu0
      %2067 = vmatprep.mubr.bf16.mxu0 0
      %2068 = vmatmul.mubr.bf16.gmra.mrb[0].mxu0 %v1993
      %v2069 = vpop.f32.mrb[0].mxu0
      %v2070 = vadd.f32 0.0, %v2069
      %v2071 = vpop.f32.mrb[0].mxu0
      %v2072 = vpop.f32.mrb[0].mxu0
      %v2073 = vadd.f32 0.0, %v2072
      %v2074 = vpop.f32.mrb[0].mxu0
      %2075 = vmatprep.mubr.bf16.mxu0 0
      %2076 = vmatmul.mubr.bf16.gmra.mrb[0].mxu0 %v1996
      %v2077 = vpop.f32.mrb[0].mxu0
      %v2078 = vadd.f32 0.0, %v2077
      %v2079 = vpop.f32.mrb[0].mxu0
      %v2080 = vpop.f32.mrb[0].mxu0
      %v2081 = vadd.f32 0.0, %v2080
      %v2082 = vpop.f32.mrb[0].mxu0
      %2083 = vmatprep.mubr.bf16.mxu0 0
      %2084 = vmatmul.mubr.bf16.gmra.mrb[0].mxu0 %v1999
      %v2085 = vpop.f32.mrb[0].mxu0
      %v2086 = vadd.f32 0.0, %v2085
      %v2087 = vpop.f32.mrb[0].mxu0
      %v2088 = vpop.f32.mrb[0].mxu0
      %v2089 = vadd.f32 0.0, %v2088
      %v2090 = vpop.f32.mrb[0].mxu0
      %2091 = vmatprep.mubr.bf16.mxu0 0
      %2092 = vmatmul.mubr.bf16.gmra.mrb[0].mxu0 %v2002
      %v2093 = vpop.f32.mrb[0].mxu0
      %v2094 = vadd.f32 0.0, %v2093
      %v2095 = vpop.f32.mrb[0].mxu0
      %v2096 = vpop.f32.mrb[0].mxu0
      %v2097 = vadd.f32 0.0, %v2096
      %v2098 = vpop.f32.mrb[0].mxu0
      %2099 = vmatprep.mubr.bf16.mxu0 0
      %2100 = vmatmul.mubr.bf16.gmra.mrb[0].mxu0 %v2005
      %v2101 = vpop.f32.mrb[0].mxu0
      %v2102 = vadd.f32 0.0, %v2101
      %v2103 = vpop.f32.mrb[0].mxu0
      %v2104 = vpop.f32.mrb[0].mxu0
      %v2105 = vadd.f32 0.0, %v2104
      %v2106 = vpop.f32.mrb[0].mxu0
      %2107 = vdwg.mxu0
      %v2108 = vmul.f32 %v2046, %v1676
      %v2109 = vmul.f32 %v2049, %v1677
      %v2110 = vmul.f32 %v2054, %v1678
      %v2111 = vmul.f32 %v2057, %v1679
      %v2112 = vmul.f32 %v2062, %v1680
      %v2113 = vmul.f32 %v2065, %v1681
      %v2114 = vmul.f32 %v2070, %v1682
      %v2115 = vmul.f32 %v2073, %v1683
      %v2116 = vmul.f32 %v2078, %v1684
      %v2117 = vmul.f32 %v2081, %v1685
      %v2118 = vmul.f32 %v2086, %v1686
      %v2119 = vmul.f32 %v2089, %v1687
      %v2120 = vmul.f32 %v2094, %v1688
      %v2121 = vmul.f32 %v2097, %v1689
      %v2122 = vmul.f32 %v2102, %v1690
      %v2123 = vmul.f32 %v2105, %v1691
      %v2124 = vadd.f32 %v1614, %v2108
      %v2125 = vadd.f32 %v1617, %v2109
      %v2126 = vadd.f32 %v1622, %v2110
      %v2127 = vadd.f32 %v1625, %v2111
      %v2128 = vadd.f32 %v1630, %v2112
      %v2129 = vadd.f32 %v1633, %v2113
      %v2130 = vadd.f32 %v1638, %v2114
      %v2131 = vadd.f32 %v1641, %v2115
      %v2132 = vadd.f32 %v1646, %v2116
      %v2133 = vadd.f32 %v1649, %v2117
      %v2134 = vadd.f32 %v1654, %v2118
      %v2135 = vadd.f32 %v1657, %v2119
      %v2136 = vadd.f32 %v1662, %v2120
      %v2137 = vadd.f32 %v1665, %v2121
      %v2138 = vadd.f32 %v1670, %v2122
      %v2139 = vadd.f32 %v1673, %v2123
      %v2140 = vpack.c.bf16 %v2125, %v2124
      %v2141 = vpack.c.bf16 %v2127, %v2126
      %v2142 = vpack.c.bf16 %v2129, %v2128
      %v2143 = vpack.c.bf16 %v2131, %v2130
      %v2144 = vpack.c.bf16 %v2133, %v2132
      %v2145 = vpack.c.bf16 %v2135, %v2134
      %v2146 = vpack.c.bf16 %v2137, %v2136
      %v2147 = vpack.c.bf16 %v2139, %v2138
      %v2148 = vld [vmem:[%s9] sm:$0xf]
      %v2149 = vld [vmem:[%s9 + $0x4] sm:$0xf]
      %v2150 = vld [vmem:[%s9 + $0x8] sm:$0xf]
      %v2151 = vld [vmem:[%s9 + $0xc] sm:$0xf]
      %v2152 = vld [vmem:[%s9 + $0x10] sm:$0xf]
      %v2153 = vld [vmem:[%s9 + $0x14] sm:$0xf]
      %v2154 = vld [vmem:[%s9 + $0x18] sm:$0xf]
      %v2155 = vld [vmem:[%s9 + $0x1c] sm:$0xf]
      %v2156 = vld [vmem:[%s9 + $0x20] sm:$0xf]
      %v2157 = vld [vmem:[%s9 + $0x24] sm:$0xf]
      %v2158 = vld [vmem:[%s9 + $0x28] sm:$0xf]
      %v2159 = vld [vmem:[%s9 + $0x2c] sm:$0xf]
      %v2160 = vld [vmem:[%s9 + $0x30] sm:$0xf]
      %v2161 = vld [vmem:[%s9 + $0x34] sm:$0xf]
      %v2162 = vld [vmem:[%s9 + $0x38] sm:$0xf]
      %v2163 = vld [vmem:[%s9 + $0x3c] sm:$0xf]
      %v2180 = vunpack.c.l.b16 %v2148
      %v2181 = vunpack.c.l.b16 %v2149
      %v2182 = vunpack.c.l.b16 %v2150
      %v2183 = vunpack.c.l.b16 %v2151
      %v2184 = vunpack.c.l.b16 %v2152
      %v2185 = vunpack.c.l.b16 %v2153
      %v2186 = vunpack.c.l.b16 %v2154
      %v2187 = vunpack.c.l.b16 %v2155
      %v2188 = vunpack.c.l.b16 %v2156
      %v2189 = vunpack.c.l.b16 %v2157
      %v2190 = vunpack.c.l.b16 %v2158
      %v2191 = vunpack.c.l.b16 %v2159
      %v2192 = vunpack.c.l.b16 %v2160
      %v2193 = vunpack.c.l.b16 %v2161
      %v2194 = vunpack.c.l.b16 %v2162
      %v2195 = vunpack.c.l.b16 %v2163
      %v2196 = vpack.c.b16 %v2181, %v2180
      %v2197 = vpack.c.b16 %v2183, %v2182
      %v2198 = vpack.c.b16 %v2185, %v2184
      %v2199 = vpack.c.b16 %v2187, %v2186
      %v2200 = vpack.c.b16 %v2189, %v2188
      %v2201 = vpack.c.b16 %v2191, %v2190
      %v2202 = vpack.c.b16 %v2193, %v2192
      %v2203 = vpack.c.b16 %v2195, %v2194
      %2212 = vmatprep.subr.bf16.mxu0 0
      %2213 = vmatpush1.bf16.msra.mxu0 %v2196
      %2214 = vmatprep.subr.bf16.mxu0 0
      %2215 = vmatpush1.bf16.msra.mxu0 %v2197
      %2216 = vmatprep.subr.bf16.mxu0 0
      %2217 = vmatpush1.bf16.msra.mxu0 %v2198
      %2218 = vmatprep.subr.bf16.mxu0 0
      %2219 = vmatpush1.bf16.msra.mxu0 %v2199
      %2220 = vmatprep.subr.bf16.mxu0 0
      %2221 = vmatpush1.bf16.msra.mxu0 %v2200
      %2222 = vmatprep.subr.bf16.mxu0 0
      %2223 = vmatpush1.bf16.msra.mxu0 %v2201
      %2224 = vmatprep.subr.bf16.mxu0 0
      %2225 = vmatpush1.bf16.msra.mxu0 %v2202
      %2226 = vmatprep.subr.bf16.mxu0 0
      %2227 = vmatpush1.bf16.msra.mxu0 %v2203
      %2228 = vmatprep.subr.bf16.mxu0 0
      %2229 = vmatpush1.bf16.msra.mxu0 0
      %2230 = vmatprep.subr.bf16.mxu0 0
      %2231 = vmatpush1.bf16.msra.mxu0 0
      %2232 = vmatprep.subr.bf16.mxu0 0
      %2233 = vmatpush1.bf16.msra.mxu0 0
      %2234 = vmatprep.subr.bf16.mxu0 0
      %2235 = vmatpush1.bf16.msra.mxu0 0
      %2236 = vmatprep.subr.bf16.mxu0 0
      %2237 = vmatpush1.bf16.msra.mxu0 0
      %2238 = vmatprep.subr.bf16.mxu0 0
      %2239 = vmatpush1.bf16.msra.mxu0 0
      %2240 = vmatprep.subr.bf16.mxu0 0
      %2241 = vmatpush1.bf16.msra.mxu0 0
      %2242 = vmatprep.subr.bf16.mxu0 0
      %2243 = vmatpush1.bf16.msra.mxu0 0
      %2244 = vmatprep.mubr.bf16.mxu0 0
      %2245 = vmatmul.mubr.bf16.gmra.mrb[0].mxu0 %v2140
      %v2246 = vpop.f32.mrb[0].mxu0
      %v2247 = vadd.f32 0.0, %v2246
      %v2248 = vpop.f32.mrb[0].mxu0
      %v2249 = vpop.f32.mrb[0].mxu0
      %v2250 = vadd.f32 0.0, %v2249
      %v2251 = vpop.f32.mrb[0].mxu0
      %2252 = vmatprep.mubr.bf16.mxu0 0
      %2253 = vmatmul.mubr.bf16.gmra.mrb[0].mxu0 %v2141
      %v2254 = vpop.f32.mrb[0].mxu0
      %v2255 = vadd.f32 0.0, %v2254
      %v2256 = vpop.f32.mrb[0].mxu0
      %v2257 = vpop.f32.mrb[0].mxu0
      %v2258 = vadd.f32 0.0, %v2257
      %v2259 = vpop.f32.mrb[0].mxu0
      %2260 = vmatprep.mubr.bf16.mxu0 0
      %2261 = vmatmul.mubr.bf16.gmra.mrb[0].mxu0 %v2142
      %v2262 = vpop.f32.mrb[0].mxu0
      %v2263 = vadd.f32 0.0, %v2262
      %v2264 = vpop.f32.mrb[0].mxu0
      %v2265 = vpop.f32.mrb[0].mxu0
      %v2266 = vadd.f32 0.0, %v2265
      %v2267 = vpop.f32.mrb[0].mxu0
      %2268 = vmatprep.mubr.bf16.mxu0 0
      %2269 = vmatmul.mubr.bf16.gmra.mrb[0].mxu0 %v2143
      %v2270 = vpop.f32.mrb[0].mxu0
      %v2271 = vadd.f32 0.0, %v2270
      %v2272 = vpop.f32.mrb[0].mxu0
      %v2273 = vpop.f32.mrb[0].mxu0
      %v2274 = vadd.f32 0.0, %v2273
      %v2275 = vpop.f32.mrb[0].mxu0
      %2276 = vmatprep.mubr.bf16.mxu0 0
      %2277 = vmatmul.mubr.bf16.gmra.mrb[0].mxu0 %v2144
      %v2278 = vpop.f32.mrb[0].mxu0
      %v2279 = vadd.f32 0.0, %v2278
      %v2280 = vpop.f32.mrb[0].mxu0
      %v2281 = vpop.f32.mrb[0].mxu0
      %v2282 = vadd.f32 0.0, %v2281
      %v2283 = vpop.f32.mrb[0].mxu0
      %2284 = vmatprep.mubr.bf16.mxu0 0
      %2285 = vmatmul.mubr.bf16.gmra.mrb[0].mxu0 %v2145
      %v2286 = vpop.f32.mrb[0].mxu0
      %v2287 = vadd.f32 0.0, %v2286
      %v2288 = vpop.f32.mrb[0].mxu0
      %v2289 = vpop.f32.mrb[0].mxu0
      %v2290 = vadd.f32 0.0, %v2289
      %v2291 = vpop.f32.mrb[0].mxu0
      %2292 = vmatprep.mubr.bf16.mxu0 0
      %2293 = vmatmul.mubr.bf16.gmra.mrb[0].mxu0 %v2146
      %v2294 = vpop.f32.mrb[0].mxu0
      %v2295 = vadd.f32 0.0, %v2294
      %v2296 = vpop.f32.mrb[0].mxu0
      %v2297 = vpop.f32.mrb[0].mxu0
      %v2298 = vadd.f32 0.0, %v2297
      %v2299 = vpop.f32.mrb[0].mxu0
      %2300 = vmatprep.mubr.bf16.mxu0 0
      %2301 = vmatmul.mubr.bf16.gmra.mrb[0].mxu0 %v2147
      %v2302 = vpop.f32.mrb[0].mxu0
      %v2303 = vadd.f32 0.0, %v2302
      %v2304 = vpop.f32.mrb[0].mxu0
      %v2305 = vpop.f32.mrb[0].mxu0
      %v2306 = vadd.f32 0.0, %v2305
      %v2307 = vpop.f32.mrb[0].mxu0
      %2308 = vdwg.mxu0
      %v2309 = vadd.f32 %v470, %v2247
      %v2310 = vadd.f32 %v471, %v2250
      %v2311 = vadd.f32 %v472, %v2255
      %v2312 = vadd.f32 %v473, %v2258
      %v2313 = vadd.f32 %v474, %v2263
      %v2314 = vadd.f32 %v475, %v2266
      %v2315 = vadd.f32 %v476, %v2271
      %v2316 = vadd.f32 %v477, %v2274
      %v2317 = vadd.f32 %v478, %v2279
      %v2318 = vadd.f32 %v479, %v2282
      %v2319 = vadd.f32 %v480, %v2287
      %v2320 = vadd.f32 %v481, %v2290
      %v2321 = vadd.f32 %v482, %v2295
      %v2322 = vadd.f32 %v483, %v2298
      %v2323 = vadd.f32 %v484, %v2303
      %v2324 = vadd.f32 %v485, %v2306
      %v2325 = vld [vmem:[%s10] sm:$0x1]
      %v2327 = vlaneseq
      %v2328 = vshrl.u32 %v2327, 7
      %v2329 = vsub.s32 0, %v2328
      %v2330 = vrot.slane %v2325, %v2329
      %v2332 = vadd.f32 %v2309, %v2330
      %v2333 = vadd.f32 %v2310, %v2330
      %v2334 = vadd.f32 %v2311, %v2330
      %v2335 = vadd.f32 %v2312, %v2330
      %v2336 = vadd.f32 %v2313, %v2330
      %v2337 = vadd.f32 %v2314, %v2330
      %v2338 = vadd.f32 %v2315, %v2330
      %v2339 = vadd.f32 %v2316, %v2330
      %v2340 = vadd.f32 %v2317, %v2330
      %v2341 = vadd.f32 %v2318, %v2330
      %v2342 = vadd.f32 %v2319, %v2330
      %v2343 = vadd.f32 %v2320, %v2330
      %v2344 = vadd.f32 %v2321, %v2330
      %v2345 = vadd.f32 %v2322, %v2330
      %v2346 = vadd.f32 %v2323, %v2330
      %v2347 = vadd.f32 %v2324, %v2330
      %2348 = vst [vmem:[%s467] sm:$0xff] %v2332
      %2349 = vst [vmem:[%s467 + $0x8] sm:$0xff] %v2333
      %2350 = vst [vmem:[%s467 + $0x10] sm:$0xff] %v2334
      %2351 = vst [vmem:[%s467 + $0x18] sm:$0xff] %v2335
      %2352 = vst [vmem:[%s467 + $0x20] sm:$0xff] %v2336
      %2353 = vst [vmem:[%s467 + $0x28] sm:$0xff] %v2337
      %2354 = vst [vmem:[%s467 + $0x30] sm:$0xff] %v2338
      %2355 = vst [vmem:[%s467 + $0x38] sm:$0xff] %v2339
      %2356 = vst [vmem:[%s467 + $0x40] sm:$0xff] %v2340
      %2357 = vst [vmem:[%s467 + $0x48] sm:$0xff] %v2341
      %2358 = vst [vmem:[%s467 + $0x50] sm:$0xff] %v2342
      %2359 = vst [vmem:[%s467 + $0x58] sm:$0xff] %v2343
      %2360 = vst [vmem:[%s467 + $0x60] sm:$0xff] %v2344
      %2361 = vst [vmem:[%s467 + $0x68] sm:$0xff] %v2345
      %2362 = vst [vmem:[%s467 + $0x70] sm:$0xff] %v2346
      %2363 = vst [vmem:[%s467 + $0x78] sm:$0xff] %v2347
      %s2364 = smul.u32 16, %s24
      %p2365 = scmp.lt.s32.totalorder %s2364, 31
      %s2366 = scalar_select %p2365, %s2364, 31
      %s2367 = smul.addr %s2366, 8
      %s2368 = scalar_lea.vmem %s13, %s2367
      // Predicated region
      $region73: #{gcnnm_forward.3} parent=71 // pred_check
        %p2369 = pneg %p325
      $region74: #{gcnnm_forward.3} parent=71 // pred_check_branch
        %2371 = sbr.rel (%p2369) target = $region76
      $region75: #{gcnnm_forward.3} parent=71 // pred_region
        %s2372 = smul.u32 16, %s24
      $region76: #{gcnnm_forward.3} parent=71 // pred_fallthru
        _
    $region72: #{gcnnm_forward.3} parent=5 // pred_fallthru
      _
    %p2373 = scmp.le.s32.totalorder 2, %s19
    // Predicated region
    $region77: #{gcnnm_forward.3} parent=5 // pred_check
      %p2374 = pneg %p2373
    $region78: #{gcnnm_forward.3} parent=5 // pred_check_branch
      %2376 = sbr.rel (%p2374) target = $region80
    $region79: #{gcnnm_forward.3} parent=5 // pred_region
      %s2377 = ssub.s32 %s19, 2
      // Predicated region
      $region81: #{gcnnm_forward.3} parent=79 // pred_check
        %p2378 = pneg %p331
      $region82: #{gcnnm_forward.3} parent=79 // pred_check_branch
        %2380 = sbr.rel (%p2378) target = $region84
      $region83: #{gcnnm_forward.3} parent=79 // pred_region
        %s2381 = smul.u32 16, %s25
        %p2382 = scmp.lt.s32.totalorder %s2381, 31
        %s2383 = scalar_select %p2382, %s2381, 31
        %s2384 = smul.addr %s2383, 8
        %s2385 = scalar_lea.vmem %s13, %s2384
      $region84: #{gcnnm_forward.3} parent=79 // pred_fallthru
        _
    $region80: #{gcnnm_forward.3} parent=5 // pred_fallthru
      _
  $region6: #{gcnnm_forward.3} parent=0 // loop_footer
    %s23 = sadd.s32 1, %s19
  $region7: #{gcnnm_forward.3} parent=0 // loop_footer_branch
    %18 = sbr.rel target = $region3
  $region8: #{gcnnm_forward.3} parent=0 // loop_exit
    _

</llo_original>
